<compile_context>
chip_gen: v7x
topology: tpu7x:2x2x1
jax: 0.10.0
libtpu: 0.0.40
codegen_flags: <defaults>
</compile_context>

<pallas_src>
import functools
import numpy as np
import jax
import jax.numpy as jnp
from jax import lax
from jax.experimental import pallas as pl
from jax.experimental.pallas import tpu as pltpu

# ----- synthetic config (mirrors cfg.model.*) --------------------------------
N_FREQ_X = 4                      # encoder_x : frequency encoding, 1-d input
N_FREQ_UV = 6                     # encoder_uv: frequency encoding, 2-d input
ENC_X_DIM = 2 * N_FREQ_X * 1      # 8
ENC_UV_DIM = 2 * N_FREQ_UV * 2    # 24
ENC_DIM = ENC_X_DIM + ENC_UV_DIM  # 32   (encoder.output_dim)
HIDDEN = 32                       # cfg.model.hidden_size
N_LAYERS = 2                      # cfg.model.n_layers
OUT_DIM = 3

_CHUNK = 512                      # in-kernel lane chunk (bounds vreg live ranges)
_MAX_TILE = 2048                  # per-grid-step lane tile upper bound


# ----- fused-encoder constants ------------------------------------------------
def _encoder_constants():
    """fx/fu/fv/phase (ENC_DIM,) so enc = sin(fx*x + fu*u + fv*v + phase).

    Feature order matches PosEncoderCustom / reference_forward exactly:
      x part : [sin(x*f0), cos(x*f0), sin(x*f1), cos(x*f1), ...]
      uv part: per freq [sin(u*f), sin(v*f), cos(u*f), cos(v*f)]
    cos(t) is expressed as sin(t + pi/2).
    """
    fx = np.zeros(ENC_DIM, np.float32)
    fu = np.zeros(ENC_DIM, np.float32)
    fv = np.zeros(ENC_DIM, np.float32)
    ph = np.zeros(ENC_DIM, np.float32)
    j = 0
    for l in range(N_FREQ_X):
        f = (2.0 ** l) * np.pi
        fx[j] = f; ph[j] = 0.0;          j += 1   # sin(x*f)
        fx[j] = f; ph[j] = np.pi / 2.0;  j += 1   # cos(x*f)
    for l in range(N_FREQ_UV):
        f = (2.0 ** l) * np.pi
        fu[j] = f; ph[j] = 0.0;          j += 1   # sin(u*f)
        fv[j] = f; ph[j] = 0.0;          j += 1   # sin(v*f)
        fu[j] = f; ph[j] = np.pi / 2.0;  j += 1   # cos(u*f)
        fv[j] = f; ph[j] = np.pi / 2.0;  j += 1   # cos(v*f)
    assert j == ENC_DIM
    return jnp.asarray(fx), jnp.asarray(fu), jnp.asarray(fv), jnp.asarray(ph)


def _pack_params(params):
    """Pack all per-layer constants into two small slabs (2 DMAs instead of 9)."""
    win, bin_, wh, bh, wout, bout = params
    # Stacking W_in^T with the (H, H) hidden weights requires ENC_DIM == HIDDEN
    # (true for this config: 32 == 32).
    assert ENC_DIM == HIDDEN and win.shape == (ENC_DIM, HIDDEN)

    fx, fu, fv, ph = _encoder_constants()

    wout_t_pad = jnp.zeros((HIDDEN, HIDDEN), jnp.float32).at[:OUT_DIM, :].set(
        wout.T.astype(jnp.float32))
    wmat = jnp.stack(
        [win.T.astype(jnp.float32)]
        + [wh[i].T.astype(jnp.float32) for i in range(N_LAYERS)]
        + [wout_t_pad])                                    # (N_LAYERS+2, H, H)

    bout_pad = jnp.zeros((HIDDEN,), jnp.float32).at[:OUT_DIM].set(
        bout.reshape(-1).astype(jnp.float32))
    vecs = jnp.stack(
        [fx, fu, fv, ph, bin_.reshape(-1).astype(jnp.float32)]
        + [bh[i].astype(jnp.float32) for i in range(N_LAYERS)]
        + [bout_pad],
        axis=1)                                            # (H, N_LAYERS+6)
    return wmat, vecs


# ----- Pallas kernel (transposed: features on sublanes, points on lanes) ------
def nerf_kernel(inp_ref, wmat_ref, vecs_ref, out_ref, *, chunk, n_chunks):
    # Constants: carved once per grid step with static slices (the blocks are
    # VMEM-resident across the whole grid — constant block index).
    w_in = wmat_ref[0]                                     # (H, ENC_DIM)
    w_h = [wmat_ref[1 + i] for i in range(N_LAYERS)]       # (H, H) each
    w_out = wmat_ref[1 + N_LAYERS][:OUT_DIM, :]            # (3, H)
    vecs = vecs_ref[...]                                   # (H, N_LAYERS+6)
    fx, fu, fv = vecs[:, 0:1], vecs[:, 1:2], vecs[:, 2:3]
    ph = vecs[:, 3:4]
    b_in = vecs[:, 4:5]
    b_h = [vecs[:, 5 + i:6 + i] for i in range(N_LAYERS)]
    b_out = vecs[:OUT_DIM, 5 + N_LAYERS:6 + N_LAYERS]      # (3, 1)

    def process(start):
        pts = inp_ref[:, pl.ds(start, chunk)].astype(jnp.float32)   # (3, chunk)
        xr, ur, vr = pts[0:1, :], pts[1:2, :], pts[2:3, :]
        # Fused positional encoding on the VPU (full f32 phase precision,
        # cos folded in as sin(t + pi/2) via the phase column).
        enc = jnp.sin(fx * xr + fu * ur + fv * vr + ph)              # (32, chunk)
        # MLP (transposed): input linear (no activation), N_LAYERS x
        # (linear + ReLU), output linear.  Biases broadcast along lanes.
        h = jnp.dot(w_in, enc, preferred_element_type=jnp.float32) + b_in
        for i in range(N_LAYERS):                                    # static unroll
            h = jnp.dot(w_h[i], h, preferred_element_type=jnp.float32) + b_h[i]
            h = jnp.maximum(h, 0.0)
        y = jnp.dot(w_out, h, preferred_element_type=jnp.float32) + b_out
        out_ref[:, pl.ds(start, chunk)] = y.astype(out_ref.dtype)    # lane-dense

    if n_chunks == 1:
        process(0)
    else:
        def body(c, carry):
            process(pl.multiple_of(c * chunk, chunk))
            return carry
        lax.fori_loop(0, n_chunks, body, 0, unroll=True)


# ----- tile selection ----------------------------------------------------------
def _pick_tile_n(n):
    """>= 4 grid steps when possible (2/TC on v7x), multiples of 128/512, <= 2048."""
    target = max(1, -(-n // 4))                  # ceil(n / 4)
    if target <= _CHUNK:
        t = -(-target // 128) * 128              # round up to 128
        return max(128, min(_CHUNK, t))
    t = -(-target // _CHUNK) * _CHUNK            # round up to chunk multiple
    return min(_MAX_TILE, t)


# ----- wrappers ----------------------------------------------------------------
def nerf_forward_planar(inp_t, params, tile_n=None):
    """(3, N) points -> (3, N) rgb.  No wrapper-side transposes / copies."""
    n = inp_t.shape[1]
    if tile_n is None:
        tile_n = _pick_tile_n(n)
    chunk = min(_CHUNK, tile_n)
    assert tile_n % chunk == 0
    n_chunks = tile_n // chunk

    n_pad = pl.cdiv(n, tile_n) * tile_n
    if n_pad != n:          # tail fallback only; no pad copy when N is aligned
        inp_t = jnp.pad(inp_t, ((0, 0), (0, n_pad - n)))

    wmat, vecs = _pack_params(params)
    kernel = functools.partial(nerf_kernel, chunk=chunk, n_chunks=n_chunks)

    out_t = pl.pallas_call(
        kernel,
        out_shape=jax.ShapeDtypeStruct((OUT_DIM, n_pad), jnp.float32),
        grid_spec=pltpu.PrefetchScalarGridSpec(
            num_scalar_prefetch=0,
            grid=(n_pad // tile_n,),
            in_specs=[
                pl.BlockSpec((3, tile_n), lambda i: (0, i)),            # points^T
                pl.BlockSpec((N_LAYERS + 2, HIDDEN, HIDDEN),            # weights
                             lambda i: (0, 0, 0)),
                pl.BlockSpec((HIDDEN, N_LAYERS + 6), lambda i: (0, 0)),  # vectors
            ],
            out_specs=pl.BlockSpec((OUT_DIM, tile_n), lambda i: (0, i)),
        ),
        compiler_params=pltpu.CompilerParams(
            dimension_semantics=("parallel",)),
    )(inp_t, wmat, vecs)

    return out_t if n_pad == n else out_t[:, :n]


def nerf_forward(inp, params, tile_n=None):
    """(N, 3) points -> (N, 3) rgb (matches the torch module contract)."""
    out_t = nerf_forward_planar(inp.T, params, tile_n)
    return out_t.T


# ----- plain-JAX reference (matches the torch module exactly) -----------------
def reference_forward(inp, params):
    win, bin_, wh, bh, wout, bout = params
    x = inp[:, 0:1]
    uv = inp[:, 1:3]
    feats = []
    for l in range(N_FREQ_X):
        f = (2.0 ** l) * jnp.pi
        feats.append(jnp.sin(x * f))
        feats.append(jnp.cos(x * f))
    for l in range(N_FREQ_UV):
        f = (2.0 ** l) * jnp.pi
        feats.append(jnp.sin(uv * f))
        feats.append(jnp.cos(uv * f))
    enc = jnp.concatenate(feats, axis=1)
    h = enc @ win + bin_
    for i in range(N_LAYERS):
        h = jnp.maximum(h @ wh[i] + bh[i], 0.0)
    return h @ wout + bout


# ----- main -------------------------------------------------------------------
if __name__ == "__main__":
    key = jax.random.PRNGKey(0)
    keys = jax.random.split(key, 7)

    N = 4096                      # tile_n=1024 -> 4 grid steps, 2 chunks/step
    # input points: column 0 = x, columns 1:3 = uv, all in [0, 1]
    inp = jax.random.uniform(keys[0], (N, 3), jnp.float32)

    # deterministic synthetic parameters (shapes follow _get_mlp)
    win = jax.random.normal(keys[1], (ENC_DIM, HIDDEN), jnp.float32) * 0.1
    bin_ = jax.random.normal(keys[2], (1, HIDDEN), jnp.float32) * 0.1
    wh = jax.random.normal(keys[3], (N_LAYERS, HIDDEN, HIDDEN), jnp.float32) * 0.1
    bh = jax.random.normal(keys[4], (N_LAYERS, HIDDEN), jnp.float32) * 0.1
    wout = jax.random.normal(keys[5], (HIDDEN, OUT_DIM), jnp.float32) * 0.1
    bout = jax.random.normal(keys[6], (1, OUT_DIM), jnp.float32) * 0.1
    params = (win, bin_, wh, bh, wout, bout)

    fwd = jax.jit(nerf_forward)
    out = jax.block_until_ready(fwd(inp, params))

    ref = reference_forward(inp, params)
    assert out.shape == (N, OUT_DIM)
    assert jnp.allclose(out, ref, atol=1e-4, rtol=1e-4), "mismatch vs reference"

    print("KERNEL_OK")
</pallas_src>

<mosaic_0001>
module attributes {stable_mosaic.version = 11 : i64} {
  func.func @nerf_kernel(%arg0: i32, %arg1: memref<3x1024xf32, #tpu.memory_space<vmem>>, %arg2: memref<4x32x32xf32, #tpu.memory_space<vmem>>, %arg3: memref<32x8xf32, #tpu.memory_space<vmem>>, %arg4: memref<3x1024xf32, #tpu.memory_space<vmem>>) attributes {dimension_semantics = [#tpu.dimension_semantics<parallel>], iteration_bounds = array<i64: 4>, scalar_prefetch = 0 : i64, scratch_operands = 0 : i64, tpu.core_type = #tpu.core_type<tc>, window_params = [{transform_indices = @transform_0, window_bounds = array<i64: 3, 1024>}, {pipeline_mode = #tpu.pipeline_mode<synchronous>, transform_indices = @transform_1, window_bounds = array<i64: 4, 32, 32>}, {pipeline_mode = #tpu.pipeline_mode<synchronous>, transform_indices = @transform_2, window_bounds = array<i64: 32, 8>}, {transform_indices = @transform_3, window_bounds = array<i64: 3, 1024>}]} {
    %c0 = arith.constant 0 : index
    %c0_0 = arith.constant 0 : index
    %c0_1 = arith.constant 0 : index
    %0 = vector.load %arg2[%c0, %c0_0, %c0_1] : memref<4x32x32xf32, #tpu.memory_space<vmem>>, vector<1x32x32xf32>
    %1 = vector.shape_cast %0 : vector<1x32x32xf32> to vector<32x32xf32>
    %c1 = arith.constant 1 : index
    %c0_2 = arith.constant 0 : index
    %c0_3 = arith.constant 0 : index
    %2 = vector.load %arg2[%c1, %c0_2, %c0_3] : memref<4x32x32xf32, #tpu.memory_space<vmem>>, vector<1x32x32xf32>
    %3 = vector.shape_cast %2 : vector<1x32x32xf32> to vector<32x32xf32>
    %c2 = arith.constant 2 : index
    %c0_4 = arith.constant 0 : index
    %c0_5 = arith.constant 0 : index
    %4 = vector.load %arg2[%c2, %c0_4, %c0_5] : memref<4x32x32xf32, #tpu.memory_space<vmem>>, vector<1x32x32xf32>
    %5 = vector.shape_cast %4 : vector<1x32x32xf32> to vector<32x32xf32>
    %c3 = arith.constant 3 : index
    %c0_6 = arith.constant 0 : index
    %c0_7 = arith.constant 0 : index
    %6 = vector.load %arg2[%c3, %c0_6, %c0_7] : memref<4x32x32xf32, #tpu.memory_space<vmem>>, vector<1x32x32xf32>
    %7 = vector.shape_cast %6 : vector<1x32x32xf32> to vector<32x32xf32>
    %8 = vector.extract_strided_slice %7 {offsets = [0, 0], sizes = [3, 32], strides = [1, 1]} : vector<32x32xf32> to vector<3x32xf32>
    %c0_8 = arith.constant 0 : index
    %c0_9 = arith.constant 0 : index
    %9 = vector.load %arg3[%c0_8, %c0_9] : memref<32x8xf32, #tpu.memory_space<vmem>>, vector<32x8xf32>
    %10 = vector.extract_strided_slice %9 {offsets = [0, 0], sizes = [32, 1], strides = [1, 1]} : vector<32x8xf32> to vector<32x1xf32>
    %11 = vector.extract_strided_slice %9 {offsets = [0, 1], sizes = [32, 1], strides = [1, 1]} : vector<32x8xf32> to vector<32x1xf32>
    %12 = vector.extract_strided_slice %9 {offsets = [0, 2], sizes = [32, 1], strides = [1, 1]} : vector<32x8xf32> to vector<32x1xf32>
    %13 = vector.extract_strided_slice %9 {offsets = [0, 3], sizes = [32, 1], strides = [1, 1]} : vector<32x8xf32> to vector<32x1xf32>
    %14 = vector.extract_strided_slice %9 {offsets = [0, 4], sizes = [32, 1], strides = [1, 1]} : vector<32x8xf32> to vector<32x1xf32>
    %15 = vector.extract_strided_slice %9 {offsets = [0, 5], sizes = [32, 1], strides = [1, 1]} : vector<32x8xf32> to vector<32x1xf32>
    %16 = vector.extract_strided_slice %9 {offsets = [0, 6], sizes = [32, 1], strides = [1, 1]} : vector<32x8xf32> to vector<32x1xf32>
    %17 = vector.extract_strided_slice %9 {offsets = [0, 7], sizes = [3, 1], strides = [1, 1]} : vector<32x8xf32> to vector<3x1xf32>
    %c0_i32 = arith.constant 0 : i32
    %c512_i32 = arith.constant 512 : i32
    %18 = arith.muli %c0_i32, %c512_i32 : i32
    %19 = tpu.assume_multiple %18, 512 : i32
    %c0_10 = arith.constant 0 : index
    %20 = arith.index_cast %19 : i32 to index
    %21 = vector.load %arg1[%c0_10, %20] : memref<3x1024xf32, #tpu.memory_space<vmem>>, vector<3x512xf32>
    %22 = vector.extract_strided_slice %21 {offsets = [0, 0], sizes = [1, 512], strides = [1, 1]} : vector<3x512xf32> to vector<1x512xf32>
    %23 = vector.extract_strided_slice %21 {offsets = [1, 0], sizes = [1, 512], strides = [1, 1]} : vector<3x512xf32> to vector<1x512xf32>
    %24 = vector.extract_strided_slice %21 {offsets = [2, 0], sizes = [1, 512], strides = [1, 1]} : vector<3x512xf32> to vector<1x512xf32>
    %25 = vector.broadcast %10 : vector<32x1xf32> to vector<32x512xf32>
    %26 = vector.broadcast %22 : vector<1x512xf32> to vector<32x512xf32>
    %27 = arith.mulf %25, %26 : vector<32x512xf32>
    %28 = vector.broadcast %11 : vector<32x1xf32> to vector<32x512xf32>
    %29 = vector.broadcast %23 : vector<1x512xf32> to vector<32x512xf32>
    %30 = arith.mulf %28, %29 : vector<32x512xf32>
    %31 = arith.addf %27, %30 : vector<32x512xf32>
    %32 = vector.broadcast %12 : vector<32x1xf32> to vector<32x512xf32>
    %33 = vector.broadcast %24 : vector<1x512xf32> to vector<32x512xf32>
    %34 = arith.mulf %32, %33 : vector<32x512xf32>
    %35 = arith.addf %31, %34 : vector<32x512xf32>
    %36 = vector.broadcast %13 : vector<32x1xf32> to vector<32x512xf32>
    %37 = arith.addf %35, %36 : vector<32x512xf32>
    %38 = math.sin %37 : vector<32x512xf32>
    %cst = arith.constant dense<0.000000e+00> : vector<32x512xf32>
    %39 = tpu.matmul %1, %38, %cst {dimension_numbers = #tpu.dot_dimension_numbers<[1], [0], [0], [1], [0, 0, 1, 1], [], []>} : vector<32x32xf32>, vector<32x512xf32>, vector<32x512xf32> -> vector<32x512xf32>
    %40 = vector.broadcast %14 : vector<32x1xf32> to vector<32x512xf32>
    %41 = arith.addf %39, %40 : vector<32x512xf32>
    %cst_11 = arith.constant dense<0.000000e+00> : vector<32x512xf32>
    %42 = tpu.matmul %3, %41, %cst_11 {dimension_numbers = #tpu.dot_dimension_numbers<[1], [0], [0], [1], [0, 0, 1, 1], [], []>} : vector<32x32xf32>, vector<32x512xf32>, vector<32x512xf32> -> vector<32x512xf32>
    %43 = vector.broadcast %15 : vector<32x1xf32> to vector<32x512xf32>
    %44 = arith.addf %42, %43 : vector<32x512xf32>
    %cst_12 = arith.constant 0.000000e+00 : f32
    %45 = vector.broadcast %cst_12 : f32 to vector<32x512xf32>
    %46 = arith.maximumf %44, %45 : vector<32x512xf32>
    %cst_13 = arith.constant dense<0.000000e+00> : vector<32x512xf32>
    %47 = tpu.matmul %5, %46, %cst_13 {dimension_numbers = #tpu.dot_dimension_numbers<[1], [0], [0], [1], [0, 0, 1, 1], [], []>} : vector<32x32xf32>, vector<32x512xf32>, vector<32x512xf32> -> vector<32x512xf32>
    %48 = vector.broadcast %16 : vector<32x1xf32> to vector<32x512xf32>
    %49 = arith.addf %47, %48 : vector<32x512xf32>
    %cst_14 = arith.constant 0.000000e+00 : f32
    %50 = vector.broadcast %cst_14 : f32 to vector<32x512xf32>
    %51 = arith.maximumf %49, %50 : vector<32x512xf32>
    %cst_15 = arith.constant dense<0.000000e+00> : vector<3x512xf32>
    %52 = tpu.matmul %8, %51, %cst_15 {dimension_numbers = #tpu.dot_dimension_numbers<[1], [0], [0], [1], [0, 0, 1, 1], [], []>} : vector<3x32xf32>, vector<32x512xf32>, vector<3x512xf32> -> vector<3x512xf32>
    %53 = vector.broadcast %17 : vector<3x1xf32> to vector<3x512xf32>
    %54 = arith.addf %52, %53 : vector<3x512xf32>
    %c0_16 = arith.constant 0 : index
    %55 = arith.index_cast %19 : i32 to index
    %56 = vector.load %arg4[%c0_16, %55] : memref<3x1024xf32, #tpu.memory_space<vmem>>, vector<3x512xf32>
    tpu.vector_store %arg4[%c0_16, %55], %54 {strides = array<i32>} : memref<3x1024xf32, #tpu.memory_space<vmem>>, vector<3x512xf32>,
    %c1_i32 = arith.constant 1 : i32
    %c512_i32_17 = arith.constant 512 : i32
    %57 = arith.muli %c1_i32, %c512_i32_17 : i32
    %58 = tpu.assume_multiple %57, 512 : i32
    %c0_18 = arith.constant 0 : index
    %59 = arith.index_cast %58 : i32 to index
    %60 = vector.load %arg1[%c0_18, %59] : memref<3x1024xf32, #tpu.memory_space<vmem>>, vector<3x512xf32>
    %61 = vector.extract_strided_slice %60 {offsets = [0, 0], sizes = [1, 512], strides = [1, 1]} : vector<3x512xf32> to vector<1x512xf32>
    %62 = vector.extract_strided_slice %60 {offsets = [1, 0], sizes = [1, 512], strides = [1, 1]} : vector<3x512xf32> to vector<1x512xf32>
    %63 = vector.extract_strided_slice %60 {offsets = [2, 0], sizes = [1, 512], strides = [1, 1]} : vector<3x512xf32> to vector<1x512xf32>
    %64 = vector.broadcast %10 : vector<32x1xf32> to vector<32x512xf32>
    %65 = vector.broadcast %61 : vector<1x512xf32> to vector<32x512xf32>
    %66 = arith.mulf %64, %65 : vector<32x512xf32>
    %67 = vector.broadcast %11 : vector<32x1xf32> to vector<32x512xf32>
    %68 = vector.broadcast %62 : vector<1x512xf32> to vector<32x512xf32>
    %69 = arith.mulf %67, %68 : vector<32x512xf32>
    %70 = arith.addf %66, %69 : vector<32x512xf32>
    %71 = vector.broadcast %12 : vector<32x1xf32> to vector<32x512xf32>
    %72 = vector.broadcast %63 : vector<1x512xf32> to vector<32x512xf32>
    %73 = arith.mulf %71, %72 : vector<32x512xf32>
    %74 = arith.addf %70, %73 : vector<32x512xf32>
    %75 = vector.broadcast %13 : vector<32x1xf32> to vector<32x512xf32>
    %76 = arith.addf %74, %75 : vector<32x512xf32>
    %77 = math.sin %76 : vector<32x512xf32>
    %cst_19 = arith.constant dense<0.000000e+00> : vector<32x512xf32>
    %78 = tpu.matmul %1, %77, %cst_19 {dimension_numbers = #tpu.dot_dimension_numbers<[1], [0], [0], [1], [0, 0, 1, 1], [], []>} : vector<32x32xf32>, vector<32x512xf32>, vector<32x512xf32> -> vector<32x512xf32>
    %79 = vector.broadcast %14 : vector<32x1xf32> to vector<32x512xf32>
    %80 = arith.addf %78, %79 : vector<32x512xf32>
    %cst_20 = arith.constant dense<0.000000e+00> : vector<32x512xf32>
    %81 = tpu.matmul %3, %80, %cst_20 {dimension_numbers = #tpu.dot_dimension_numbers<[1], [0], [0], [1], [0, 0, 1, 1], [], []>} : vector<32x32xf32>, vector<32x512xf32>, vector<32x512xf32> -> vector<32x512xf32>
    %82 = vector.broadcast %15 : vector<32x1xf32> to vector<32x512xf32>
    %83 = arith.addf %81, %82 : vector<32x512xf32>
    %cst_21 = arith.constant 0.000000e+00 : f32
    %84 = vector.broadcast %cst_21 : f32 to vector<32x512xf32>
    %85 = arith.maximumf %83, %84 : vector<32x512xf32>
    %cst_22 = arith.constant dense<0.000000e+00> : vector<32x512xf32>
    %86 = tpu.matmul %5, %85, %cst_22 {dimension_numbers = #tpu.dot_dimension_numbers<[1], [0], [0], [1], [0, 0, 1, 1], [], []>} : vector<32x32xf32>, vector<32x512xf32>, vector<32x512xf32> -> vector<32x512xf32>
    %87 = vector.broadcast %16 : vector<32x1xf32> to vector<32x512xf32>
    %88 = arith.addf %86, %87 : vector<32x512xf32>
    %cst_23 = arith.constant 0.000000e+00 : f32
    %89 = vector.broadcast %cst_23 : f32 to vector<32x512xf32>
    %90 = arith.maximumf %88, %89 : vector<32x512xf32>
    %cst_24 = arith.constant dense<0.000000e+00> : vector<3x512xf32>
    %91 = tpu.matmul %8, %90, %cst_24 {dimension_numbers = #tpu.dot_dimension_numbers<[1], [0], [0], [1], [0, 0, 1, 1], [], []>} : vector<3x32xf32>, vector<32x512xf32>, vector<3x512xf32> -> vector<3x512xf32>
    %92 = vector.broadcast %17 : vector<3x1xf32> to vector<3x512xf32>
    %93 = arith.addf %91, %92 : vector<3x512xf32>
    %c0_25 = arith.constant 0 : index
    %94 = arith.index_cast %58 : i32 to index
    %95 = vector.load %arg4[%c0_25, %94] : memref<3x1024xf32, #tpu.memory_space<vmem>>, vector<3x512xf32>
    tpu.vector_store %arg4[%c0_25, %94], %93 {strides = array<i32>} : memref<3x1024xf32, #tpu.memory_space<vmem>>, vector<3x512xf32>,
    %c2_i32 = arith.constant 2 : i32
    return
  }
  func.func @transform_0(%arg0: i32) -> (i32, i32) {
    %c0_i32 = arith.constant 0 : i32
    %c0_i32_0 = arith.constant 0 : i32
    return %c0_i32, %arg0 : i32, i32
  }
  func.func @transform_1(%arg0: i32) -> (i32, i32, i32) {
    %c0_i32 = arith.constant 0 : i32
    %c0_i32_0 = arith.constant 0 : i32
    %c0_i32_1 = arith.constant 0 : i32
    %c0_i32_2 = arith.constant 0 : i32
    return %c0_i32, %c0_i32_0, %c0_i32_1 : i32, i32, i32
  }
  func.func @transform_2(%arg0: i32) -> (i32, i32) {
    %c0_i32 = arith.constant 0 : i32
    %c0_i32_0 = arith.constant 0 : i32
    %c0_i32_1 = arith.constant 0 : i32
    return %c0_i32, %c0_i32_0 : i32, i32
  }
  func.func @transform_3(%arg0: i32) -> (i32, i32) {
    %c0_i32 = arith.constant 0 : i32
    %c0_i32_0 = arith.constant 0 : i32
    return %c0_i32, %arg0 : i32, i32
  }
}

</mosaic_0001>

<llo_original>
// kernel: nerf_forward.1
$region0: #{nerf_forward.1}
  #allocation0 [shape = 'u32[]', space=smem, size = 0x4, offset = 0x4, fixed_abs, tag = 'smem constant byte address 0x4 - core index']
  #allocation1 [shape = 'u32[144,128]{1,0:T(1,128)}', space=vmem, size = 0x12000, scoped, tag = 'internal scratch']
  %s0 = inlined_call_operand.vmem [shape: f32[3,4096], index: 0, kind: input, shape index: {}]
  %s1 = inlined_call_operand.vmem [shape: f32[4,32,32], index: 1, kind: input, shape index: {}]
  %s2 = inlined_call_operand.vmem [shape: f32[32,8], index: 2, kind: input, shape index: {}]
  %s3 = inlined_call_operand.hbm [shape: f32[3,4096], index: 3, kind: output, shape index: {}]
  %s4 = sld [smem:[#allocation0]]
  $region45: #{nerf_forward.1} parent=0
    _
  %s6 = ssub.s32 1, %s4
  %s7 = scalar_select 0, %s6, %s4
  $region1: #{nerf_forward.1} parent=0
    #allocation2 [shape = 'u8[32768]{0}', space=vmem, size = 0x8000, scoped, tag = 'output window, operand 0']
    #allocation3 [shape = 's32[2]{0}', space=sflag, size = 0x8, scoped, tag = 'scoped memory for nerf_forward.1']
    %8 = vsyncpa [#allocation3], 0
    %s9 = scalar_lea.sflag [#allocation3], 1
    %10 = vsyncpa %s9, 0
    loop: start=0, step=1, limit=6
    $region2: #{nerf_forward.1} parent=1 // loop_pre_header
      _
    $region3: #{nerf_forward.1} parent=1 // loop_header
      %s12 = sphi 0, %s16
      %p13 = scmp.ge.s32.totalorder %s12, 6
      %s22 = sphi 0, %s24
      %s25 = sphi 0, %s22
      %s26 = sphi 0, %s25
      %s42 = sphi 0, %s26
      %s46 = sphi 0, %s46
      %s48 = sphi 0, %s46
      %s49 = sphi 0, %s48
      %s63 = sphi 0, %s49
      %s67 = sphi 0, %s67
      %s69 = sphi 0, %s67
      %s70 = sphi 0, %s69
      %s84 = sphi 0, %s70
      %s90 = sphi 0, %s92
      %s93 = sphi 0, %s90
      %s94 = sphi 0, %s93
      %s110 = sphi 0, %s94
    $region4: #{nerf_forward.1} parent=1 // loop_header_branch
      %15 = sbr.rel (%p13) target = $region8
    $region5: #{nerf_forward.1} parent=1 // loop_body
      %s17 = ssub.s32 %s12, 1
      %s18 = ssub.s32 %s12, 2
      %s19 = sadd.s32 %s12, 1
      %s20 = ssub.s32 %s12, %s19
      %p21 = scmp.eq.s32.totalorder %s20, 0
      %s23 = sadd.s32 %s22, 1
      %s24 = scalar_select %p21, %s22, %s23
      %p27 = pneg %p21
      %p28 = scmp.eq.s32.totalorder %s12, 3
      %p29 = por %p27, %p28
      %p30 = scmp.ne.s32.totalorder %s22, %s25
      %p31 = scmp.eq.s32.totalorder %s12, 0
      %p32 = por %p30, %p31
      %p33 = scmp.ne.s32.totalorder %s22, %s25
      %p34 = scmp.eq.s32.totalorder %s17, 3
      %p35 = por %p33, %p34
      %p36 = scmp.ne.s32.totalorder %s25, %s26
      %p37 = scmp.eq.s32.totalorder %s17, 0
      %p38 = por %p36, %p37
      %p39 = scmp.ne.s32.totalorder %s25, %s26
      %p40 = scmp.eq.s32.totalorder %s18, 3
      %p41 = por %p39, %p40
      %p43 = scmp.ne.s32.totalorder %s26, %s42
      %p44 = scmp.eq.s32.totalorder %s18, 0
      %p45 = por %p43, %p44
      %s47 = sadd.s32 %s46, 1
      %p50 = scmp.eq.s32.totalorder %s12, 3
      %p51 = scmp.ne.s32.totalorder %s46, %s48
      %p52 = scmp.eq.s32.totalorder %s12, 0
      %p53 = por %p51, %p52
      %p54 = scmp.ne.s32.totalorder %s46, %s48
      %p55 = scmp.eq.s32.totalorder %s17, 3
      %p56 = por %p54, %p55
      %p57 = scmp.ne.s32.totalorder %s48, %s49
      %p58 = scmp.eq.s32.totalorder %s17, 0
      %p59 = por %p57, %p58
      %p60 = scmp.ne.s32.totalorder %s48, %s49
      %p61 = scmp.eq.s32.totalorder %s18, 3
      %p62 = por %p60, %p61
      %p64 = scmp.ne.s32.totalorder %s49, %s63
      %p65 = scmp.eq.s32.totalorder %s18, 0
      %p66 = por %p64, %p65
      %s68 = sadd.s32 %s67, 1
      %p71 = scmp.eq.s32.totalorder %s12, 3
      %p72 = scmp.ne.s32.totalorder %s67, %s69
      %p73 = scmp.eq.s32.totalorder %s12, 0
      %p74 = por %p72, %p73
      %p75 = scmp.ne.s32.totalorder %s67, %s69
      %p76 = scmp.eq.s32.totalorder %s17, 3
      %p77 = por %p75, %p76
      %p78 = scmp.ne.s32.totalorder %s69, %s70
      %p79 = scmp.eq.s32.totalorder %s17, 0
      %p80 = por %p78, %p79
      %p81 = scmp.ne.s32.totalorder %s69, %s70
      %p82 = scmp.eq.s32.totalorder %s18, 3
      %p83 = por %p81, %p82
      %p85 = scmp.ne.s32.totalorder %s70, %s84
      %p86 = scmp.eq.s32.totalorder %s18, 0
      %p87 = por %p85, %p86
      %s88 = ssub.s32 %s12, %s19
      %p89 = scmp.eq.s32.totalorder %s88, 0
      %s91 = sadd.s32 %s90, 1
      %s92 = scalar_select %p89, %s90, %s91
      %p95 = pneg %p89
      %p96 = scmp.eq.s32.totalorder %s12, 3
      %p97 = por %p95, %p96
      %p98 = scmp.ne.s32.totalorder %s90, %s93
      %p99 = scmp.eq.s32.totalorder %s12, 0
      %p100 = por %p98, %p99
      %p101 = scmp.ne.s32.totalorder %s90, %s93
      %p102 = scmp.eq.s32.totalorder %s17, 3
      %p103 = por %p101, %p102
      %p104 = scmp.ne.s32.totalorder %s93, %s94
      %p105 = scmp.eq.s32.totalorder %s17, 0
      %p106 = por %p104, %p105
      %p107 = scmp.ne.s32.totalorder %s93, %s94
      %p108 = scmp.eq.s32.totalorder %s18, 3
      %p109 = por %p107, %p108
      %p111 = scmp.ne.s32.totalorder %s94, %s110
      %p112 = scmp.eq.s32.totalorder %s18, 0
      %p113 = por %p111, %p112
      %p114 = scmp.le.s32.totalorder 1, %s12
      %p115 = scmp.lt.s32.totalorder %s12, 5
      %p116 = pnand %p114, %p115
      %p117 = pneg %p116
      // Predicated region
      $region9: #{nerf_forward.1} parent=5 // pred_check
        _
      $region10: #{nerf_forward.1} parent=5 // pred_check_branch
        %119 = sbr.rel (%p116) target = $region12
      $region11: #{nerf_forward.1} parent=5 // pred_region
        %s120 = ssub.s32 %s12, 1
        // Predicated region
        $region13: #{nerf_forward.1} parent=11 // pred_check
          %p121 = pneg %p59
        $region14: #{nerf_forward.1} parent=11 // pred_check_branch
          %123 = sbr.rel (%p121) target = $region16
        $region15: #{nerf_forward.1} parent=11 // pred_region
          _
        $region16: #{nerf_forward.1} parent=11 // pred_fallthru
          _
        // Predicated region
        $region17: #{nerf_forward.1} parent=11 // pred_check
          %p124 = pneg %p80
        $region18: #{nerf_forward.1} parent=11 // pred_check_branch
          %126 = sbr.rel (%p124) target = $region20
        $region19: #{nerf_forward.1} parent=11 // pred_region
          _
        $region20: #{nerf_forward.1} parent=11 // pred_fallthru
          _
      $region12: #{nerf_forward.1} parent=5 // pred_fallthru
        _
      %p127 = scmp.lt.s32.totalorder %s12, 4
      // Predicated region
      $region21: #{nerf_forward.1} parent=5 // pred_check
        %p128 = pneg %p127
      $region22: #{nerf_forward.1} parent=5 // pred_check_branch
        %130 = sbr.rel (%p128) target = $region24
      $region23: #{nerf_forward.1} parent=5 // pred_region
        // Predicated region
        $region25: #{nerf_forward.1} parent=23 // pred_check
          %p131 = pneg %p32
        $region26: #{nerf_forward.1} parent=23 // pred_check_branch
          %133 = sbr.rel (%p131) target = $region28
        $region27: #{nerf_forward.1} parent=23 // pred_region
          %s134 = smul.u32 8, %s12
          %p135 = scmp.lt.s32.totalorder %s134, 31
          %s136 = scalar_select %p135, %s134, 31
          %s137 = smul.addr %s136, 4
          %s138 = scalar_lea.vmem %s0, %s137
          %s139 = smul.u32 8, %s12
        $region28: #{nerf_forward.1} parent=23 // pred_fallthru
          _
      $region24: #{nerf_forward.1} parent=5 // pred_fallthru
        _
      %p140 = scmp.le.s32.totalorder 1, %s12
      %p141 = scmp.lt.s32.totalorder %s12, 5
      %p142 = pnand %p140, %p141
      %p143 = pneg %p142
      // Predicated region
      $region29: #{nerf_forward.1} parent=5 // pred_check
        _
      $region30: #{nerf_forward.1} parent=5 // pred_check_branch
        %145 = sbr.rel (%p142) target = $region32
      $region31: #{nerf_forward.1} parent=5 // pred_region
        %s146 = ssub.s32 %s12, 1
        %s147 = smul.u32 8, %s17
        %p148 = scmp.lt.s32.totalorder %s147, 31
        %s149 = scalar_select %p148, %s147, 31
        %s150 = smul.addr %s149, 4
        %s151 = scalar_lea.vmem %s0, %s150
        %p152 = pneg %p38
        %p153 = pneg %p35
        %p154 = pneg %p59
        %p155 = pneg %p56
        %p156 = pneg %p80
        %p157 = pneg %p77
        %p158 = pneg %p106
        %p159 = pneg %p103
        %s160 = sand.u32 %s93, 1
        %s161 = scalar_lea.sflag [#allocation3], %s160
        %s162 = sand.u32 %s93, 1
        %s163 = smul.addr %s162, 32
        %s164 = scalar_lea.vmem [#allocation2], %s163
        %s165 = smul.u32 8, %s17
        %p166 = scmp.lt.s32.totalorder %s165, 31
        %s167 = scalar_select %p166, %s165, 31
        %s168 = smul.addr %s167, 4
        %s169 = scalar_lea.vmem %s0, %s168
        %s170 = smul.u32 8, %s17
        %s171 = smul.u32 8, %s17
        %v172 = vld [vmem:[%s1] sm:$0xff]
        %v173 = vld [vmem:[%s1 + $0x8] sm:$0xff]
        %v174 = vld [vmem:[%s1 + $0x10] sm:$0xff]
        %v175 = vld [vmem:[%s1 + $0x18] sm:$0xff]
        %s176 = scalar_lea.vmem %s1, 32
        %v177 = vld [vmem:[%s176] sm:$0xff]
        %v178 = vld [vmem:[%s176 + $0x8] sm:$0xff]
        %v179 = vld [vmem:[%s176 + $0x10] sm:$0xff]
        %v180 = vld [vmem:[%s176 + $0x18] sm:$0xff]
        %s181 = scalar_lea.vmem %s1, 64
        %v182 = vld [vmem:[%s181] sm:$0xff]
        %v183 = vld [vmem:[%s181 + $0x8] sm:$0xff]
        %v184 = vld [vmem:[%s181 + $0x10] sm:$0xff]
        %v185 = vld [vmem:[%s181 + $0x18] sm:$0xff]
        %s186 = scalar_lea.vmem %s1, 96
        %v187 = vld [vmem:[%s186] sm:$0xff]
        %v188 = vld [vmem:[%s2] sm:$0xff]
        %v189 = vld [vmem:[%s2 + $0x8] sm:$0xff]
        %v190 = vld [vmem:[%s2 + $0x10] sm:$0xff]
        %v191 = vld [vmem:[%s2 + $0x18] sm:$0xff]
        %v192 = vld [vmem:[%s169] sm:$0x77]
        %v193 = vld [vmem:[%s169 + $0x8] sm:$0x77]
        %195 = vset.pattern.permute.xlu0 0
        %196 = vperm.xlu0 %195, %v188
        %v197 = vpop.permute.xlu0 %196
        %200 = vset.pattern.permute.xlu0 0
        %201 = vperm.xlu0 %200, %v189
        %v202 = vpop.permute.xlu0 %201
        %205 = vset.pattern.permute.xlu0 0
        %206 = vperm.xlu0 %205, %v190
        %v207 = vpop.permute.xlu0 %206
        %210 = vset.pattern.permute.xlu0 0
        %211 = vperm.xlu0 %210, %v191
        %v212 = vpop.permute.xlu0 %211
        %v216 = vlaneseq
        %v217 = vshrl.u32 %v216, 7
        %v218 = vsub.s32 0, %v217
        %v219 = vrot.slane %v192, %v218
        %v220 = vlaneseq
        %v221 = vshrl.u32 %v220, 7
        %v222 = vsub.s32 4, %v221
        %v223 = vrot.slane %v192, %v222
        %v224 = vlaneseq
        %v225 = vshrl.u32 %v224, 7
        %v226 = vsub.s32 0, %v225
        %v227 = vrot.slane %v193, %v226
        %v228 = vlaneseq
        %v229 = vshrl.u32 %v228, 7
        %v230 = vsub.s32 4, %v229
        %v231 = vrot.slane %v193, %v230
        %v236 = vlaneseq
        %v237 = vshrl.u32 %v236, 7
        %v238 = vsub.s32 0, %v237
        %v239 = vrot.slane %v219, %v238
        %v240 = vlaneseq
        %v241 = vshrl.u32 %v240, 7
        %v242 = vsub.s32 0, %v241
        %v243 = vrot.slane %v223, %v242
        %v244 = vlaneseq
        %v245 = vshrl.u32 %v244, 7
        %v246 = vsub.s32 0, %v245
        %v247 = vrot.slane %v227, %v246
        %v248 = vlaneseq
        %v249 = vshrl.u32 %v248, 7
        %v250 = vsub.s32 0, %v249
        %v251 = vrot.slane %v231, %v250
        %v252 = vmul.f32 %v197, %v239
        %v253 = vmul.f32 %v197, %v243
        %v254 = vmul.f32 %v197, %v247
        %v255 = vmul.f32 %v197, %v251
        %v256 = vmul.f32 %v202, %v239
        %v257 = vmul.f32 %v202, %v243
        %v258 = vmul.f32 %v202, %v247
        %v259 = vmul.f32 %v202, %v251
        %v260 = vmul.f32 %v207, %v239
        %v261 = vmul.f32 %v207, %v243
        %v262 = vmul.f32 %v207, %v247
        %v263 = vmul.f32 %v207, %v251
        %v264 = vmul.f32 %v212, %v239
        %v265 = vmul.f32 %v212, %v243
        %v266 = vmul.f32 %v212, %v247
        %v267 = vmul.f32 %v212, %v251
        %268 = vset.pattern.permute.xlu0 1
        %269 = vperm.xlu0 %268, %v188
        %v270 = vpop.permute.xlu0 %269
        %272 = vset.pattern.permute.xlu0 1
        %273 = vperm.xlu0 %272, %v189
        %v274 = vpop.permute.xlu0 %273
        %276 = vset.pattern.permute.xlu0 1
        %277 = vperm.xlu0 %276, %v190
        %v278 = vpop.permute.xlu0 %277
        %280 = vset.pattern.permute.xlu0 1
        %281 = vperm.xlu0 %280, %v191
        %v282 = vpop.permute.xlu0 %281
        %v284 = vlaneseq
        %v285 = vshrl.u32 %v284, 7
        %v286 = vsub.s32 1, %v285
        %v287 = vrot.slane %v192, %v286
        %v288 = vlaneseq
        %v289 = vshrl.u32 %v288, 7
        %v290 = vsub.s32 5, %v289
        %v291 = vrot.slane %v192, %v290
        %v292 = vlaneseq
        %v293 = vshrl.u32 %v292, 7
        %v294 = vsub.s32 1, %v293
        %v295 = vrot.slane %v193, %v294
        %v296 = vlaneseq
        %v297 = vshrl.u32 %v296, 7
        %v298 = vsub.s32 5, %v297
        %v299 = vrot.slane %v193, %v298
        %v304 = vlaneseq
        %v305 = vshrl.u32 %v304, 7
        %v306 = vsub.s32 1, %v305
        %v307 = vrot.slane %v287, %v306
        %v308 = vlaneseq
        %v309 = vshrl.u32 %v308, 7
        %v310 = vsub.s32 1, %v309
        %v311 = vrot.slane %v291, %v310
        %v312 = vlaneseq
        %v313 = vshrl.u32 %v312, 7
        %v314 = vsub.s32 1, %v313
        %v315 = vrot.slane %v295, %v314
        %v316 = vlaneseq
        %v317 = vshrl.u32 %v316, 7
        %v318 = vsub.s32 1, %v317
        %v319 = vrot.slane %v299, %v318
        %v320 = vmul.f32 %v270, %v307
        %v321 = vmul.f32 %v270, %v311
        %v322 = vmul.f32 %v270, %v315
        %v323 = vmul.f32 %v270, %v319
        %v324 = vmul.f32 %v274, %v307
        %v325 = vmul.f32 %v274, %v311
        %v326 = vmul.f32 %v274, %v315
        %v327 = vmul.f32 %v274, %v319
        %v328 = vmul.f32 %v278, %v307
        %v329 = vmul.f32 %v278, %v311
        %v330 = vmul.f32 %v278, %v315
        %v331 = vmul.f32 %v278, %v319
        %v332 = vmul.f32 %v282, %v307
        %v333 = vmul.f32 %v282, %v311
        %v334 = vmul.f32 %v282, %v315
        %v335 = vmul.f32 %v282, %v319
        %v336 = vadd.f32 %v252, %v320
        %v337 = vadd.f32 %v253, %v321
        %v338 = vadd.f32 %v254, %v322
        %v339 = vadd.f32 %v255, %v323
        %v340 = vadd.f32 %v256, %v324
        %v341 = vadd.f32 %v257, %v325
        %v342 = vadd.f32 %v258, %v326
        %v343 = vadd.f32 %v259, %v327
        %v344 = vadd.f32 %v260, %v328
        %v345 = vadd.f32 %v261, %v329
        %v346 = vadd.f32 %v262, %v330
        %v347 = vadd.f32 %v263, %v331
        %v348 = vadd.f32 %v264, %v332
        %v349 = vadd.f32 %v265, %v333
        %v350 = vadd.f32 %v266, %v334
        %v351 = vadd.f32 %v267, %v335
        %352 = vset.pattern.permute.xlu0 2
        %353 = vperm.xlu0 %352, %v188
        %v354 = vpop.permute.xlu0 %353
        %356 = vset.pattern.permute.xlu0 2
        %357 = vperm.xlu0 %356, %v189
        %v358 = vpop.permute.xlu0 %357
        %360 = vset.pattern.permute.xlu0 2
        %361 = vperm.xlu0 %360, %v190
        %v362 = vpop.permute.xlu0 %361
        %364 = vset.pattern.permute.xlu0 2
        %365 = vperm.xlu0 %364, %v191
        %v366 = vpop.permute.xlu0 %365
        %v368 = vlaneseq
        %v369 = vshrl.u32 %v368, 7
        %v370 = vsub.s32 2, %v369
        %v371 = vrot.slane %v192, %v370
        %v372 = vlaneseq
        %v373 = vshrl.u32 %v372, 7
        %v374 = vsub.s32 6, %v373
        %v375 = vrot.slane %v192, %v374
        %v376 = vlaneseq
        %v377 = vshrl.u32 %v376, 7
        %v378 = vsub.s32 2, %v377
        %v379 = vrot.slane %v193, %v378
        %v380 = vlaneseq
        %v381 = vshrl.u32 %v380, 7
        %v382 = vsub.s32 6, %v381
        %v383 = vrot.slane %v193, %v382
        %v388 = vlaneseq
        %v389 = vshrl.u32 %v388, 7
        %v390 = vsub.s32 2, %v389
        %v391 = vrot.slane %v371, %v390
        %v392 = vlaneseq
        %v393 = vshrl.u32 %v392, 7
        %v394 = vsub.s32 2, %v393
        %v395 = vrot.slane %v375, %v394
        %v396 = vlaneseq
        %v397 = vshrl.u32 %v396, 7
        %v398 = vsub.s32 2, %v397
        %v399 = vrot.slane %v379, %v398
        %v400 = vlaneseq
        %v401 = vshrl.u32 %v400, 7
        %v402 = vsub.s32 2, %v401
        %v403 = vrot.slane %v383, %v402
        %v404 = vmul.f32 %v354, %v391
        %v405 = vmul.f32 %v354, %v395
        %v406 = vmul.f32 %v354, %v399
        %v407 = vmul.f32 %v354, %v403
        %v408 = vmul.f32 %v358, %v391
        %v409 = vmul.f32 %v358, %v395
        %v410 = vmul.f32 %v358, %v399
        %v411 = vmul.f32 %v358, %v403
        %v412 = vmul.f32 %v362, %v391
        %v413 = vmul.f32 %v362, %v395
        %v414 = vmul.f32 %v362, %v399
        %v415 = vmul.f32 %v362, %v403
        %v416 = vmul.f32 %v366, %v391
        %v417 = vmul.f32 %v366, %v395
        %v418 = vmul.f32 %v366, %v399
        %v419 = vmul.f32 %v366, %v403
        %v420 = vadd.f32 %v336, %v404
        %v421 = vadd.f32 %v337, %v405
        %v422 = vadd.f32 %v338, %v406
        %v423 = vadd.f32 %v339, %v407
        %v424 = vadd.f32 %v340, %v408
        %v425 = vadd.f32 %v341, %v409
        %v426 = vadd.f32 %v342, %v410
        %v427 = vadd.f32 %v343, %v411
        %v428 = vadd.f32 %v344, %v412
        %v429 = vadd.f32 %v345, %v413
        %v430 = vadd.f32 %v346, %v414
        %v431 = vadd.f32 %v347, %v415
        %v432 = vadd.f32 %v348, %v416
        %v433 = vadd.f32 %v349, %v417
        %v434 = vadd.f32 %v350, %v418
        %v435 = vadd.f32 %v351, %v419
        %436 = vset.pattern.permute.xlu0 3
        %437 = vperm.xlu0 %436, %v188
        %v438 = vpop.permute.xlu0 %437
        %440 = vset.pattern.permute.xlu0 3
        %441 = vperm.xlu0 %440, %v189
        %v442 = vpop.permute.xlu0 %441
        %444 = vset.pattern.permute.xlu0 3
        %445 = vperm.xlu0 %444, %v190
        %v446 = vpop.permute.xlu0 %445
        %448 = vset.pattern.permute.xlu0 3
        %449 = vperm.xlu0 %448, %v191
        %v450 = vpop.permute.xlu0 %449
        %v452 = vadd.f32 %v420, %v438
        %v453 = vadd.f32 %v421, %v438
        %v454 = vadd.f32 %v422, %v438
        %v455 = vadd.f32 %v423, %v438
        %v456 = vadd.f32 %v424, %v442
        %v457 = vadd.f32 %v425, %v442
        %v458 = vadd.f32 %v426, %v442
        %v459 = vadd.f32 %v427, %v442
        %v460 = vadd.f32 %v428, %v446
        %v461 = vadd.f32 %v429, %v446
        %v462 = vadd.f32 %v430, %v446
        %v463 = vadd.f32 %v431, %v446
        %v464 = vadd.f32 %v432, %v450
        %v465 = vadd.f32 %v433, %v450
        %v466 = vadd.f32 %v434, %v450
        %v467 = vadd.f32 %v435, %v450
        %v468 = vand.u32 2147483647, %v452
        %vm469 = vcmp.le.f32.partialorder %v468, 0.7853982
        %vm470 = vcmp.lt.s32.totalorder %v452, 0
        %v471 = vand.u32 %v452, 2139095040
        %v472 = vshrl.u32 %v471, 23
        %v473 = vsub.s32 %v472, 127
        %v474 = vand.u32 2147483647, %v452
        %v475 = vand.u32 %v474, 8388607
        %v476 = vor.u32 %v475, 8388608
        %v477 = vsub.s32 0, %v476
        %v478 = vadd.s32 %v473, 1
        %vm479 = vcmp.gt.s32.totalorder %v478, 0
        %v480 = vsel %vm479, %v478, 0
        %v481 = vshrl.u32 %v480, 5
        %v482 = vand.u32 %v480, 31
        %v483 = vsub.s32 32, %v482
        %v484 = vshrl.u32 683565275, %v483
        %v485 = vshll.u32 683565275, %v482
        %v486 = vshrl.u32 2475754826, %v483
        %v487 = vor.u32 %v485, %v486
        %v488 = vshll.u32 2475754826, %v482
        %v489 = vshrl.u32 2131351028, %v483
        %v490 = vor.u32 %v488, %v489
        %v491 = vshll.u32 2131351028, %v482
        %v492 = vshrl.u32 2102212464, %v483
        %v493 = vor.u32 %v491, %v492
        %v494 = vshll.u32 2102212464, %v482
        %v495 = vshrl.u32 920167782, %v483
        %v496 = vor.u32 %v494, %v495
        %v497 = vshll.u32 920167782, %v482
        %v498 = vshrl.u32 1326507024, %v483
        %v499 = vor.u32 %v497, %v498
        %vm500 = vcmp.lt.s32.totalorder %v481, 1
        %vm501 = vcmp.lt.s32.totalorder %v481, 2
        %vm502 = vcmp.lt.s32.totalorder %v481, 3
        %vm503 = vcmp.lt.s32.totalorder %v481, 4
        %v504 = vsel %vm500, %v484, %v487
        %v505 = vsel %vm503, %v493, 2102212464
        %v506 = vsel %vm502, %v490, %v505
        %v507 = vsel %vm501, %v504, %v506
        %v508 = vsel %vm500, %v487, %v490
        %v509 = vsel %vm503, %v496, 920167782
        %v510 = vsel %vm502, %v493, %v509
        %v511 = vsel %vm501, %v508, %v510
        %v512 = vsel %vm500, %v490, %v493
        %v513 = vsel %vm503, %v499, 1326507024
        %v514 = vsel %vm502, %v496, %v513
        %v515 = vsel %vm501, %v512, %v514
        %v516 = vshll.u32 %v476, 8
        %v517 = vmul.u32.u64.compose %v516, %v515
        %v518 = vextract.low.u32 %v517
        %v519 = vextract.high.u32 %v517
        %v520 = vmul.u32.u64.compose %v516, %v511
        %v521 = vextract.low.u32 %v520
        %v522 = vextract.high.u32 %v520
        %v523 = vmul.u32 %v516, %v507
        %v524 = vadd.s32 %v519, %v521
        %vm525 = vc.u32 %v519, %v521
        %v526 = vadd.s32 %v522, 1
        %v527 = vsel %vm525, %v526, %v522
        %v528 = vadd.s32 %v523, %v527
        %v529 = vadd.s32 %v528, 536870912
        %v530 = vshrl.u32 %v529, 30
        %v531 = vshll.u32 %v530, 30
        %v532 = vsub.s32 %v528, %v531
        %vm533 = vcmp.lt.s32.totalorder %v532, 0
        %v534 = vsub.s32 0, %v532
        %v535 = vsel %vm533, %v534, %v532
        %v536 = vclz %v535
        %v537 = vsub.s32 %v536, 2
        %vm538 = vcmp.gt.s32.totalorder 0, %v537
        %v539 = vsel %vm538, 0, %v537
        %v540 = vsub.s32 32, %v539
        %v541 = vshll.u32 %v532, %v539
        %v542 = vshrl.u32 %v524, %v540
        %v543 = vor.u32 %v541, %v542
        %v544 = vsub.s32 4294967266, %v539
        %v545 = vadd.s32 %v544, 127
        %v546 = vshll.u32 %v545, 23
        %v547 = vor.u32 4788187, %v546
        %v548 = vand.u32 2147483647, %v547
        %v550 = vcvt.s32.f32 %v543
        %v551 = vmul.f32 %v550, %v548
        %v552 = vxor.u32 %v551, 2147483648
        %v553 = vsel %vm470, %v552, %v551
        %v554 = vsub.s32 4, %v530
        %v555 = vsel %vm470, %v554, %v530
        %v556 = vsel %vm469, %v452, %v553
        %v557 = vsel %vm469, 0, %v555
        %v558 = vcosq.f32.pop %v556
        %v559 = vsinq.f32.pop %v556
        %vm560 = vweird.f32 %v452
        %v561 = vadd.s32 %v557, 3
        %v562 = vand.u32 %v561, 3
        %vm563 = vcmp.lt.s32.totalorder %v562, 2
        %vm564 = vcmp.eq.s32.totalorder %v562, 0
        %v565 = vxor.u32 %v559, 2147483648
        %v566 = vsel %vm564, %v558, %v565
        %vm567 = vcmp.eq.s32.totalorder %v562, 2
        %v568 = vxor.u32 %v558, 2147483648
        %v569 = vsel %vm567, %v568, %v559
        %v570 = vsel %vm563, %v566, %v569
        %v571 = vsel %vm560, nan, %v570
        %v572 = vand.u32 2147483647, %v453
        %vm573 = vcmp.le.f32.partialorder %v572, 0.7853982
        %vm574 = vcmp.lt.s32.totalorder %v453, 0
        %v575 = vand.u32 %v453, 2139095040
        %v576 = vshrl.u32 %v575, 23
        %v577 = vsub.s32 %v576, 127
        %v578 = vand.u32 2147483647, %v453
        %v579 = vand.u32 %v578, 8388607
        %v580 = vor.u32 %v579, 8388608
        %v581 = vsub.s32 0, %v580
        %v582 = vadd.s32 %v577, 1
        %vm583 = vcmp.gt.s32.totalorder %v582, 0
        %v584 = vsel %vm583, %v582, 0
        %v585 = vshrl.u32 %v584, 5
        %v586 = vand.u32 %v584, 31
        %v587 = vsub.s32 32, %v586
        %v588 = vshrl.u32 683565275, %v587
        %v589 = vshll.u32 683565275, %v586
        %v590 = vshrl.u32 2475754826, %v587
        %v591 = vor.u32 %v589, %v590
        %v592 = vshll.u32 2475754826, %v586
        %v593 = vshrl.u32 2131351028, %v587
        %v594 = vor.u32 %v592, %v593
        %v595 = vshll.u32 2131351028, %v586
        %v596 = vshrl.u32 2102212464, %v587
        %v597 = vor.u32 %v595, %v596
        %v598 = vshll.u32 2102212464, %v586
        %v599 = vshrl.u32 920167782, %v587
        %v600 = vor.u32 %v598, %v599
        %v601 = vshll.u32 920167782, %v586
        %v602 = vshrl.u32 1326507024, %v587
        %v603 = vor.u32 %v601, %v602
        %vm604 = vcmp.lt.s32.totalorder %v585, 1
        %vm605 = vcmp.lt.s32.totalorder %v585, 2
        %vm606 = vcmp.lt.s32.totalorder %v585, 3
        %vm607 = vcmp.lt.s32.totalorder %v585, 4
        %v608 = vsel %vm604, %v588, %v591
        %v609 = vsel %vm607, %v597, 2102212464
        %v610 = vsel %vm606, %v594, %v609
        %v611 = vsel %vm605, %v608, %v610
        %v612 = vsel %vm604, %v591, %v594
        %v613 = vsel %vm607, %v600, 920167782
        %v614 = vsel %vm606, %v597, %v613
        %v615 = vsel %vm605, %v612, %v614
        %v616 = vsel %vm604, %v594, %v597
        %v617 = vsel %vm607, %v603, 1326507024
        %v618 = vsel %vm606, %v600, %v617
        %v619 = vsel %vm605, %v616, %v618
        %v620 = vshll.u32 %v580, 8
        %v621 = vmul.u32.u64.compose %v620, %v619
        %v622 = vextract.low.u32 %v621
        %v623 = vextract.high.u32 %v621
        %v624 = vmul.u32.u64.compose %v620, %v615
        %v625 = vextract.low.u32 %v624
        %v626 = vextract.high.u32 %v624
        %v627 = vmul.u32 %v620, %v611
        %v628 = vadd.s32 %v623, %v625
        %vm629 = vc.u32 %v623, %v625
        %v630 = vadd.s32 %v626, 1
        %v631 = vsel %vm629, %v630, %v626
        %v632 = vadd.s32 %v627, %v631
        %v633 = vadd.s32 %v632, 536870912
        %v634 = vshrl.u32 %v633, 30
        %v635 = vshll.u32 %v634, 30
        %v636 = vsub.s32 %v632, %v635
        %vm637 = vcmp.lt.s32.totalorder %v636, 0
        %v638 = vsub.s32 0, %v636
        %v639 = vsel %vm637, %v638, %v636
        %v640 = vclz %v639
        %v641 = vsub.s32 %v640, 2
        %vm642 = vcmp.gt.s32.totalorder 0, %v641
        %v643 = vsel %vm642, 0, %v641
        %v644 = vsub.s32 32, %v643
        %v645 = vshll.u32 %v636, %v643
        %v646 = vshrl.u32 %v628, %v644
        %v647 = vor.u32 %v645, %v646
        %v648 = vsub.s32 4294967266, %v643
        %v649 = vadd.s32 %v648, 127
        %v650 = vshll.u32 %v649, 23
        %v651 = vor.u32 4788187, %v650
        %v652 = vand.u32 2147483647, %v651
        %v654 = vcvt.s32.f32 %v647
        %v655 = vmul.f32 %v654, %v652
        %v656 = vxor.u32 %v655, 2147483648
        %v657 = vsel %vm574, %v656, %v655
        %v658 = vsub.s32 4, %v634
        %v659 = vsel %vm574, %v658, %v634
        %v660 = vsel %vm573, %v453, %v657
        %v661 = vsel %vm573, 0, %v659
        %v662 = vcosq.f32.pop %v660
        %v663 = vsinq.f32.pop %v660
        %vm664 = vweird.f32 %v453
        %v665 = vadd.s32 %v661, 3
        %v666 = vand.u32 %v665, 3
        %vm667 = vcmp.lt.s32.totalorder %v666, 2
        %vm668 = vcmp.eq.s32.totalorder %v666, 0
        %v669 = vxor.u32 %v663, 2147483648
        %v670 = vsel %vm668, %v662, %v669
        %vm671 = vcmp.eq.s32.totalorder %v666, 2
        %v672 = vxor.u32 %v662, 2147483648
        %v673 = vsel %vm671, %v672, %v663
        %v674 = vsel %vm667, %v670, %v673
        %v675 = vsel %vm664, nan, %v674
        %v676 = vand.u32 2147483647, %v454
        %vm677 = vcmp.le.f32.partialorder %v676, 0.7853982
        %vm678 = vcmp.lt.s32.totalorder %v454, 0
        %v679 = vand.u32 %v454, 2139095040
        %v680 = vshrl.u32 %v679, 23
        %v681 = vsub.s32 %v680, 127
        %v682 = vand.u32 2147483647, %v454
        %v683 = vand.u32 %v682, 8388607
        %v684 = vor.u32 %v683, 8388608
        %v685 = vsub.s32 0, %v684
        %v686 = vadd.s32 %v681, 1
        %vm687 = vcmp.gt.s32.totalorder %v686, 0
        %v688 = vsel %vm687, %v686, 0
        %v689 = vshrl.u32 %v688, 5
        %v690 = vand.u32 %v688, 31
        %v691 = vsub.s32 32, %v690
        %v692 = vshrl.u32 683565275, %v691
        %v693 = vshll.u32 683565275, %v690
        %v694 = vshrl.u32 2475754826, %v691
        %v695 = vor.u32 %v693, %v694
        %v696 = vshll.u32 2475754826, %v690
        %v697 = vshrl.u32 2131351028, %v691
        %v698 = vor.u32 %v696, %v697
        %v699 = vshll.u32 2131351028, %v690
        %v700 = vshrl.u32 2102212464, %v691
        %v701 = vor.u32 %v699, %v700
        %v702 = vshll.u32 2102212464, %v690
        %v703 = vshrl.u32 920167782, %v691
        %v704 = vor.u32 %v702, %v703
        %v705 = vshll.u32 920167782, %v690
        %v706 = vshrl.u32 1326507024, %v691
        %v707 = vor.u32 %v705, %v706
        %vm708 = vcmp.lt.s32.totalorder %v689, 1
        %vm709 = vcmp.lt.s32.totalorder %v689, 2
        %vm710 = vcmp.lt.s32.totalorder %v689, 3
        %vm711 = vcmp.lt.s32.totalorder %v689, 4
        %v712 = vsel %vm708, %v692, %v695
        %v713 = vsel %vm711, %v701, 2102212464
        %v714 = vsel %vm710, %v698, %v713
        %v715 = vsel %vm709, %v712, %v714
        %v716 = vsel %vm708, %v695, %v698
        %v717 = vsel %vm711, %v704, 920167782
        %v718 = vsel %vm710, %v701, %v717
        %v719 = vsel %vm709, %v716, %v718
        %v720 = vsel %vm708, %v698, %v701
        %v721 = vsel %vm711, %v707, 1326507024
        %v722 = vsel %vm710, %v704, %v721
        %v723 = vsel %vm709, %v720, %v722
        %v724 = vshll.u32 %v684, 8
        %v725 = vmul.u32.u64.compose %v724, %v723
        %v726 = vextract.low.u32 %v725
        %v727 = vextract.high.u32 %v725
        %v728 = vmul.u32.u64.compose %v724, %v719
        %v729 = vextract.low.u32 %v728
        %v730 = vextract.high.u32 %v728
        %v731 = vmul.u32 %v724, %v715
        %v732 = vadd.s32 %v727, %v729
        %vm733 = vc.u32 %v727, %v729
        %v734 = vadd.s32 %v730, 1
        %v735 = vsel %vm733, %v734, %v730
        %v736 = vadd.s32 %v731, %v735
        %v737 = vadd.s32 %v736, 536870912
        %v738 = vshrl.u32 %v737, 30
        %v739 = vshll.u32 %v738, 30
        %v740 = vsub.s32 %v736, %v739
        %vm741 = vcmp.lt.s32.totalorder %v740, 0
        %v742 = vsub.s32 0, %v740
        %v743 = vsel %vm741, %v742, %v740
        %v744 = vclz %v743
        %v745 = vsub.s32 %v744, 2
        %vm746 = vcmp.gt.s32.totalorder 0, %v745
        %v747 = vsel %vm746, 0, %v745
        %v748 = vsub.s32 32, %v747
        %v749 = vshll.u32 %v740, %v747
        %v750 = vshrl.u32 %v732, %v748
        %v751 = vor.u32 %v749, %v750
        %v752 = vsub.s32 4294967266, %v747
        %v753 = vadd.s32 %v752, 127
        %v754 = vshll.u32 %v753, 23
        %v755 = vor.u32 4788187, %v754
        %v756 = vand.u32 2147483647, %v755
        %v758 = vcvt.s32.f32 %v751
        %v759 = vmul.f32 %v758, %v756
        %v760 = vxor.u32 %v759, 2147483648
        %v761 = vsel %vm678, %v760, %v759
        %v762 = vsub.s32 4, %v738
        %v763 = vsel %vm678, %v762, %v738
        %v764 = vsel %vm677, %v454, %v761
        %v765 = vsel %vm677, 0, %v763
        %v766 = vcosq.f32.pop %v764
        %v767 = vsinq.f32.pop %v764
        %vm768 = vweird.f32 %v454
        %v769 = vadd.s32 %v765, 3
        %v770 = vand.u32 %v769, 3
        %vm771 = vcmp.lt.s32.totalorder %v770, 2
        %vm772 = vcmp.eq.s32.totalorder %v770, 0
        %v773 = vxor.u32 %v767, 2147483648
        %v774 = vsel %vm772, %v766, %v773
        %vm775 = vcmp.eq.s32.totalorder %v770, 2
        %v776 = vxor.u32 %v766, 2147483648
        %v777 = vsel %vm775, %v776, %v767
        %v778 = vsel %vm771, %v774, %v777
        %v779 = vsel %vm768, nan, %v778
        %v780 = vand.u32 2147483647, %v455
        %vm781 = vcmp.le.f32.partialorder %v780, 0.7853982
        %vm782 = vcmp.lt.s32.totalorder %v455, 0
        %v783 = vand.u32 %v455, 2139095040
        %v784 = vshrl.u32 %v783, 23
        %v785 = vsub.s32 %v784, 127
        %v786 = vand.u32 2147483647, %v455
        %v787 = vand.u32 %v786, 8388607
        %v788 = vor.u32 %v787, 8388608
        %v789 = vsub.s32 0, %v788
        %v790 = vadd.s32 %v785, 1
        %vm791 = vcmp.gt.s32.totalorder %v790, 0
        %v792 = vsel %vm791, %v790, 0
        %v793 = vshrl.u32 %v792, 5
        %v794 = vand.u32 %v792, 31
        %v795 = vsub.s32 32, %v794
        %v796 = vshrl.u32 683565275, %v795
        %v797 = vshll.u32 683565275, %v794
        %v798 = vshrl.u32 2475754826, %v795
        %v799 = vor.u32 %v797, %v798
        %v800 = vshll.u32 2475754826, %v794
        %v801 = vshrl.u32 2131351028, %v795
        %v802 = vor.u32 %v800, %v801
        %v803 = vshll.u32 2131351028, %v794
        %v804 = vshrl.u32 2102212464, %v795
        %v805 = vor.u32 %v803, %v804
        %v806 = vshll.u32 2102212464, %v794
        %v807 = vshrl.u32 920167782, %v795
        %v808 = vor.u32 %v806, %v807
        %v809 = vshll.u32 920167782, %v794
        %v810 = vshrl.u32 1326507024, %v795
        %v811 = vor.u32 %v809, %v810
        %vm812 = vcmp.lt.s32.totalorder %v793, 1
        %vm813 = vcmp.lt.s32.totalorder %v793, 2
        %vm814 = vcmp.lt.s32.totalorder %v793, 3
        %vm815 = vcmp.lt.s32.totalorder %v793, 4
        %v816 = vsel %vm812, %v796, %v799
        %v817 = vsel %vm815, %v805, 2102212464
        %v818 = vsel %vm814, %v802, %v817
        %v819 = vsel %vm813, %v816, %v818
        %v820 = vsel %vm812, %v799, %v802
        %v821 = vsel %vm815, %v808, 920167782
        %v822 = vsel %vm814, %v805, %v821
        %v823 = vsel %vm813, %v820, %v822
        %v824 = vsel %vm812, %v802, %v805
        %v825 = vsel %vm815, %v811, 1326507024
        %v826 = vsel %vm814, %v808, %v825
        %v827 = vsel %vm813, %v824, %v826
        %v828 = vshll.u32 %v788, 8
        %v829 = vmul.u32.u64.compose %v828, %v827
        %v830 = vextract.low.u32 %v829
        %v831 = vextract.high.u32 %v829
        %v832 = vmul.u32.u64.compose %v828, %v823
        %v833 = vextract.low.u32 %v832
        %v834 = vextract.high.u32 %v832
        %v835 = vmul.u32 %v828, %v819
        %v836 = vadd.s32 %v831, %v833
        %vm837 = vc.u32 %v831, %v833
        %v838 = vadd.s32 %v834, 1
        %v839 = vsel %vm837, %v838, %v834
        %v840 = vadd.s32 %v835, %v839
        %v841 = vadd.s32 %v840, 536870912
        %v842 = vshrl.u32 %v841, 30
        %v843 = vshll.u32 %v842, 30
        %v844 = vsub.s32 %v840, %v843
        %vm845 = vcmp.lt.s32.totalorder %v844, 0
        %v846 = vsub.s32 0, %v844
        %v847 = vsel %vm845, %v846, %v844
        %v848 = vclz %v847
        %v849 = vsub.s32 %v848, 2
        %vm850 = vcmp.gt.s32.totalorder 0, %v849
        %v851 = vsel %vm850, 0, %v849
        %v852 = vsub.s32 32, %v851
        %v853 = vshll.u32 %v844, %v851
        %v854 = vshrl.u32 %v836, %v852
        %v855 = vor.u32 %v853, %v854
        %v856 = vsub.s32 4294967266, %v851
        %v857 = vadd.s32 %v856, 127
        %v858 = vshll.u32 %v857, 23
        %v859 = vor.u32 4788187, %v858
        %v860 = vand.u32 2147483647, %v859
        %v862 = vcvt.s32.f32 %v855
        %v863 = vmul.f32 %v862, %v860
        %v864 = vxor.u32 %v863, 2147483648
        %v865 = vsel %vm782, %v864, %v863
        %v866 = vsub.s32 4, %v842
        %v867 = vsel %vm782, %v866, %v842
        %v868 = vsel %vm781, %v455, %v865
        %v869 = vsel %vm781, 0, %v867
        %v870 = vcosq.f32.pop %v868
        %v871 = vsinq.f32.pop %v868
        %vm872 = vweird.f32 %v455
        %v873 = vadd.s32 %v869, 3
        %v874 = vand.u32 %v873, 3
        %vm875 = vcmp.lt.s32.totalorder %v874, 2
        %vm876 = vcmp.eq.s32.totalorder %v874, 0
        %v877 = vxor.u32 %v871, 2147483648
        %v878 = vsel %vm876, %v870, %v877
        %vm879 = vcmp.eq.s32.totalorder %v874, 2
        %v880 = vxor.u32 %v870, 2147483648
        %v881 = vsel %vm879, %v880, %v871
        %v882 = vsel %vm875, %v878, %v881
        %v883 = vsel %vm872, nan, %v882
        %v884 = vand.u32 2147483647, %v456
        %vm885 = vcmp.le.f32.partialorder %v884, 0.7853982
        %vm886 = vcmp.lt.s32.totalorder %v456, 0
        %v887 = vand.u32 %v456, 2139095040
        %v888 = vshrl.u32 %v887, 23
        %v889 = vsub.s32 %v888, 127
        %v890 = vand.u32 2147483647, %v456
        %v891 = vand.u32 %v890, 8388607
        %v892 = vor.u32 %v891, 8388608
        %v893 = vsub.s32 0, %v892
        %v894 = vadd.s32 %v889, 1
        %vm895 = vcmp.gt.s32.totalorder %v894, 0
        %v896 = vsel %vm895, %v894, 0
        %v897 = vshrl.u32 %v896, 5
        %v898 = vand.u32 %v896, 31
        %v899 = vsub.s32 32, %v898
        %v900 = vshrl.u32 683565275, %v899
        %v901 = vshll.u32 683565275, %v898
        %v902 = vshrl.u32 2475754826, %v899
        %v903 = vor.u32 %v901, %v902
        %v904 = vshll.u32 2475754826, %v898
        %v905 = vshrl.u32 2131351028, %v899
        %v906 = vor.u32 %v904, %v905
        %v907 = vshll.u32 2131351028, %v898
        %v908 = vshrl.u32 2102212464, %v899
        %v909 = vor.u32 %v907, %v908
        %v910 = vshll.u32 2102212464, %v898
        %v911 = vshrl.u32 920167782, %v899
        %v912 = vor.u32 %v910, %v911
        %v913 = vshll.u32 920167782, %v898
        %v914 = vshrl.u32 1326507024, %v899
        %v915 = vor.u32 %v913, %v914
        %vm916 = vcmp.lt.s32.totalorder %v897, 1
        %vm917 = vcmp.lt.s32.totalorder %v897, 2
        %vm918 = vcmp.lt.s32.totalorder %v897, 3
        %vm919 = vcmp.lt.s32.totalorder %v897, 4
        %v920 = vsel %vm916, %v900, %v903
        %v921 = vsel %vm919, %v909, 2102212464
        %v922 = vsel %vm918, %v906, %v921
        %v923 = vsel %vm917, %v920, %v922
        %v924 = vsel %vm916, %v903, %v906
        %v925 = vsel %vm919, %v912, 920167782
        %v926 = vsel %vm918, %v909, %v925
        %v927 = vsel %vm917, %v924, %v926
        %v928 = vsel %vm916, %v906, %v909
        %v929 = vsel %vm919, %v915, 1326507024
        %v930 = vsel %vm918, %v912, %v929
        %v931 = vsel %vm917, %v928, %v930
        %v932 = vshll.u32 %v892, 8
        %v933 = vmul.u32.u64.compose %v932, %v931
        %v934 = vextract.low.u32 %v933
        %v935 = vextract.high.u32 %v933
        %v936 = vmul.u32.u64.compose %v932, %v927
        %v937 = vextract.low.u32 %v936
        %v938 = vextract.high.u32 %v936
        %v939 = vmul.u32 %v932, %v923
        %v940 = vadd.s32 %v935, %v937
        %vm941 = vc.u32 %v935, %v937
        %v942 = vadd.s32 %v938, 1
        %v943 = vsel %vm941, %v942, %v938
        %v944 = vadd.s32 %v939, %v943
        %v945 = vadd.s32 %v944, 536870912
        %v946 = vshrl.u32 %v945, 30
        %v947 = vshll.u32 %v946, 30
        %v948 = vsub.s32 %v944, %v947
        %vm949 = vcmp.lt.s32.totalorder %v948, 0
        %v950 = vsub.s32 0, %v948
        %v951 = vsel %vm949, %v950, %v948
        %v952 = vclz %v951
        %v953 = vsub.s32 %v952, 2
        %vm954 = vcmp.gt.s32.totalorder 0, %v953
        %v955 = vsel %vm954, 0, %v953
        %v956 = vsub.s32 32, %v955
        %v957 = vshll.u32 %v948, %v955
        %v958 = vshrl.u32 %v940, %v956
        %v959 = vor.u32 %v957, %v958
        %v960 = vsub.s32 4294967266, %v955
        %v961 = vadd.s32 %v960, 127
        %v962 = vshll.u32 %v961, 23
        %v963 = vor.u32 4788187, %v962
        %v964 = vand.u32 2147483647, %v963
        %v966 = vcvt.s32.f32 %v959
        %v967 = vmul.f32 %v966, %v964
        %v968 = vxor.u32 %v967, 2147483648
        %v969 = vsel %vm886, %v968, %v967
        %v970 = vsub.s32 4, %v946
        %v971 = vsel %vm886, %v970, %v946
        %v972 = vsel %vm885, %v456, %v969
        %v973 = vsel %vm885, 0, %v971
        %v974 = vcosq.f32.pop %v972
        %v975 = vsinq.f32.pop %v972
        %vm976 = vweird.f32 %v456
        %v977 = vadd.s32 %v973, 3
        %v978 = vand.u32 %v977, 3
        %vm979 = vcmp.lt.s32.totalorder %v978, 2
        %vm980 = vcmp.eq.s32.totalorder %v978, 0
        %v981 = vxor.u32 %v975, 2147483648
        %v982 = vsel %vm980, %v974, %v981
        %vm983 = vcmp.eq.s32.totalorder %v978, 2
        %v984 = vxor.u32 %v974, 2147483648
        %v985 = vsel %vm983, %v984, %v975
        %v986 = vsel %vm979, %v982, %v985
        %v987 = vsel %vm976, nan, %v986
        %v988 = vand.u32 2147483647, %v457
        %vm989 = vcmp.le.f32.partialorder %v988, 0.7853982
        %vm990 = vcmp.lt.s32.totalorder %v457, 0
        %v991 = vand.u32 %v457, 2139095040
        %v992 = vshrl.u32 %v991, 23
        %v993 = vsub.s32 %v992, 127
        %v994 = vand.u32 2147483647, %v457
        %v995 = vand.u32 %v994, 8388607
        %v996 = vor.u32 %v995, 8388608
        %v997 = vsub.s32 0, %v996
        %v998 = vadd.s32 %v993, 1
        %vm999 = vcmp.gt.s32.totalorder %v998, 0
        %v1000 = vsel %vm999, %v998, 0
        %v1001 = vshrl.u32 %v1000, 5
        %v1002 = vand.u32 %v1000, 31
        %v1003 = vsub.s32 32, %v1002
        %v1004 = vshrl.u32 683565275, %v1003
        %v1005 = vshll.u32 683565275, %v1002
        %v1006 = vshrl.u32 2475754826, %v1003
        %v1007 = vor.u32 %v1005, %v1006
        %v1008 = vshll.u32 2475754826, %v1002
        %v1009 = vshrl.u32 2131351028, %v1003
        %v1010 = vor.u32 %v1008, %v1009
        %v1011 = vshll.u32 2131351028, %v1002
        %v1012 = vshrl.u32 2102212464, %v1003
        %v1013 = vor.u32 %v1011, %v1012
        %v1014 = vshll.u32 2102212464, %v1002
        %v1015 = vshrl.u32 920167782, %v1003
        %v1016 = vor.u32 %v1014, %v1015
        %v1017 = vshll.u32 920167782, %v1002
        %v1018 = vshrl.u32 1326507024, %v1003
        %v1019 = vor.u32 %v1017, %v1018
        %vm1020 = vcmp.lt.s32.totalorder %v1001, 1
        %vm1021 = vcmp.lt.s32.totalorder %v1001, 2
        %vm1022 = vcmp.lt.s32.totalorder %v1001, 3
        %vm1023 = vcmp.lt.s32.totalorder %v1001, 4
        %v1024 = vsel %vm1020, %v1004, %v1007
        %v1025 = vsel %vm1023, %v1013, 2102212464
        %v1026 = vsel %vm1022, %v1010, %v1025
        %v1027 = vsel %vm1021, %v1024, %v1026
        %v1028 = vsel %vm1020, %v1007, %v1010
        %v1029 = vsel %vm1023, %v1016, 920167782
        %v1030 = vsel %vm1022, %v1013, %v1029
        %v1031 = vsel %vm1021, %v1028, %v1030
        %v1032 = vsel %vm1020, %v1010, %v1013
        %v1033 = vsel %vm1023, %v1019, 1326507024
        %v1034 = vsel %vm1022, %v1016, %v1033
        %v1035 = vsel %vm1021, %v1032, %v1034
        %v1036 = vshll.u32 %v996, 8
        %v1037 = vmul.u32.u64.compose %v1036, %v1035
        %v1038 = vextract.low.u32 %v1037
        %v1039 = vextract.high.u32 %v1037
        %v1040 = vmul.u32.u64.compose %v1036, %v1031
        %v1041 = vextract.low.u32 %v1040
        %v1042 = vextract.high.u32 %v1040
        %v1043 = vmul.u32 %v1036, %v1027
        %v1044 = vadd.s32 %v1039, %v1041
        %vm1045 = vc.u32 %v1039, %v1041
        %v1046 = vadd.s32 %v1042, 1
        %v1047 = vsel %vm1045, %v1046, %v1042
        %v1048 = vadd.s32 %v1043, %v1047
        %v1049 = vadd.s32 %v1048, 536870912
        %v1050 = vshrl.u32 %v1049, 30
        %v1051 = vshll.u32 %v1050, 30
        %v1052 = vsub.s32 %v1048, %v1051
        %vm1053 = vcmp.lt.s32.totalorder %v1052, 0
        %v1054 = vsub.s32 0, %v1052
        %v1055 = vsel %vm1053, %v1054, %v1052
        %v1056 = vclz %v1055
        %v1057 = vsub.s32 %v1056, 2
        %vm1058 = vcmp.gt.s32.totalorder 0, %v1057
        %v1059 = vsel %vm1058, 0, %v1057
        %v1060 = vsub.s32 32, %v1059
        %v1061 = vshll.u32 %v1052, %v1059
        %v1062 = vshrl.u32 %v1044, %v1060
        %v1063 = vor.u32 %v1061, %v1062
        %v1064 = vsub.s32 4294967266, %v1059
        %v1065 = vadd.s32 %v1064, 127
        %v1066 = vshll.u32 %v1065, 23
        %v1067 = vor.u32 4788187, %v1066
        %v1068 = vand.u32 2147483647, %v1067
        %v1070 = vcvt.s32.f32 %v1063
        %v1071 = vmul.f32 %v1070, %v1068
        %v1072 = vxor.u32 %v1071, 2147483648
        %v1073 = vsel %vm990, %v1072, %v1071
        %v1074 = vsub.s32 4, %v1050
        %v1075 = vsel %vm990, %v1074, %v1050
        %v1076 = vsel %vm989, %v457, %v1073
        %v1077 = vsel %vm989, 0, %v1075
        %v1078 = vcosq.f32.pop %v1076
        %v1079 = vsinq.f32.pop %v1076
        %vm1080 = vweird.f32 %v457
        %v1081 = vadd.s32 %v1077, 3
        %v1082 = vand.u32 %v1081, 3
        %vm1083 = vcmp.lt.s32.totalorder %v1082, 2
        %vm1084 = vcmp.eq.s32.totalorder %v1082, 0
        %v1085 = vxor.u32 %v1079, 2147483648
        %v1086 = vsel %vm1084, %v1078, %v1085
        %vm1087 = vcmp.eq.s32.totalorder %v1082, 2
        %v1088 = vxor.u32 %v1078, 2147483648
        %v1089 = vsel %vm1087, %v1088, %v1079
        %v1090 = vsel %vm1083, %v1086, %v1089
        %v1091 = vsel %vm1080, nan, %v1090
        %v1092 = vand.u32 2147483647, %v458
        %vm1093 = vcmp.le.f32.partialorder %v1092, 0.7853982
        %vm1094 = vcmp.lt.s32.totalorder %v458, 0
        %v1095 = vand.u32 %v458, 2139095040
        %v1096 = vshrl.u32 %v1095, 23
        %v1097 = vsub.s32 %v1096, 127
        %v1098 = vand.u32 2147483647, %v458
        %v1099 = vand.u32 %v1098, 8388607
        %v1100 = vor.u32 %v1099, 8388608
        %v1101 = vsub.s32 0, %v1100
        %v1102 = vadd.s32 %v1097, 1
        %vm1103 = vcmp.gt.s32.totalorder %v1102, 0
        %v1104 = vsel %vm1103, %v1102, 0
        %v1105 = vshrl.u32 %v1104, 5
        %v1106 = vand.u32 %v1104, 31
        %v1107 = vsub.s32 32, %v1106
        %v1108 = vshrl.u32 683565275, %v1107
        %v1109 = vshll.u32 683565275, %v1106
        %v1110 = vshrl.u32 2475754826, %v1107
        %v1111 = vor.u32 %v1109, %v1110
        %v1112 = vshll.u32 2475754826, %v1106
        %v1113 = vshrl.u32 2131351028, %v1107
        %v1114 = vor.u32 %v1112, %v1113
        %v1115 = vshll.u32 2131351028, %v1106
        %v1116 = vshrl.u32 2102212464, %v1107
        %v1117 = vor.u32 %v1115, %v1116
        %v1118 = vshll.u32 2102212464, %v1106
        %v1119 = vshrl.u32 920167782, %v1107
        %v1120 = vor.u32 %v1118, %v1119
        %v1121 = vshll.u32 920167782, %v1106
        %v1122 = vshrl.u32 1326507024, %v1107
        %v1123 = vor.u32 %v1121, %v1122
        %vm1124 = vcmp.lt.s32.totalorder %v1105, 1
        %vm1125 = vcmp.lt.s32.totalorder %v1105, 2
        %vm1126 = vcmp.lt.s32.totalorder %v1105, 3
        %vm1127 = vcmp.lt.s32.totalorder %v1105, 4
        %v1128 = vsel %vm1124, %v1108, %v1111
        %v1129 = vsel %vm1127, %v1117, 2102212464
        %v1130 = vsel %vm1126, %v1114, %v1129
        %v1131 = vsel %vm1125, %v1128, %v1130
        %v1132 = vsel %vm1124, %v1111, %v1114
        %v1133 = vsel %vm1127, %v1120, 920167782
        %v1134 = vsel %vm1126, %v1117, %v1133
        %v1135 = vsel %vm1125, %v1132, %v1134
        %v1136 = vsel %vm1124, %v1114, %v1117
        %v1137 = vsel %vm1127, %v1123, 1326507024
        %v1138 = vsel %vm1126, %v1120, %v1137
        %v1139 = vsel %vm1125, %v1136, %v1138
        %v1140 = vshll.u32 %v1100, 8
        %v1141 = vmul.u32.u64.compose %v1140, %v1139
        %v1142 = vextract.low.u32 %v1141
        %v1143 = vextract.high.u32 %v1141
        %v1144 = vmul.u32.u64.compose %v1140, %v1135
        %v1145 = vextract.low.u32 %v1144
        %v1146 = vextract.high.u32 %v1144
        %v1147 = vmul.u32 %v1140, %v1131
        %v1148 = vadd.s32 %v1143, %v1145
        %vm1149 = vc.u32 %v1143, %v1145
        %v1150 = vadd.s32 %v1146, 1
        %v1151 = vsel %vm1149, %v1150, %v1146
        %v1152 = vadd.s32 %v1147, %v1151
        %v1153 = vadd.s32 %v1152, 536870912
        %v1154 = vshrl.u32 %v1153, 30
        %v1155 = vshll.u32 %v1154, 30
        %v1156 = vsub.s32 %v1152, %v1155
        %vm1157 = vcmp.lt.s32.totalorder %v1156, 0
        %v1158 = vsub.s32 0, %v1156
        %v1159 = vsel %vm1157, %v1158, %v1156
        %v1160 = vclz %v1159
        %v1161 = vsub.s32 %v1160, 2
        %vm1162 = vcmp.gt.s32.totalorder 0, %v1161
        %v1163 = vsel %vm1162, 0, %v1161
        %v1164 = vsub.s32 32, %v1163
        %v1165 = vshll.u32 %v1156, %v1163
        %v1166 = vshrl.u32 %v1148, %v1164
        %v1167 = vor.u32 %v1165, %v1166
        %v1168 = vsub.s32 4294967266, %v1163
        %v1169 = vadd.s32 %v1168, 127
        %v1170 = vshll.u32 %v1169, 23
        %v1171 = vor.u32 4788187, %v1170
        %v1172 = vand.u32 2147483647, %v1171
        %v1174 = vcvt.s32.f32 %v1167
        %v1175 = vmul.f32 %v1174, %v1172
        %v1176 = vxor.u32 %v1175, 2147483648
        %v1177 = vsel %vm1094, %v1176, %v1175
        %v1178 = vsub.s32 4, %v1154
        %v1179 = vsel %vm1094, %v1178, %v1154
        %v1180 = vsel %vm1093, %v458, %v1177
        %v1181 = vsel %vm1093, 0, %v1179
        %v1182 = vcosq.f32.pop %v1180
        %v1183 = vsinq.f32.pop %v1180
        %vm1184 = vweird.f32 %v458
        %v1185 = vadd.s32 %v1181, 3
        %v1186 = vand.u32 %v1185, 3
        %vm1187 = vcmp.lt.s32.totalorder %v1186, 2
        %vm1188 = vcmp.eq.s32.totalorder %v1186, 0
        %v1189 = vxor.u32 %v1183, 2147483648
        %v1190 = vsel %vm1188, %v1182, %v1189
        %vm1191 = vcmp.eq.s32.totalorder %v1186, 2
        %v1192 = vxor.u32 %v1182, 2147483648
        %v1193 = vsel %vm1191, %v1192, %v1183
        %v1194 = vsel %vm1187, %v1190, %v1193
        %v1195 = vsel %vm1184, nan, %v1194
        %v1196 = vand.u32 2147483647, %v459
        %vm1197 = vcmp.le.f32.partialorder %v1196, 0.7853982
        %vm1198 = vcmp.lt.s32.totalorder %v459, 0
        %v1199 = vand.u32 %v459, 2139095040
        %v1200 = vshrl.u32 %v1199, 23
        %v1201 = vsub.s32 %v1200, 127
        %v1202 = vand.u32 2147483647, %v459
        %v1203 = vand.u32 %v1202, 8388607
        %v1204 = vor.u32 %v1203, 8388608
        %v1205 = vsub.s32 0, %v1204
        %v1206 = vadd.s32 %v1201, 1
        %vm1207 = vcmp.gt.s32.totalorder %v1206, 0
        %v1208 = vsel %vm1207, %v1206, 0
        %v1209 = vshrl.u32 %v1208, 5
        %v1210 = vand.u32 %v1208, 31
        %v1211 = vsub.s32 32, %v1210
        %v1212 = vshrl.u32 683565275, %v1211
        %v1213 = vshll.u32 683565275, %v1210
        %v1214 = vshrl.u32 2475754826, %v1211
        %v1215 = vor.u32 %v1213, %v1214
        %v1216 = vshll.u32 2475754826, %v1210
        %v1217 = vshrl.u32 2131351028, %v1211
        %v1218 = vor.u32 %v1216, %v1217
        %v1219 = vshll.u32 2131351028, %v1210
        %v1220 = vshrl.u32 2102212464, %v1211
        %v1221 = vor.u32 %v1219, %v1220
        %v1222 = vshll.u32 2102212464, %v1210
        %v1223 = vshrl.u32 920167782, %v1211
        %v1224 = vor.u32 %v1222, %v1223
        %v1225 = vshll.u32 920167782, %v1210
        %v1226 = vshrl.u32 1326507024, %v1211
        %v1227 = vor.u32 %v1225, %v1226
        %vm1228 = vcmp.lt.s32.totalorder %v1209, 1
        %vm1229 = vcmp.lt.s32.totalorder %v1209, 2
        %vm1230 = vcmp.lt.s32.totalorder %v1209, 3
        %vm1231 = vcmp.lt.s32.totalorder %v1209, 4
        %v1232 = vsel %vm1228, %v1212, %v1215
        %v1233 = vsel %vm1231, %v1221, 2102212464
        %v1234 = vsel %vm1230, %v1218, %v1233
        %v1235 = vsel %vm1229, %v1232, %v1234
        %v1236 = vsel %vm1228, %v1215, %v1218
        %v1237 = vsel %vm1231, %v1224, 920167782
        %v1238 = vsel %vm1230, %v1221, %v1237
        %v1239 = vsel %vm1229, %v1236, %v1238
        %v1240 = vsel %vm1228, %v1218, %v1221
        %v1241 = vsel %vm1231, %v1227, 1326507024
        %v1242 = vsel %vm1230, %v1224, %v1241
        %v1243 = vsel %vm1229, %v1240, %v1242
        %v1244 = vshll.u32 %v1204, 8
        %v1245 = vmul.u32.u64.compose %v1244, %v1243
        %v1246 = vextract.low.u32 %v1245
        %v1247 = vextract.high.u32 %v1245
        %v1248 = vmul.u32.u64.compose %v1244, %v1239
        %v1249 = vextract.low.u32 %v1248
        %v1250 = vextract.high.u32 %v1248
        %v1251 = vmul.u32 %v1244, %v1235
        %v1252 = vadd.s32 %v1247, %v1249
        %vm1253 = vc.u32 %v1247, %v1249
        %v1254 = vadd.s32 %v1250, 1
        %v1255 = vsel %vm1253, %v1254, %v1250
        %v1256 = vadd.s32 %v1251, %v1255
        %v1257 = vadd.s32 %v1256, 536870912
        %v1258 = vshrl.u32 %v1257, 30
        %v1259 = vshll.u32 %v1258, 30
        %v1260 = vsub.s32 %v1256, %v1259
        %vm1261 = vcmp.lt.s32.totalorder %v1260, 0
        %v1262 = vsub.s32 0, %v1260
        %v1263 = vsel %vm1261, %v1262, %v1260
        %v1264 = vclz %v1263
        %v1265 = vsub.s32 %v1264, 2
        %vm1266 = vcmp.gt.s32.totalorder 0, %v1265
        %v1267 = vsel %vm1266, 0, %v1265
        %v1268 = vsub.s32 32, %v1267
        %v1269 = vshll.u32 %v1260, %v1267
        %v1270 = vshrl.u32 %v1252, %v1268
        %v1271 = vor.u32 %v1269, %v1270
        %v1272 = vsub.s32 4294967266, %v1267
        %v1273 = vadd.s32 %v1272, 127
        %v1274 = vshll.u32 %v1273, 23
        %v1275 = vor.u32 4788187, %v1274
        %v1276 = vand.u32 2147483647, %v1275
        %v1278 = vcvt.s32.f32 %v1271
        %v1279 = vmul.f32 %v1278, %v1276
        %v1280 = vxor.u32 %v1279, 2147483648
        %v1281 = vsel %vm1198, %v1280, %v1279
        %v1282 = vsub.s32 4, %v1258
        %v1283 = vsel %vm1198, %v1282, %v1258
        %v1284 = vsel %vm1197, %v459, %v1281
        %v1285 = vsel %vm1197, 0, %v1283
        %v1286 = vcosq.f32.pop %v1284
        %v1287 = vsinq.f32.pop %v1284
        %vm1288 = vweird.f32 %v459
        %v1289 = vadd.s32 %v1285, 3
        %v1290 = vand.u32 %v1289, 3
        %vm1291 = vcmp.lt.s32.totalorder %v1290, 2
        %vm1292 = vcmp.eq.s32.totalorder %v1290, 0
        %v1293 = vxor.u32 %v1287, 2147483648
        %v1294 = vsel %vm1292, %v1286, %v1293
        %vm1295 = vcmp.eq.s32.totalorder %v1290, 2
        %v1296 = vxor.u32 %v1286, 2147483648
        %v1297 = vsel %vm1295, %v1296, %v1287
        %v1298 = vsel %vm1291, %v1294, %v1297
        %v1299 = vsel %vm1288, nan, %v1298
        %v1300 = vand.u32 2147483647, %v460
        %vm1301 = vcmp.le.f32.partialorder %v1300, 0.7853982
        %vm1302 = vcmp.lt.s32.totalorder %v460, 0
        %v1303 = vand.u32 %v460, 2139095040
        %v1304 = vshrl.u32 %v1303, 23
        %v1305 = vsub.s32 %v1304, 127
        %v1306 = vand.u32 2147483647, %v460
        %v1307 = vand.u32 %v1306, 8388607
        %v1308 = vor.u32 %v1307, 8388608
        %v1309 = vsub.s32 0, %v1308
        %v1310 = vadd.s32 %v1305, 1
        %vm1311 = vcmp.gt.s32.totalorder %v1310, 0
        %v1312 = vsel %vm1311, %v1310, 0
        %v1313 = vshrl.u32 %v1312, 5
        %v1314 = vand.u32 %v1312, 31
        %v1315 = vsub.s32 32, %v1314
        %v1316 = vshrl.u32 683565275, %v1315
        %v1317 = vshll.u32 683565275, %v1314
        %v1318 = vshrl.u32 2475754826, %v1315
        %v1319 = vor.u32 %v1317, %v1318
        %v1320 = vshll.u32 2475754826, %v1314
        %v1321 = vshrl.u32 2131351028, %v1315
        %v1322 = vor.u32 %v1320, %v1321
        %v1323 = vshll.u32 2131351028, %v1314
        %v1324 = vshrl.u32 2102212464, %v1315
        %v1325 = vor.u32 %v1323, %v1324
        %v1326 = vshll.u32 2102212464, %v1314
        %v1327 = vshrl.u32 920167782, %v1315
        %v1328 = vor.u32 %v1326, %v1327
        %v1329 = vshll.u32 920167782, %v1314
        %v1330 = vshrl.u32 1326507024, %v1315
        %v1331 = vor.u32 %v1329, %v1330
        %vm1332 = vcmp.lt.s32.totalorder %v1313, 1
        %vm1333 = vcmp.lt.s32.totalorder %v1313, 2
        %vm1334 = vcmp.lt.s32.totalorder %v1313, 3
        %vm1335 = vcmp.lt.s32.totalorder %v1313, 4
        %v1336 = vsel %vm1332, %v1316, %v1319
        %v1337 = vsel %vm1335, %v1325, 2102212464
        %v1338 = vsel %vm1334, %v1322, %v1337
        %v1339 = vsel %vm1333, %v1336, %v1338
        %v1340 = vsel %vm1332, %v1319, %v1322
        %v1341 = vsel %vm1335, %v1328, 920167782
        %v1342 = vsel %vm1334, %v1325, %v1341
        %v1343 = vsel %vm1333, %v1340, %v1342
        %v1344 = vsel %vm1332, %v1322, %v1325
        %v1345 = vsel %vm1335, %v1331, 1326507024
        %v1346 = vsel %vm1334, %v1328, %v1345
        %v1347 = vsel %vm1333, %v1344, %v1346
        %v1348 = vshll.u32 %v1308, 8
        %v1349 = vmul.u32.u64.compose %v1348, %v1347
        %v1350 = vextract.low.u32 %v1349
        %v1351 = vextract.high.u32 %v1349
        %v1352 = vmul.u32.u64.compose %v1348, %v1343
        %v1353 = vextract.low.u32 %v1352
        %v1354 = vextract.high.u32 %v1352
        %v1355 = vmul.u32 %v1348, %v1339
        %v1356 = vadd.s32 %v1351, %v1353
        %vm1357 = vc.u32 %v1351, %v1353
        %v1358 = vadd.s32 %v1354, 1
        %v1359 = vsel %vm1357, %v1358, %v1354
        %v1360 = vadd.s32 %v1355, %v1359
        %v1361 = vadd.s32 %v1360, 536870912
        %v1362 = vshrl.u32 %v1361, 30
        %v1363 = vshll.u32 %v1362, 30
        %v1364 = vsub.s32 %v1360, %v1363
        %vm1365 = vcmp.lt.s32.totalorder %v1364, 0
        %v1366 = vsub.s32 0, %v1364
        %v1367 = vsel %vm1365, %v1366, %v1364
        %v1368 = vclz %v1367
        %v1369 = vsub.s32 %v1368, 2
        %vm1370 = vcmp.gt.s32.totalorder 0, %v1369
        %v1371 = vsel %vm1370, 0, %v1369
        %v1372 = vsub.s32 32, %v1371
        %v1373 = vshll.u32 %v1364, %v1371
        %v1374 = vshrl.u32 %v1356, %v1372
        %v1375 = vor.u32 %v1373, %v1374
        %v1376 = vsub.s32 4294967266, %v1371
        %v1377 = vadd.s32 %v1376, 127
        %v1378 = vshll.u32 %v1377, 23
        %v1379 = vor.u32 4788187, %v1378
        %v1380 = vand.u32 2147483647, %v1379
        %v1382 = vcvt.s32.f32 %v1375
        %v1383 = vmul.f32 %v1382, %v1380
        %v1384 = vxor.u32 %v1383, 2147483648
        %v1385 = vsel %vm1302, %v1384, %v1383
        %v1386 = vsub.s32 4, %v1362
        %v1387 = vsel %vm1302, %v1386, %v1362
        %v1388 = vsel %vm1301, %v460, %v1385
        %v1389 = vsel %vm1301, 0, %v1387
        %v1390 = vcosq.f32.pop %v1388
        %v1391 = vsinq.f32.pop %v1388
        %vm1392 = vweird.f32 %v460
        %v1393 = vadd.s32 %v1389, 3
        %v1394 = vand.u32 %v1393, 3
        %vm1395 = vcmp.lt.s32.totalorder %v1394, 2
        %vm1396 = vcmp.eq.s32.totalorder %v1394, 0
        %v1397 = vxor.u32 %v1391, 2147483648
        %v1398 = vsel %vm1396, %v1390, %v1397
        %vm1399 = vcmp.eq.s32.totalorder %v1394, 2
        %v1400 = vxor.u32 %v1390, 2147483648
        %v1401 = vsel %vm1399, %v1400, %v1391
        %v1402 = vsel %vm1395, %v1398, %v1401
        %v1403 = vsel %vm1392, nan, %v1402
        %v1404 = vand.u32 2147483647, %v461
        %vm1405 = vcmp.le.f32.partialorder %v1404, 0.7853982
        %vm1406 = vcmp.lt.s32.totalorder %v461, 0
        %v1407 = vand.u32 %v461, 2139095040
        %v1408 = vshrl.u32 %v1407, 23
        %v1409 = vsub.s32 %v1408, 127
        %v1410 = vand.u32 2147483647, %v461
        %v1411 = vand.u32 %v1410, 8388607
        %v1412 = vor.u32 %v1411, 8388608
        %v1413 = vsub.s32 0, %v1412
        %v1414 = vadd.s32 %v1409, 1
        %vm1415 = vcmp.gt.s32.totalorder %v1414, 0
        %v1416 = vsel %vm1415, %v1414, 0
        %v1417 = vshrl.u32 %v1416, 5
        %v1418 = vand.u32 %v1416, 31
        %v1419 = vsub.s32 32, %v1418
        %v1420 = vshrl.u32 683565275, %v1419
        %v1421 = vshll.u32 683565275, %v1418
        %v1422 = vshrl.u32 2475754826, %v1419
        %v1423 = vor.u32 %v1421, %v1422
        %v1424 = vshll.u32 2475754826, %v1418
        %v1425 = vshrl.u32 2131351028, %v1419
        %v1426 = vor.u32 %v1424, %v1425
        %v1427 = vshll.u32 2131351028, %v1418
        %v1428 = vshrl.u32 2102212464, %v1419
        %v1429 = vor.u32 %v1427, %v1428
        %v1430 = vshll.u32 2102212464, %v1418
        %v1431 = vshrl.u32 920167782, %v1419
        %v1432 = vor.u32 %v1430, %v1431
        %v1433 = vshll.u32 920167782, %v1418
        %v1434 = vshrl.u32 1326507024, %v1419
        %v1435 = vor.u32 %v1433, %v1434
        %vm1436 = vcmp.lt.s32.totalorder %v1417, 1
        %vm1437 = vcmp.lt.s32.totalorder %v1417, 2
        %vm1438 = vcmp.lt.s32.totalorder %v1417, 3
        %vm1439 = vcmp.lt.s32.totalorder %v1417, 4
        %v1440 = vsel %vm1436, %v1420, %v1423
        %v1441 = vsel %vm1439, %v1429, 2102212464
        %v1442 = vsel %vm1438, %v1426, %v1441
        %v1443 = vsel %vm1437, %v1440, %v1442
        %v1444 = vsel %vm1436, %v1423, %v1426
        %v1445 = vsel %vm1439, %v1432, 920167782
        %v1446 = vsel %vm1438, %v1429, %v1445
        %v1447 = vsel %vm1437, %v1444, %v1446
        %v1448 = vsel %vm1436, %v1426, %v1429
        %v1449 = vsel %vm1439, %v1435, 1326507024
        %v1450 = vsel %vm1438, %v1432, %v1449
        %v1451 = vsel %vm1437, %v1448, %v1450
        %v1452 = vshll.u32 %v1412, 8
        %v1453 = vmul.u32.u64.compose %v1452, %v1451
        %v1454 = vextract.low.u32 %v1453
        %v1455 = vextract.high.u32 %v1453
        %v1456 = vmul.u32.u64.compose %v1452, %v1447
        %v1457 = vextract.low.u32 %v1456
        %v1458 = vextract.high.u32 %v1456
        %v1459 = vmul.u32 %v1452, %v1443
        %v1460 = vadd.s32 %v1455, %v1457
        %vm1461 = vc.u32 %v1455, %v1457
        %v1462 = vadd.s32 %v1458, 1
        %v1463 = vsel %vm1461, %v1462, %v1458
        %v1464 = vadd.s32 %v1459, %v1463
        %v1465 = vadd.s32 %v1464, 536870912
        %v1466 = vshrl.u32 %v1465, 30
        %v1467 = vshll.u32 %v1466, 30
        %v1468 = vsub.s32 %v1464, %v1467
        %vm1469 = vcmp.lt.s32.totalorder %v1468, 0
        %v1470 = vsub.s32 0, %v1468
        %v1471 = vsel %vm1469, %v1470, %v1468
        %v1472 = vclz %v1471
        %v1473 = vsub.s32 %v1472, 2
        %vm1474 = vcmp.gt.s32.totalorder 0, %v1473
        %v1475 = vsel %vm1474, 0, %v1473
        %v1476 = vsub.s32 32, %v1475
        %v1477 = vshll.u32 %v1468, %v1475
        %v1478 = vshrl.u32 %v1460, %v1476
        %v1479 = vor.u32 %v1477, %v1478
        %v1480 = vsub.s32 4294967266, %v1475
        %v1481 = vadd.s32 %v1480, 127
        %v1482 = vshll.u32 %v1481, 23
        %v1483 = vor.u32 4788187, %v1482
        %v1484 = vand.u32 2147483647, %v1483
        %v1486 = vcvt.s32.f32 %v1479
        %v1487 = vmul.f32 %v1486, %v1484
        %v1488 = vxor.u32 %v1487, 2147483648
        %v1489 = vsel %vm1406, %v1488, %v1487
        %v1490 = vsub.s32 4, %v1466
        %v1491 = vsel %vm1406, %v1490, %v1466
        %v1492 = vsel %vm1405, %v461, %v1489
        %v1493 = vsel %vm1405, 0, %v1491
        %v1494 = vcosq.f32.pop %v1492
        %v1495 = vsinq.f32.pop %v1492
        %vm1496 = vweird.f32 %v461
        %v1497 = vadd.s32 %v1493, 3
        %v1498 = vand.u32 %v1497, 3
        %vm1499 = vcmp.lt.s32.totalorder %v1498, 2
        %vm1500 = vcmp.eq.s32.totalorder %v1498, 0
        %v1501 = vxor.u32 %v1495, 2147483648
        %v1502 = vsel %vm1500, %v1494, %v1501
        %vm1503 = vcmp.eq.s32.totalorder %v1498, 2
        %v1504 = vxor.u32 %v1494, 2147483648
        %v1505 = vsel %vm1503, %v1504, %v1495
        %v1506 = vsel %vm1499, %v1502, %v1505
        %v1507 = vsel %vm1496, nan, %v1506
        %v1508 = vand.u32 2147483647, %v462
        %vm1509 = vcmp.le.f32.partialorder %v1508, 0.7853982
        %vm1510 = vcmp.lt.s32.totalorder %v462, 0
        %v1511 = vand.u32 %v462, 2139095040
        %v1512 = vshrl.u32 %v1511, 23
        %v1513 = vsub.s32 %v1512, 127
        %v1514 = vand.u32 2147483647, %v462
        %v1515 = vand.u32 %v1514, 8388607
        %v1516 = vor.u32 %v1515, 8388608
        %v1517 = vsub.s32 0, %v1516
        %v1518 = vadd.s32 %v1513, 1
        %vm1519 = vcmp.gt.s32.totalorder %v1518, 0
        %v1520 = vsel %vm1519, %v1518, 0
        %v1521 = vshrl.u32 %v1520, 5
        %v1522 = vand.u32 %v1520, 31
        %v1523 = vsub.s32 32, %v1522
        %v1524 = vshrl.u32 683565275, %v1523
        %v1525 = vshll.u32 683565275, %v1522
        %v1526 = vshrl.u32 2475754826, %v1523
        %v1527 = vor.u32 %v1525, %v1526
        %v1528 = vshll.u32 2475754826, %v1522
        %v1529 = vshrl.u32 2131351028, %v1523
        %v1530 = vor.u32 %v1528, %v1529
        %v1531 = vshll.u32 2131351028, %v1522
        %v1532 = vshrl.u32 2102212464, %v1523
        %v1533 = vor.u32 %v1531, %v1532
        %v1534 = vshll.u32 2102212464, %v1522
        %v1535 = vshrl.u32 920167782, %v1523
        %v1536 = vor.u32 %v1534, %v1535
        %v1537 = vshll.u32 920167782, %v1522
        %v1538 = vshrl.u32 1326507024, %v1523
        %v1539 = vor.u32 %v1537, %v1538
        %vm1540 = vcmp.lt.s32.totalorder %v1521, 1
        %vm1541 = vcmp.lt.s32.totalorder %v1521, 2
        %vm1542 = vcmp.lt.s32.totalorder %v1521, 3
        %vm1543 = vcmp.lt.s32.totalorder %v1521, 4
        %v1544 = vsel %vm1540, %v1524, %v1527
        %v1545 = vsel %vm1543, %v1533, 2102212464
        %v1546 = vsel %vm1542, %v1530, %v1545
        %v1547 = vsel %vm1541, %v1544, %v1546
        %v1548 = vsel %vm1540, %v1527, %v1530
        %v1549 = vsel %vm1543, %v1536, 920167782
        %v1550 = vsel %vm1542, %v1533, %v1549
        %v1551 = vsel %vm1541, %v1548, %v1550
        %v1552 = vsel %vm1540, %v1530, %v1533
        %v1553 = vsel %vm1543, %v1539, 1326507024
        %v1554 = vsel %vm1542, %v1536, %v1553
        %v1555 = vsel %vm1541, %v1552, %v1554
        %v1556 = vshll.u32 %v1516, 8
        %v1557 = vmul.u32.u64.compose %v1556, %v1555
        %v1558 = vextract.low.u32 %v1557
        %v1559 = vextract.high.u32 %v1557
        %v1560 = vmul.u32.u64.compose %v1556, %v1551
        %v1561 = vextract.low.u32 %v1560
        %v1562 = vextract.high.u32 %v1560
        %v1563 = vmul.u32 %v1556, %v1547
        %v1564 = vadd.s32 %v1559, %v1561
        %vm1565 = vc.u32 %v1559, %v1561
        %v1566 = vadd.s32 %v1562, 1
        %v1567 = vsel %vm1565, %v1566, %v1562
        %v1568 = vadd.s32 %v1563, %v1567
        %v1569 = vadd.s32 %v1568, 536870912
        %v1570 = vshrl.u32 %v1569, 30
        %v1571 = vshll.u32 %v1570, 30
        %v1572 = vsub.s32 %v1568, %v1571
        %vm1573 = vcmp.lt.s32.totalorder %v1572, 0
        %v1574 = vsub.s32 0, %v1572
        %v1575 = vsel %vm1573, %v1574, %v1572
        %v1576 = vclz %v1575
        %v1577 = vsub.s32 %v1576, 2
        %vm1578 = vcmp.gt.s32.totalorder 0, %v1577
        %v1579 = vsel %vm1578, 0, %v1577
        %v1580 = vsub.s32 32, %v1579
        %v1581 = vshll.u32 %v1572, %v1579
        %v1582 = vshrl.u32 %v1564, %v1580
        %v1583 = vor.u32 %v1581, %v1582
        %v1584 = vsub.s32 4294967266, %v1579
        %v1585 = vadd.s32 %v1584, 127
        %v1586 = vshll.u32 %v1585, 23
        %v1587 = vor.u32 4788187, %v1586
        %v1588 = vand.u32 2147483647, %v1587
        %v1590 = vcvt.s32.f32 %v1583
        %v1591 = vmul.f32 %v1590, %v1588
        %v1592 = vxor.u32 %v1591, 2147483648
        %v1593 = vsel %vm1510, %v1592, %v1591
        %v1594 = vsub.s32 4, %v1570
        %v1595 = vsel %vm1510, %v1594, %v1570
        %v1596 = vsel %vm1509, %v462, %v1593
        %v1597 = vsel %vm1509, 0, %v1595
        %v1598 = vcosq.f32.pop %v1596
        %v1599 = vsinq.f32.pop %v1596
        %vm1600 = vweird.f32 %v462
        %v1601 = vadd.s32 %v1597, 3
        %v1602 = vand.u32 %v1601, 3
        %vm1603 = vcmp.lt.s32.totalorder %v1602, 2
        %vm1604 = vcmp.eq.s32.totalorder %v1602, 0
        %v1605 = vxor.u32 %v1599, 2147483648
        %v1606 = vsel %vm1604, %v1598, %v1605
        %vm1607 = vcmp.eq.s32.totalorder %v1602, 2
        %v1608 = vxor.u32 %v1598, 2147483648
        %v1609 = vsel %vm1607, %v1608, %v1599
        %v1610 = vsel %vm1603, %v1606, %v1609
        %v1611 = vsel %vm1600, nan, %v1610
        %v1612 = vand.u32 2147483647, %v463
        %vm1613 = vcmp.le.f32.partialorder %v1612, 0.7853982
        %vm1614 = vcmp.lt.s32.totalorder %v463, 0
        %v1615 = vand.u32 %v463, 2139095040
        %v1616 = vshrl.u32 %v1615, 23
        %v1617 = vsub.s32 %v1616, 127
        %v1618 = vand.u32 2147483647, %v463
        %v1619 = vand.u32 %v1618, 8388607
        %v1620 = vor.u32 %v1619, 8388608
        %v1621 = vsub.s32 0, %v1620
        %v1622 = vadd.s32 %v1617, 1
        %vm1623 = vcmp.gt.s32.totalorder %v1622, 0
        %v1624 = vsel %vm1623, %v1622, 0
        %v1625 = vshrl.u32 %v1624, 5
        %v1626 = vand.u32 %v1624, 31
        %v1627 = vsub.s32 32, %v1626
        %v1628 = vshrl.u32 683565275, %v1627
        %v1629 = vshll.u32 683565275, %v1626
        %v1630 = vshrl.u32 2475754826, %v1627
        %v1631 = vor.u32 %v1629, %v1630
        %v1632 = vshll.u32 2475754826, %v1626
        %v1633 = vshrl.u32 2131351028, %v1627
        %v1634 = vor.u32 %v1632, %v1633
        %v1635 = vshll.u32 2131351028, %v1626
        %v1636 = vshrl.u32 2102212464, %v1627
        %v1637 = vor.u32 %v1635, %v1636
        %v1638 = vshll.u32 2102212464, %v1626
        %v1639 = vshrl.u32 920167782, %v1627
        %v1640 = vor.u32 %v1638, %v1639
        %v1641 = vshll.u32 920167782, %v1626
        %v1642 = vshrl.u32 1326507024, %v1627
        %v1643 = vor.u32 %v1641, %v1642
        %vm1644 = vcmp.lt.s32.totalorder %v1625, 1
        %vm1645 = vcmp.lt.s32.totalorder %v1625, 2
        %vm1646 = vcmp.lt.s32.totalorder %v1625, 3
        %vm1647 = vcmp.lt.s32.totalorder %v1625, 4
        %v1648 = vsel %vm1644, %v1628, %v1631
        %v1649 = vsel %vm1647, %v1637, 2102212464
        %v1650 = vsel %vm1646, %v1634, %v1649
        %v1651 = vsel %vm1645, %v1648, %v1650
        %v1652 = vsel %vm1644, %v1631, %v1634
        %v1653 = vsel %vm1647, %v1640, 920167782
        %v1654 = vsel %vm1646, %v1637, %v1653
        %v1655 = vsel %vm1645, %v1652, %v1654
        %v1656 = vsel %vm1644, %v1634, %v1637
        %v1657 = vsel %vm1647, %v1643, 1326507024
        %v1658 = vsel %vm1646, %v1640, %v1657
        %v1659 = vsel %vm1645, %v1656, %v1658
        %v1660 = vshll.u32 %v1620, 8
        %v1661 = vmul.u32.u64.compose %v1660, %v1659
        %v1662 = vextract.low.u32 %v1661
        %v1663 = vextract.high.u32 %v1661
        %v1664 = vmul.u32.u64.compose %v1660, %v1655
        %v1665 = vextract.low.u32 %v1664
        %v1666 = vextract.high.u32 %v1664
        %v1667 = vmul.u32 %v1660, %v1651
        %v1668 = vadd.s32 %v1663, %v1665
        %vm1669 = vc.u32 %v1663, %v1665
        %v1670 = vadd.s32 %v1666, 1
        %v1671 = vsel %vm1669, %v1670, %v1666
        %v1672 = vadd.s32 %v1667, %v1671
        %v1673 = vadd.s32 %v1672, 536870912
        %v1674 = vshrl.u32 %v1673, 30
        %v1675 = vshll.u32 %v1674, 30
        %v1676 = vsub.s32 %v1672, %v1675
        %vm1677 = vcmp.lt.s32.totalorder %v1676, 0
        %v1678 = vsub.s32 0, %v1676
        %v1679 = vsel %vm1677, %v1678, %v1676
        %v1680 = vclz %v1679
        %v1681 = vsub.s32 %v1680, 2
        %vm1682 = vcmp.gt.s32.totalorder 0, %v1681
        %v1683 = vsel %vm1682, 0, %v1681
        %v1684 = vsub.s32 32, %v1683
        %v1685 = vshll.u32 %v1676, %v1683
        %v1686 = vshrl.u32 %v1668, %v1684
        %v1687 = vor.u32 %v1685, %v1686
        %v1688 = vsub.s32 4294967266, %v1683
        %v1689 = vadd.s32 %v1688, 127
        %v1690 = vshll.u32 %v1689, 23
        %v1691 = vor.u32 4788187, %v1690
        %v1692 = vand.u32 2147483647, %v1691
        %v1694 = vcvt.s32.f32 %v1687
        %v1695 = vmul.f32 %v1694, %v1692
        %v1696 = vxor.u32 %v1695, 2147483648
        %v1697 = vsel %vm1614, %v1696, %v1695
        %v1698 = vsub.s32 4, %v1674
        %v1699 = vsel %vm1614, %v1698, %v1674
        %v1700 = vsel %vm1613, %v463, %v1697
        %v1701 = vsel %vm1613, 0, %v1699
        %v1702 = vcosq.f32.pop %v1700
        %v1703 = vsinq.f32.pop %v1700
        %vm1704 = vweird.f32 %v463
        %v1705 = vadd.s32 %v1701, 3
        %v1706 = vand.u32 %v1705, 3
        %vm1707 = vcmp.lt.s32.totalorder %v1706, 2
        %vm1708 = vcmp.eq.s32.totalorder %v1706, 0
        %v1709 = vxor.u32 %v1703, 2147483648
        %v1710 = vsel %vm1708, %v1702, %v1709
        %vm1711 = vcmp.eq.s32.totalorder %v1706, 2
        %v1712 = vxor.u32 %v1702, 2147483648
        %v1713 = vsel %vm1711, %v1712, %v1703
        %v1714 = vsel %vm1707, %v1710, %v1713
        %v1715 = vsel %vm1704, nan, %v1714
        %v1716 = vand.u32 2147483647, %v464
        %vm1717 = vcmp.le.f32.partialorder %v1716, 0.7853982
        %vm1718 = vcmp.lt.s32.totalorder %v464, 0
        %v1719 = vand.u32 %v464, 2139095040
        %v1720 = vshrl.u32 %v1719, 23
        %v1721 = vsub.s32 %v1720, 127
        %v1722 = vand.u32 2147483647, %v464
        %v1723 = vand.u32 %v1722, 8388607
        %v1724 = vor.u32 %v1723, 8388608
        %v1725 = vsub.s32 0, %v1724
        %v1726 = vadd.s32 %v1721, 1
        %vm1727 = vcmp.gt.s32.totalorder %v1726, 0
        %v1728 = vsel %vm1727, %v1726, 0
        %v1729 = vshrl.u32 %v1728, 5
        %v1730 = vand.u32 %v1728, 31
        %v1731 = vsub.s32 32, %v1730
        %v1732 = vshrl.u32 683565275, %v1731
        %v1733 = vshll.u32 683565275, %v1730
        %v1734 = vshrl.u32 2475754826, %v1731
        %v1735 = vor.u32 %v1733, %v1734
        %v1736 = vshll.u32 2475754826, %v1730
        %v1737 = vshrl.u32 2131351028, %v1731
        %v1738 = vor.u32 %v1736, %v1737
        %v1739 = vshll.u32 2131351028, %v1730
        %v1740 = vshrl.u32 2102212464, %v1731
        %v1741 = vor.u32 %v1739, %v1740
        %v1742 = vshll.u32 2102212464, %v1730
        %v1743 = vshrl.u32 920167782, %v1731
        %v1744 = vor.u32 %v1742, %v1743
        %v1745 = vshll.u32 920167782, %v1730
        %v1746 = vshrl.u32 1326507024, %v1731
        %v1747 = vor.u32 %v1745, %v1746
        %vm1748 = vcmp.lt.s32.totalorder %v1729, 1
        %vm1749 = vcmp.lt.s32.totalorder %v1729, 2
        %vm1750 = vcmp.lt.s32.totalorder %v1729, 3
        %vm1751 = vcmp.lt.s32.totalorder %v1729, 4
        %v1752 = vsel %vm1748, %v1732, %v1735
        %v1753 = vsel %vm1751, %v1741, 2102212464
        %v1754 = vsel %vm1750, %v1738, %v1753
        %v1755 = vsel %vm1749, %v1752, %v1754
        %v1756 = vsel %vm1748, %v1735, %v1738
        %v1757 = vsel %vm1751, %v1744, 920167782
        %v1758 = vsel %vm1750, %v1741, %v1757
        %v1759 = vsel %vm1749, %v1756, %v1758
        %v1760 = vsel %vm1748, %v1738, %v1741
        %v1761 = vsel %vm1751, %v1747, 1326507024
        %v1762 = vsel %vm1750, %v1744, %v1761
        %v1763 = vsel %vm1749, %v1760, %v1762
        %v1764 = vshll.u32 %v1724, 8
        %v1765 = vmul.u32.u64.compose %v1764, %v1763
        %v1766 = vextract.low.u32 %v1765
        %v1767 = vextract.high.u32 %v1765
        %v1768 = vmul.u32.u64.compose %v1764, %v1759
        %v1769 = vextract.low.u32 %v1768
        %v1770 = vextract.high.u32 %v1768
        %v1771 = vmul.u32 %v1764, %v1755
        %v1772 = vadd.s32 %v1767, %v1769
        %vm1773 = vc.u32 %v1767, %v1769
        %v1774 = vadd.s32 %v1770, 1
        %v1775 = vsel %vm1773, %v1774, %v1770
        %v1776 = vadd.s32 %v1771, %v1775
        %v1777 = vadd.s32 %v1776, 536870912
        %v1778 = vshrl.u32 %v1777, 30
        %v1779 = vshll.u32 %v1778, 30
        %v1780 = vsub.s32 %v1776, %v1779
        %vm1781 = vcmp.lt.s32.totalorder %v1780, 0
        %v1782 = vsub.s32 0, %v1780
        %v1783 = vsel %vm1781, %v1782, %v1780
        %v1784 = vclz %v1783
        %v1785 = vsub.s32 %v1784, 2
        %vm1786 = vcmp.gt.s32.totalorder 0, %v1785
        %v1787 = vsel %vm1786, 0, %v1785
        %v1788 = vsub.s32 32, %v1787
        %v1789 = vshll.u32 %v1780, %v1787
        %v1790 = vshrl.u32 %v1772, %v1788
        %v1791 = vor.u32 %v1789, %v1790
        %v1792 = vsub.s32 4294967266, %v1787
        %v1793 = vadd.s32 %v1792, 127
        %v1794 = vshll.u32 %v1793, 23
        %v1795 = vor.u32 4788187, %v1794
        %v1796 = vand.u32 2147483647, %v1795
        %v1798 = vcvt.s32.f32 %v1791
        %v1799 = vmul.f32 %v1798, %v1796
        %v1800 = vxor.u32 %v1799, 2147483648
        %v1801 = vsel %vm1718, %v1800, %v1799
        %v1802 = vsub.s32 4, %v1778
        %v1803 = vsel %vm1718, %v1802, %v1778
        %v1804 = vsel %vm1717, %v464, %v1801
        %v1805 = vsel %vm1717, 0, %v1803
        %v1806 = vcosq.f32.pop %v1804
        %v1807 = vsinq.f32.pop %v1804
        %vm1808 = vweird.f32 %v464
        %v1809 = vadd.s32 %v1805, 3
        %v1810 = vand.u32 %v1809, 3
        %vm1811 = vcmp.lt.s32.totalorder %v1810, 2
        %vm1812 = vcmp.eq.s32.totalorder %v1810, 0
        %v1813 = vxor.u32 %v1807, 2147483648
        %v1814 = vsel %vm1812, %v1806, %v1813
        %vm1815 = vcmp.eq.s32.totalorder %v1810, 2
        %v1816 = vxor.u32 %v1806, 2147483648
        %v1817 = vsel %vm1815, %v1816, %v1807
        %v1818 = vsel %vm1811, %v1814, %v1817
        %v1819 = vsel %vm1808, nan, %v1818
        %v1820 = vand.u32 2147483647, %v465
        %vm1821 = vcmp.le.f32.partialorder %v1820, 0.7853982
        %vm1822 = vcmp.lt.s32.totalorder %v465, 0
        %v1823 = vand.u32 %v465, 2139095040
        %v1824 = vshrl.u32 %v1823, 23
        %v1825 = vsub.s32 %v1824, 127
        %v1826 = vand.u32 2147483647, %v465
        %v1827 = vand.u32 %v1826, 8388607
        %v1828 = vor.u32 %v1827, 8388608
        %v1829 = vsub.s32 0, %v1828
        %v1830 = vadd.s32 %v1825, 1
        %vm1831 = vcmp.gt.s32.totalorder %v1830, 0
        %v1832 = vsel %vm1831, %v1830, 0
        %v1833 = vshrl.u32 %v1832, 5
        %v1834 = vand.u32 %v1832, 31
        %v1835 = vsub.s32 32, %v1834
        %v1836 = vshrl.u32 683565275, %v1835
        %v1837 = vshll.u32 683565275, %v1834
        %v1838 = vshrl.u32 2475754826, %v1835
        %v1839 = vor.u32 %v1837, %v1838
        %v1840 = vshll.u32 2475754826, %v1834
        %v1841 = vshrl.u32 2131351028, %v1835
        %v1842 = vor.u32 %v1840, %v1841
        %v1843 = vshll.u32 2131351028, %v1834
        %v1844 = vshrl.u32 2102212464, %v1835
        %v1845 = vor.u32 %v1843, %v1844
        %v1846 = vshll.u32 2102212464, %v1834
        %v1847 = vshrl.u32 920167782, %v1835
        %v1848 = vor.u32 %v1846, %v1847
        %v1849 = vshll.u32 920167782, %v1834
        %v1850 = vshrl.u32 1326507024, %v1835
        %v1851 = vor.u32 %v1849, %v1850
        %vm1852 = vcmp.lt.s32.totalorder %v1833, 1
        %vm1853 = vcmp.lt.s32.totalorder %v1833, 2
        %vm1854 = vcmp.lt.s32.totalorder %v1833, 3
        %vm1855 = vcmp.lt.s32.totalorder %v1833, 4
        %v1856 = vsel %vm1852, %v1836, %v1839
        %v1857 = vsel %vm1855, %v1845, 2102212464
        %v1858 = vsel %vm1854, %v1842, %v1857
        %v1859 = vsel %vm1853, %v1856, %v1858
        %v1860 = vsel %vm1852, %v1839, %v1842
        %v1861 = vsel %vm1855, %v1848, 920167782
        %v1862 = vsel %vm1854, %v1845, %v1861
        %v1863 = vsel %vm1853, %v1860, %v1862
        %v1864 = vsel %vm1852, %v1842, %v1845
        %v1865 = vsel %vm1855, %v1851, 1326507024
        %v1866 = vsel %vm1854, %v1848, %v1865
        %v1867 = vsel %vm1853, %v1864, %v1866
        %v1868 = vshll.u32 %v1828, 8
        %v1869 = vmul.u32.u64.compose %v1868, %v1867
        %v1870 = vextract.low.u32 %v1869
        %v1871 = vextract.high.u32 %v1869
        %v1872 = vmul.u32.u64.compose %v1868, %v1863
        %v1873 = vextract.low.u32 %v1872
        %v1874 = vextract.high.u32 %v1872
        %v1875 = vmul.u32 %v1868, %v1859
        %v1876 = vadd.s32 %v1871, %v1873
        %vm1877 = vc.u32 %v1871, %v1873
        %v1878 = vadd.s32 %v1874, 1
        %v1879 = vsel %vm1877, %v1878, %v1874
        %v1880 = vadd.s32 %v1875, %v1879
        %v1881 = vadd.s32 %v1880, 536870912
        %v1882 = vshrl.u32 %v1881, 30
        %v1883 = vshll.u32 %v1882, 30
        %v1884 = vsub.s32 %v1880, %v1883
        %vm1885 = vcmp.lt.s32.totalorder %v1884, 0
        %v1886 = vsub.s32 0, %v1884
        %v1887 = vsel %vm1885, %v1886, %v1884
        %v1888 = vclz %v1887
        %v1889 = vsub.s32 %v1888, 2
        %vm1890 = vcmp.gt.s32.totalorder 0, %v1889
        %v1891 = vsel %vm1890, 0, %v1889
        %v1892 = vsub.s32 32, %v1891
        %v1893 = vshll.u32 %v1884, %v1891
        %v1894 = vshrl.u32 %v1876, %v1892
        %v1895 = vor.u32 %v1893, %v1894
        %v1896 = vsub.s32 4294967266, %v1891
        %v1897 = vadd.s32 %v1896, 127
        %v1898 = vshll.u32 %v1897, 23
        %v1899 = vor.u32 4788187, %v1898
        %v1900 = vand.u32 2147483647, %v1899
        %v1902 = vcvt.s32.f32 %v1895
        %v1903 = vmul.f32 %v1902, %v1900
        %v1904 = vxor.u32 %v1903, 2147483648
        %v1905 = vsel %vm1822, %v1904, %v1903
        %v1906 = vsub.s32 4, %v1882
        %v1907 = vsel %vm1822, %v1906, %v1882
        %v1908 = vsel %vm1821, %v465, %v1905
        %v1909 = vsel %vm1821, 0, %v1907
        %v1910 = vcosq.f32.pop %v1908
        %v1911 = vsinq.f32.pop %v1908
        %vm1912 = vweird.f32 %v465
        %v1913 = vadd.s32 %v1909, 3
        %v1914 = vand.u32 %v1913, 3
        %vm1915 = vcmp.lt.s32.totalorder %v1914, 2
        %vm1916 = vcmp.eq.s32.totalorder %v1914, 0
        %v1917 = vxor.u32 %v1911, 2147483648
        %v1918 = vsel %vm1916, %v1910, %v1917
        %vm1919 = vcmp.eq.s32.totalorder %v1914, 2
        %v1920 = vxor.u32 %v1910, 2147483648
        %v1921 = vsel %vm1919, %v1920, %v1911
        %v1922 = vsel %vm1915, %v1918, %v1921
        %v1923 = vsel %vm1912, nan, %v1922
        %v1924 = vand.u32 2147483647, %v466
        %vm1925 = vcmp.le.f32.partialorder %v1924, 0.7853982
        %vm1926 = vcmp.lt.s32.totalorder %v466, 0
        %v1927 = vand.u32 %v466, 2139095040
        %v1928 = vshrl.u32 %v1927, 23
        %v1929 = vsub.s32 %v1928, 127
        %v1930 = vand.u32 2147483647, %v466
        %v1931 = vand.u32 %v1930, 8388607
        %v1932 = vor.u32 %v1931, 8388608
        %v1933 = vsub.s32 0, %v1932
        %v1934 = vadd.s32 %v1929, 1
        %vm1935 = vcmp.gt.s32.totalorder %v1934, 0
        %v1936 = vsel %vm1935, %v1934, 0
        %v1937 = vshrl.u32 %v1936, 5
        %v1938 = vand.u32 %v1936, 31
        %v1939 = vsub.s32 32, %v1938
        %v1940 = vshrl.u32 683565275, %v1939
        %v1941 = vshll.u32 683565275, %v1938
        %v1942 = vshrl.u32 2475754826, %v1939
        %v1943 = vor.u32 %v1941, %v1942
        %v1944 = vshll.u32 2475754826, %v1938
        %v1945 = vshrl.u32 2131351028, %v1939
        %v1946 = vor.u32 %v1944, %v1945
        %v1947 = vshll.u32 2131351028, %v1938
        %v1948 = vshrl.u32 2102212464, %v1939
        %v1949 = vor.u32 %v1947, %v1948
        %v1950 = vshll.u32 2102212464, %v1938
        %v1951 = vshrl.u32 920167782, %v1939
        %v1952 = vor.u32 %v1950, %v1951
        %v1953 = vshll.u32 920167782, %v1938
        %v1954 = vshrl.u32 1326507024, %v1939
        %v1955 = vor.u32 %v1953, %v1954
        %vm1956 = vcmp.lt.s32.totalorder %v1937, 1
        %vm1957 = vcmp.lt.s32.totalorder %v1937, 2
        %vm1958 = vcmp.lt.s32.totalorder %v1937, 3
        %vm1959 = vcmp.lt.s32.totalorder %v1937, 4
        %v1960 = vsel %vm1956, %v1940, %v1943
        %v1961 = vsel %vm1959, %v1949, 2102212464
        %v1962 = vsel %vm1958, %v1946, %v1961
        %v1963 = vsel %vm1957, %v1960, %v1962
        %v1964 = vsel %vm1956, %v1943, %v1946
        %v1965 = vsel %vm1959, %v1952, 920167782
        %v1966 = vsel %vm1958, %v1949, %v1965
        %v1967 = vsel %vm1957, %v1964, %v1966
        %v1968 = vsel %vm1956, %v1946, %v1949
        %v1969 = vsel %vm1959, %v1955, 1326507024
        %v1970 = vsel %vm1958, %v1952, %v1969
        %v1971 = vsel %vm1957, %v1968, %v1970
        %v1972 = vshll.u32 %v1932, 8
        %v1973 = vmul.u32.u64.compose %v1972, %v1971
        %v1974 = vextract.low.u32 %v1973
        %v1975 = vextract.high.u32 %v1973
        %v1976 = vmul.u32.u64.compose %v1972, %v1967
        %v1977 = vextract.low.u32 %v1976
        %v1978 = vextract.high.u32 %v1976
        %v1979 = vmul.u32 %v1972, %v1963
        %v1980 = vadd.s32 %v1975, %v1977
        %vm1981 = vc.u32 %v1975, %v1977
        %v1982 = vadd.s32 %v1978, 1
        %v1983 = vsel %vm1981, %v1982, %v1978
        %v1984 = vadd.s32 %v1979, %v1983
        %v1985 = vadd.s32 %v1984, 536870912
        %v1986 = vshrl.u32 %v1985, 30
        %v1987 = vshll.u32 %v1986, 30
        %v1988 = vsub.s32 %v1984, %v1987
        %vm1989 = vcmp.lt.s32.totalorder %v1988, 0
        %v1990 = vsub.s32 0, %v1988
        %v1991 = vsel %vm1989, %v1990, %v1988
        %v1992 = vclz %v1991
        %v1993 = vsub.s32 %v1992, 2
        %vm1994 = vcmp.gt.s32.totalorder 0, %v1993
        %v1995 = vsel %vm1994, 0, %v1993
        %v1996 = vsub.s32 32, %v1995
        %v1997 = vshll.u32 %v1988, %v1995
        %v1998 = vshrl.u32 %v1980, %v1996
        %v1999 = vor.u32 %v1997, %v1998
        %v2000 = vsub.s32 4294967266, %v1995
        %v2001 = vadd.s32 %v2000, 127
        %v2002 = vshll.u32 %v2001, 23
        %v2003 = vor.u32 4788187, %v2002
        %v2004 = vand.u32 2147483647, %v2003
        %v2006 = vcvt.s32.f32 %v1999
        %v2007 = vmul.f32 %v2006, %v2004
        %v2008 = vxor.u32 %v2007, 2147483648
        %v2009 = vsel %vm1926, %v2008, %v2007
        %v2010 = vsub.s32 4, %v1986
        %v2011 = vsel %vm1926, %v2010, %v1986
        %v2012 = vsel %vm1925, %v466, %v2009
        %v2013 = vsel %vm1925, 0, %v2011
        %v2014 = vcosq.f32.pop %v2012
        %v2015 = vsinq.f32.pop %v2012
        %vm2016 = vweird.f32 %v466
        %v2017 = vadd.s32 %v2013, 3
        %v2018 = vand.u32 %v2017, 3
        %vm2019 = vcmp.lt.s32.totalorder %v2018, 2
        %vm2020 = vcmp.eq.s32.totalorder %v2018, 0
        %v2021 = vxor.u32 %v2015, 2147483648
        %v2022 = vsel %vm2020, %v2014, %v2021
        %vm2023 = vcmp.eq.s32.totalorder %v2018, 2
        %v2024 = vxor.u32 %v2014, 2147483648
        %v2025 = vsel %vm2023, %v2024, %v2015
        %v2026 = vsel %vm2019, %v2022, %v2025
        %v2027 = vsel %vm2016, nan, %v2026
        %v2028 = vand.u32 2147483647, %v467
        %vm2029 = vcmp.le.f32.partialorder %v2028, 0.7853982
        %vm2030 = vcmp.lt.s32.totalorder %v467, 0
        %v2031 = vand.u32 %v467, 2139095040
        %v2032 = vshrl.u32 %v2031, 23
        %v2033 = vsub.s32 %v2032, 127
        %v2034 = vand.u32 2147483647, %v467
        %v2035 = vand.u32 %v2034, 8388607
        %v2036 = vor.u32 %v2035, 8388608
        %v2037 = vsub.s32 0, %v2036
        %v2038 = vadd.s32 %v2033, 1
        %vm2039 = vcmp.gt.s32.totalorder %v2038, 0
        %v2040 = vsel %vm2039, %v2038, 0
        %v2041 = vshrl.u32 %v2040, 5
        %v2042 = vand.u32 %v2040, 31
        %v2043 = vsub.s32 32, %v2042
        %v2044 = vshrl.u32 683565275, %v2043
        %v2045 = vshll.u32 683565275, %v2042
        %v2046 = vshrl.u32 2475754826, %v2043
        %v2047 = vor.u32 %v2045, %v2046
        %v2048 = vshll.u32 2475754826, %v2042
        %v2049 = vshrl.u32 2131351028, %v2043
        %v2050 = vor.u32 %v2048, %v2049
        %v2051 = vshll.u32 2131351028, %v2042
        %v2052 = vshrl.u32 2102212464, %v2043
        %v2053 = vor.u32 %v2051, %v2052
        %v2054 = vshll.u32 2102212464, %v2042
        %v2055 = vshrl.u32 920167782, %v2043
        %v2056 = vor.u32 %v2054, %v2055
        %v2057 = vshll.u32 920167782, %v2042
        %v2058 = vshrl.u32 1326507024, %v2043
        %v2059 = vor.u32 %v2057, %v2058
        %vm2060 = vcmp.lt.s32.totalorder %v2041, 1
        %vm2061 = vcmp.lt.s32.totalorder %v2041, 2
        %vm2062 = vcmp.lt.s32.totalorder %v2041, 3
        %vm2063 = vcmp.lt.s32.totalorder %v2041, 4
        %v2064 = vsel %vm2060, %v2044, %v2047
        %v2065 = vsel %vm2063, %v2053, 2102212464
        %v2066 = vsel %vm2062, %v2050, %v2065
        %v2067 = vsel %vm2061, %v2064, %v2066
        %v2068 = vsel %vm2060, %v2047, %v2050
        %v2069 = vsel %vm2063, %v2056, 920167782
        %v2070 = vsel %vm2062, %v2053, %v2069
        %v2071 = vsel %vm2061, %v2068, %v2070
        %v2072 = vsel %vm2060, %v2050, %v2053
        %v2073 = vsel %vm2063, %v2059, 1326507024
        %v2074 = vsel %vm2062, %v2056, %v2073
        %v2075 = vsel %vm2061, %v2072, %v2074
        %v2076 = vshll.u32 %v2036, 8
        %v2077 = vmul.u32.u64.compose %v2076, %v2075
        %v2078 = vextract.low.u32 %v2077
        %v2079 = vextract.high.u32 %v2077
        %v2080 = vmul.u32.u64.compose %v2076, %v2071
        %v2081 = vextract.low.u32 %v2080
        %v2082 = vextract.high.u32 %v2080
        %v2083 = vmul.u32 %v2076, %v2067
        %v2084 = vadd.s32 %v2079, %v2081
        %vm2085 = vc.u32 %v2079, %v2081
        %v2086 = vadd.s32 %v2082, 1
        %v2087 = vsel %vm2085, %v2086, %v2082
        %v2088 = vadd.s32 %v2083, %v2087
        %v2089 = vadd.s32 %v2088, 536870912
        %v2090 = vshrl.u32 %v2089, 30
        %v2091 = vshll.u32 %v2090, 30
        %v2092 = vsub.s32 %v2088, %v2091
        %vm2093 = vcmp.lt.s32.totalorder %v2092, 0
        %v2094 = vsub.s32 0, %v2092
        %v2095 = vsel %vm2093, %v2094, %v2092
        %v2096 = vclz %v2095
        %v2097 = vsub.s32 %v2096, 2
        %vm2098 = vcmp.gt.s32.totalorder 0, %v2097
        %v2099 = vsel %vm2098, 0, %v2097
        %v2100 = vsub.s32 32, %v2099
        %v2101 = vshll.u32 %v2092, %v2099
        %v2102 = vshrl.u32 %v2084, %v2100
        %v2103 = vor.u32 %v2101, %v2102
        %v2104 = vsub.s32 4294967266, %v2099
        %v2105 = vadd.s32 %v2104, 127
        %v2106 = vshll.u32 %v2105, 23
        %v2107 = vor.u32 4788187, %v2106
        %v2108 = vand.u32 2147483647, %v2107
        %v2110 = vcvt.s32.f32 %v2103
        %v2111 = vmul.f32 %v2110, %v2108
        %v2112 = vxor.u32 %v2111, 2147483648
        %v2113 = vsel %vm2030, %v2112, %v2111
        %v2114 = vsub.s32 4, %v2090
        %v2115 = vsel %vm2030, %v2114, %v2090
        %v2116 = vsel %vm2029, %v467, %v2113
        %v2117 = vsel %vm2029, 0, %v2115
        %v2118 = vcosq.f32.pop %v2116
        %v2119 = vsinq.f32.pop %v2116
        %vm2120 = vweird.f32 %v467
        %v2121 = vadd.s32 %v2117, 3
        %v2122 = vand.u32 %v2121, 3
        %vm2123 = vcmp.lt.s32.totalorder %v2122, 2
        %vm2124 = vcmp.eq.s32.totalorder %v2122, 0
        %v2125 = vxor.u32 %v2119, 2147483648
        %v2126 = vsel %vm2124, %v2118, %v2125
        %vm2127 = vcmp.eq.s32.totalorder %v2122, 2
        %v2128 = vxor.u32 %v2118, 2147483648
        %v2129 = vsel %vm2127, %v2128, %v2119
        %v2130 = vsel %vm2123, %v2126, %v2129
        %v2131 = vsel %vm2120, nan, %v2130
        %2132 = vset.pattern.permute.xlu0 4
        %2133 = vperm.xlu0 %2132, %v188
        %v2134 = vpop.permute.xlu0 %2133
        %2136 = vset.pattern.permute.xlu0 4
        %2137 = vperm.xlu0 %2136, %v189
        %v2138 = vpop.permute.xlu0 %2137
        %2140 = vset.pattern.permute.xlu0 4
        %2141 = vperm.xlu0 %2140, %v190
        %v2142 = vpop.permute.xlu0 %2141
        %2144 = vset.pattern.permute.xlu0 4
        %2145 = vperm.xlu0 %2144, %v191
        %v2146 = vpop.permute.xlu0 %2145
        %vm2148 = vcmask 261120
        %v2150 = vsel %vm2148, %v172, 0
        %v2153 = vsel %vm2148, %v173, 0
        %v2156 = vsel %vm2148, %v174, 0
        %v2159 = vsel %vm2148, %v175, 0
        %2161 = vmatprep.subr.mxu0 %v675
        %2162 = vmatpush1.msra.mxu0 %v571
        %2163 = vmatprep.subr.mxu0 %v1091
        %2164 = vmatpush1.msra.mxu0 %v987
        %2165 = vmatprep.subr.mxu0 %v1507
        %2166 = vmatpush1.msra.mxu0 %v1403
        %2167 = vmatprep.subr.mxu0 %v1923
        %2168 = vmatpush1.msra.mxu0 %v1819
        %2169 = vmatprep.subr.mxu0 0.0
        %2170 = vmatpush1.msra.mxu0 0.0
        %2171 = vmatprep.subr.mxu0 0.0
        %2172 = vmatpush1.msra.mxu0 0.0
        %2173 = vmatprep.subr.mxu0 0.0
        %2174 = vmatpush1.msra.mxu0 0.0
        %2175 = vmatprep.subr.mxu0 0.0
        %2176 = vmatpush1.msra.mxu0 0.0
        %2177 = vmatprep.subr.mxu0 0.0
        %2178 = vmatpush1.msra.mxu0 0.0
        %2179 = vmatprep.subr.mxu0 0.0
        %2180 = vmatpush1.msra.mxu0 0.0
        %2181 = vmatprep.subr.mxu0 0.0
        %2182 = vmatpush1.msra.mxu0 0.0
        %2183 = vmatprep.subr.mxu0 0.0
        %2184 = vmatpush1.msra.mxu0 0.0
        %2185 = vmatprep.subr.mxu0 0.0
        %2186 = vmatpush1.msra.mxu0 0.0
        %2187 = vmatprep.subr.mxu0 0.0
        %2188 = vmatpush1.msra.mxu0 0.0
        %2189 = vmatprep.subr.mxu0 0.0
        %2190 = vmatpush1.msra.mxu0 0.0
        %2191 = vmatprep.subr.mxu0 0.0
        %2192 = vmatpush1.msra.mxu0 0.0
        %2193 = vmatprep.subr.mxu0 0.0
        %2194 = vmatpush1.msra.mxu0 0.0
        %2195 = vmatprep.subr.mxu0 0.0
        %2196 = vmatpush1.msra.mxu0 0.0
        %2197 = vmatprep.subr.mxu0 0.0
        %2198 = vmatpush1.msra.mxu0 0.0
        %2199 = vmatprep.subr.mxu0 0.0
        %2200 = vmatpush1.msra.mxu0 0.0
        %2201 = vmatprep.subr.mxu0 0.0
        %2202 = vmatpush1.msra.mxu0 0.0
        %2203 = vmatprep.subr.mxu0 0.0
        %2204 = vmatpush1.msra.mxu0 0.0
        %2205 = vmatprep.subr.mxu0 0.0
        %2206 = vmatpush1.msra.mxu0 0.0
        %2207 = vmatprep.subr.mxu0 0.0
        %2208 = vmatpush1.msra.mxu0 0.0
        %2209 = vmatprep.subr.mxu0 0.0
        %2210 = vmatpush1.msra.mxu0 0.0
        %2211 = vmatprep.subr.mxu0 0.0
        %2212 = vmatpush1.msra.mxu0 0.0
        %2213 = vmatprep.subr.mxu0 0.0
        %2214 = vmatpush1.msra.mxu0 0.0
        %2215 = vmatprep.subr.mxu0 0.0
        %2216 = vmatpush1.msra.mxu0 0.0
        %2217 = vmatprep.subr.mxu0 0.0
        %2218 = vmatpush1.msra.mxu0 0.0
        %2219 = vmatprep.subr.mxu0 0.0
        %2220 = vmatpush1.msra.mxu0 0.0
        %2221 = vmatprep.subr.mxu0 0.0
        %2222 = vmatpush1.msra.mxu0 0.0
        %2223 = vmatprep.subr.mxu0 0.0
        %2224 = vmatpush1.msra.mxu0 0.0
        %2225 = vmatprep.mubr.f32.mxu0 0.0
        %2226 = vmatmul.mubr.f32.gmra.mrb[0].mxu0 %v2150
        %v2227 = vpop.f32.mrb[0].mxu0
        %v2228 = vadd.f32 %v2134, %v2227
        %v2229 = vpop.f32.mrb[0].mxu0
        %v2230 = vadd.f32 %v2134, %v2229
        %2231 = vmatprep.mubr.f32.mxu0 0.0
        %2232 = vmatmul.mubr.f32.gmra.mrb[0].mxu0 %v2153
        %v2233 = vpop.f32.mrb[0].mxu0
        %v2234 = vadd.f32 %v2138, %v2233
        %v2235 = vpop.f32.mrb[0].mxu0
        %v2236 = vadd.f32 %v2138, %v2235
        %2237 = vmatprep.mubr.f32.mxu0 0.0
        %2238 = vmatmul.mubr.f32.gmra.mrb[0].mxu0 %v2156
        %v2239 = vpop.f32.mrb[0].mxu0
        %v2240 = vadd.f32 %v2142, %v2239
        %v2241 = vpop.f32.mrb[0].mxu0
        %v2242 = vadd.f32 %v2142, %v2241
        %2243 = vmatprep.mubr.f32.mxu0 0.0
        %2244 = vmatmul.mubr.f32.gmra.mrb[0].mxu0 %v2159
        %v2245 = vpop.f32.mrb[0].mxu0
        %v2246 = vadd.f32 %v2146, %v2245
        %v2247 = vpop.f32.mrb[0].mxu0
        %v2248 = vadd.f32 %v2146, %v2247
        %2249 = vdwg.mxu0
        %2250 = vmatprep.subr.mxu0 %v883
        %2251 = vmatpush1.msra.mxu0 %v779
        %2252 = vmatprep.subr.mxu0 %v1299
        %2253 = vmatpush1.msra.mxu0 %v1195
        %2254 = vmatprep.subr.mxu0 %v1715
        %2255 = vmatpush1.msra.mxu0 %v1611
        %2256 = vmatprep.subr.mxu0 %v2131
        %2257 = vmatpush1.msra.mxu0 %v2027
        %2258 = vmatprep.subr.mxu0 0.0
        %2259 = vmatpush1.msra.mxu0 0.0
        %2260 = vmatprep.subr.mxu0 0.0
        %2261 = vmatpush1.msra.mxu0 0.0
        %2262 = vmatprep.subr.mxu0 0.0
        %2263 = vmatpush1.msra.mxu0 0.0
        %2264 = vmatprep.subr.mxu0 0.0
        %2265 = vmatpush1.msra.mxu0 0.0
        %2266 = vmatprep.subr.mxu0 0.0
        %2267 = vmatpush1.msra.mxu0 0.0
        %2268 = vmatprep.subr.mxu0 0.0
        %2269 = vmatpush1.msra.mxu0 0.0
        %2270 = vmatprep.subr.mxu0 0.0
        %2271 = vmatpush1.msra.mxu0 0.0
        %2272 = vmatprep.subr.mxu0 0.0
        %2273 = vmatpush1.msra.mxu0 0.0
        %2274 = vmatprep.subr.mxu0 0.0
        %2275 = vmatpush1.msra.mxu0 0.0
        %2276 = vmatprep.subr.mxu0 0.0
        %2277 = vmatpush1.msra.mxu0 0.0
        %2278 = vmatprep.subr.mxu0 0.0
        %2279 = vmatpush1.msra.mxu0 0.0
        %2280 = vmatprep.subr.mxu0 0.0
        %2281 = vmatpush1.msra.mxu0 0.0
        %2282 = vmatprep.subr.mxu0 0.0
        %2283 = vmatpush1.msra.mxu0 0.0
        %2284 = vmatprep.subr.mxu0 0.0
        %2285 = vmatpush1.msra.mxu0 0.0
        %2286 = vmatprep.subr.mxu0 0.0
        %2287 = vmatpush1.msra.mxu0 0.0
        %2288 = vmatprep.subr.mxu0 0.0
        %2289 = vmatpush1.msra.mxu0 0.0
        %2290 = vmatprep.subr.mxu0 0.0
        %2291 = vmatpush1.msra.mxu0 0.0
        %2292 = vmatprep.subr.mxu0 0.0
        %2293 = vmatpush1.msra.mxu0 0.0
        %2294 = vmatprep.subr.mxu0 0.0
        %2295 = vmatpush1.msra.mxu0 0.0
        %2296 = vmatprep.subr.mxu0 0.0
        %2297 = vmatpush1.msra.mxu0 0.0
        %2298 = vmatprep.subr.mxu0 0.0
        %2299 = vmatpush1.msra.mxu0 0.0
        %2300 = vmatprep.subr.mxu0 0.0
        %2301 = vmatpush1.msra.mxu0 0.0
        %2302 = vmatprep.subr.mxu0 0.0
        %2303 = vmatpush1.msra.mxu0 0.0
        %2304 = vmatprep.subr.mxu0 0.0
        %2305 = vmatpush1.msra.mxu0 0.0
        %2306 = vmatprep.subr.mxu0 0.0
        %2307 = vmatpush1.msra.mxu0 0.0
        %2308 = vmatprep.subr.mxu0 0.0
        %2309 = vmatpush1.msra.mxu0 0.0
        %2310 = vmatprep.subr.mxu0 0.0
        %2311 = vmatpush1.msra.mxu0 0.0
        %2312 = vmatprep.subr.mxu0 0.0
        %2313 = vmatpush1.msra.mxu0 0.0
        %2314 = vmatprep.mubr.f32.mxu0 0.0
        %2315 = vmatmul.mubr.f32.gmra.mrb[0].mxu0 %v2150
        %v2316 = vpop.f32.mrb[0].mxu0
        %v2317 = vadd.f32 %v2134, %v2316
        %v2318 = vpop.f32.mrb[0].mxu0
        %v2319 = vadd.f32 %v2134, %v2318
        %2320 = vmatprep.mubr.f32.mxu0 0.0
        %2321 = vmatmul.mubr.f32.gmra.mrb[0].mxu0 %v2153
        %v2322 = vpop.f32.mrb[0].mxu0
        %v2323 = vadd.f32 %v2138, %v2322
        %v2324 = vpop.f32.mrb[0].mxu0
        %v2325 = vadd.f32 %v2138, %v2324
        %2326 = vmatprep.mubr.f32.mxu0 0.0
        %2327 = vmatmul.mubr.f32.gmra.mrb[0].mxu0 %v2156
        %v2328 = vpop.f32.mrb[0].mxu0
        %v2329 = vadd.f32 %v2142, %v2328
        %v2330 = vpop.f32.mrb[0].mxu0
        %v2331 = vadd.f32 %v2142, %v2330
        %2332 = vmatprep.mubr.f32.mxu0 0.0
        %2333 = vmatmul.mubr.f32.gmra.mrb[0].mxu0 %v2159
        %v2334 = vpop.f32.mrb[0].mxu0
        %v2335 = vadd.f32 %v2146, %v2334
        %v2336 = vpop.f32.mrb[0].mxu0
        %v2337 = vadd.f32 %v2146, %v2336
        %2338 = vdwg.mxu0
        %2339 = vset.pattern.permute.xlu0 5
        %2340 = vperm.xlu0 %2339, %v188
        %v2341 = vpop.permute.xlu0 %2340
        %2343 = vset.pattern.permute.xlu0 5
        %2344 = vperm.xlu0 %2343, %v189
        %v2345 = vpop.permute.xlu0 %2344
        %2347 = vset.pattern.permute.xlu0 5
        %2348 = vperm.xlu0 %2347, %v190
        %v2349 = vpop.permute.xlu0 %2348
        %2351 = vset.pattern.permute.xlu0 5
        %2352 = vperm.xlu0 %2351, %v191
        %v2353 = vpop.permute.xlu0 %2352
        %v2356 = vsel %vm2148, %v177, 0
        %v2359 = vsel %vm2148, %v178, 0
        %v2362 = vsel %vm2148, %v179, 0
        %v2365 = vsel %vm2148, %v180, 0
        %2367 = vmatprep.subr.mxu0 %v2230
        %2368 = vmatpush1.msra.mxu0 %v2228
        %2369 = vmatprep.subr.mxu0 %v2236
        %2370 = vmatpush1.msra.mxu0 %v2234
        %2371 = vmatprep.subr.mxu0 %v2242
        %2372 = vmatpush1.msra.mxu0 %v2240
        %2373 = vmatprep.subr.mxu0 %v2248
        %2374 = vmatpush1.msra.mxu0 %v2246
        %2375 = vmatprep.subr.mxu0 0.0
        %2376 = vmatpush1.msra.mxu0 0.0
        %2377 = vmatprep.subr.mxu0 0.0
        %2378 = vmatpush1.msra.mxu0 0.0
        %2379 = vmatprep.subr.mxu0 0.0
        %2380 = vmatpush1.msra.mxu0 0.0
        %2381 = vmatprep.subr.mxu0 0.0
        %2382 = vmatpush1.msra.mxu0 0.0
        %2383 = vmatprep.subr.mxu0 0.0
        %2384 = vmatpush1.msra.mxu0 0.0
        %2385 = vmatprep.subr.mxu0 0.0
        %2386 = vmatpush1.msra.mxu0 0.0
        %2387 = vmatprep.subr.mxu0 0.0
        %2388 = vmatpush1.msra.mxu0 0.0
        %2389 = vmatprep.subr.mxu0 0.0
        %2390 = vmatpush1.msra.mxu0 0.0
        %2391 = vmatprep.subr.mxu0 0.0
        %2392 = vmatpush1.msra.mxu0 0.0
        %2393 = vmatprep.subr.mxu0 0.0
        %2394 = vmatpush1.msra.mxu0 0.0
        %2395 = vmatprep.subr.mxu0 0.0
        %2396 = vmatpush1.msra.mxu0 0.0
        %2397 = vmatprep.subr.mxu0 0.0
        %2398 = vmatpush1.msra.mxu0 0.0
        %2399 = vmatprep.subr.mxu0 0.0
        %2400 = vmatpush1.msra.mxu0 0.0
        %2401 = vmatprep.subr.mxu0 0.0
        %2402 = vmatpush1.msra.mxu0 0.0
        %2403 = vmatprep.subr.mxu0 0.0
        %2404 = vmatpush1.msra.mxu0 0.0
        %2405 = vmatprep.subr.mxu0 0.0
        %2406 = vmatpush1.msra.mxu0 0.0
        %2407 = vmatprep.subr.mxu0 0.0
        %2408 = vmatpush1.msra.mxu0 0.0
        %2409 = vmatprep.subr.mxu0 0.0
        %2410 = vmatpush1.msra.mxu0 0.0
        %2411 = vmatprep.subr.mxu0 0.0
        %2412 = vmatpush1.msra.mxu0 0.0
        %2413 = vmatprep.subr.mxu0 0.0
        %2414 = vmatpush1.msra.mxu0 0.0
        %2415 = vmatprep.subr.mxu0 0.0
        %2416 = vmatpush1.msra.mxu0 0.0
        %2417 = vmatprep.subr.mxu0 0.0
        %2418 = vmatpush1.msra.mxu0 0.0
        %2419 = vmatprep.subr.mxu0 0.0
        %2420 = vmatpush1.msra.mxu0 0.0
        %2421 = vmatprep.subr.mxu0 0.0
        %2422 = vmatpush1.msra.mxu0 0.0
        %2423 = vmatprep.subr.mxu0 0.0
        %2424 = vmatpush1.msra.mxu0 0.0
        %2425 = vmatprep.subr.mxu0 0.0
        %2426 = vmatpush1.msra.mxu0 0.0
        %2427 = vmatprep.subr.mxu0 0.0
        %2428 = vmatpush1.msra.mxu0 0.0
        %2429 = vmatprep.subr.mxu0 0.0
        %2430 = vmatpush1.msra.mxu0 0.0
        %2431 = vmatprep.mubr.f32.mxu0 0.0
        %2432 = vmatmul.mubr.f32.gmra.mrb[0].mxu0 %v2356
        %v2433 = vpop.f32.mrb[0].mxu0
        %v2434 = vadd.f32 %v2341, %v2433
        %v2435 = vpop.f32.mrb[0].mxu0
        %v2436 = vadd.f32 %v2341, %v2435
        %2437 = vmatprep.mubr.f32.mxu0 0.0
        %2438 = vmatmul.mubr.f32.gmra.mrb[0].mxu0 %v2359
        %v2439 = vpop.f32.mrb[0].mxu0
        %v2440 = vadd.f32 %v2345, %v2439
        %v2441 = vpop.f32.mrb[0].mxu0
        %v2442 = vadd.f32 %v2345, %v2441
        %2443 = vmatprep.mubr.f32.mxu0 0.0
        %2444 = vmatmul.mubr.f32.gmra.mrb[0].mxu0 %v2362
        %v2445 = vpop.f32.mrb[0].mxu0
        %v2446 = vadd.f32 %v2349, %v2445
        %v2447 = vpop.f32.mrb[0].mxu0
        %v2448 = vadd.f32 %v2349, %v2447
        %2449 = vmatprep.mubr.f32.mxu0 0.0
        %2450 = vmatmul.mubr.f32.gmra.mrb[0].mxu0 %v2365
        %v2451 = vpop.f32.mrb[0].mxu0
        %v2452 = vadd.f32 %v2353, %v2451
        %v2453 = vpop.f32.mrb[0].mxu0
        %v2454 = vadd.f32 %v2353, %v2453
        %2455 = vdwg.mxu0
        %2456 = vmatprep.subr.mxu0 %v2319
        %2457 = vmatpush1.msra.mxu0 %v2317
        %2458 = vmatprep.subr.mxu0 %v2325
        %2459 = vmatpush1.msra.mxu0 %v2323
        %2460 = vmatprep.subr.mxu0 %v2331
        %2461 = vmatpush1.msra.mxu0 %v2329
        %2462 = vmatprep.subr.mxu0 %v2337
        %2463 = vmatpush1.msra.mxu0 %v2335
        %2464 = vmatprep.subr.mxu0 0.0
        %2465 = vmatpush1.msra.mxu0 0.0
        %2466 = vmatprep.subr.mxu0 0.0
        %2467 = vmatpush1.msra.mxu0 0.0
        %2468 = vmatprep.subr.mxu0 0.0
        %2469 = vmatpush1.msra.mxu0 0.0
        %2470 = vmatprep.subr.mxu0 0.0
        %2471 = vmatpush1.msra.mxu0 0.0
        %2472 = vmatprep.subr.mxu0 0.0
        %2473 = vmatpush1.msra.mxu0 0.0
        %2474 = vmatprep.subr.mxu0 0.0
        %2475 = vmatpush1.msra.mxu0 0.0
        %2476 = vmatprep.subr.mxu0 0.0
        %2477 = vmatpush1.msra.mxu0 0.0
        %2478 = vmatprep.subr.mxu0 0.0
        %2479 = vmatpush1.msra.mxu0 0.0
        %2480 = vmatprep.subr.mxu0 0.0
        %2481 = vmatpush1.msra.mxu0 0.0
        %2482 = vmatprep.subr.mxu0 0.0
        %2483 = vmatpush1.msra.mxu0 0.0
        %2484 = vmatprep.subr.mxu0 0.0
        %2485 = vmatpush1.msra.mxu0 0.0
        %2486 = vmatprep.subr.mxu0 0.0
        %2487 = vmatpush1.msra.mxu0 0.0
        %2488 = vmatprep.subr.mxu0 0.0
        %2489 = vmatpush1.msra.mxu0 0.0
        %2490 = vmatprep.subr.mxu0 0.0
        %2491 = vmatpush1.msra.mxu0 0.0
        %2492 = vmatprep.subr.mxu0 0.0
        %2493 = vmatpush1.msra.mxu0 0.0
        %2494 = vmatprep.subr.mxu0 0.0
        %2495 = vmatpush1.msra.mxu0 0.0
        %2496 = vmatprep.subr.mxu0 0.0
        %2497 = vmatpush1.msra.mxu0 0.0
        %2498 = vmatprep.subr.mxu0 0.0
        %2499 = vmatpush1.msra.mxu0 0.0
        %2500 = vmatprep.subr.mxu0 0.0
        %2501 = vmatpush1.msra.mxu0 0.0
        %2502 = vmatprep.subr.mxu0 0.0
        %2503 = vmatpush1.msra.mxu0 0.0
        %2504 = vmatprep.subr.mxu0 0.0
        %2505 = vmatpush1.msra.mxu0 0.0
        %2506 = vmatprep.subr.mxu0 0.0
        %2507 = vmatpush1.msra.mxu0 0.0
        %2508 = vmatprep.subr.mxu0 0.0
        %2509 = vmatpush1.msra.mxu0 0.0
        %2510 = vmatprep.subr.mxu0 0.0
        %2511 = vmatpush1.msra.mxu0 0.0
        %2512 = vmatprep.subr.mxu0 0.0
        %2513 = vmatpush1.msra.mxu0 0.0
        %2514 = vmatprep.subr.mxu0 0.0
        %2515 = vmatpush1.msra.mxu0 0.0
        %2516 = vmatprep.subr.mxu0 0.0
        %2517 = vmatpush1.msra.mxu0 0.0
        %2518 = vmatprep.subr.mxu0 0.0
        %2519 = vmatpush1.msra.mxu0 0.0
        %2520 = vmatprep.mubr.f32.mxu0 0.0
        %2521 = vmatmul.mubr.f32.gmra.mrb[0].mxu0 %v2356
        %v2522 = vpop.f32.mrb[0].mxu0
        %v2523 = vadd.f32 %v2341, %v2522
        %v2524 = vpop.f32.mrb[0].mxu0
        %v2525 = vadd.f32 %v2341, %v2524
        %2526 = vmatprep.mubr.f32.mxu0 0.0
        %2527 = vmatmul.mubr.f32.gmra.mrb[0].mxu0 %v2359
        %v2528 = vpop.f32.mrb[0].mxu0
        %v2529 = vadd.f32 %v2345, %v2528
        %v2530 = vpop.f32.mrb[0].mxu0
        %v2531 = vadd.f32 %v2345, %v2530
        %2532 = vmatprep.mubr.f32.mxu0 0.0
        %2533 = vmatmul.mubr.f32.gmra.mrb[0].mxu0 %v2362
        %v2534 = vpop.f32.mrb[0].mxu0
        %v2535 = vadd.f32 %v2349, %v2534
        %v2536 = vpop.f32.mrb[0].mxu0
        %v2537 = vadd.f32 %v2349, %v2536
        %2538 = vmatprep.mubr.f32.mxu0 0.0
        %2539 = vmatmul.mubr.f32.gmra.mrb[0].mxu0 %v2365
        %v2540 = vpop.f32.mrb[0].mxu0
        %v2541 = vadd.f32 %v2353, %v2540
        %v2542 = vpop.f32.mrb[0].mxu0
        %v2543 = vadd.f32 %v2353, %v2542
        %2544 = vdwg.mxu0
        %v2545 = vmax.f32 %v2434, 0.0
        %v2546 = vmax.f32 %v2436, 0.0
        %v2547 = vmax.f32 %v2523, 0.0
        %v2548 = vmax.f32 %v2525, 0.0
        %v2549 = vmax.f32 %v2440, 0.0
        %v2550 = vmax.f32 %v2442, 0.0
        %v2551 = vmax.f32 %v2529, 0.0
        %v2552 = vmax.f32 %v2531, 0.0
        %v2553 = vmax.f32 %v2446, 0.0
        %v2554 = vmax.f32 %v2448, 0.0
        %v2555 = vmax.f32 %v2535, 0.0
        %v2556 = vmax.f32 %v2537, 0.0
        %v2557 = vmax.f32 %v2452, 0.0
        %v2558 = vmax.f32 %v2454, 0.0
        %v2559 = vmax.f32 %v2541, 0.0
        %v2560 = vmax.f32 %v2543, 0.0
        %2561 = vset.pattern.permute.xlu0 6
        %2562 = vperm.xlu0 %2561, %v188
        %v2563 = vpop.permute.xlu0 %2562
        %2565 = vset.pattern.permute.xlu0 6
        %2566 = vperm.xlu0 %2565, %v189
        %v2567 = vpop.permute.xlu0 %2566
        %2569 = vset.pattern.permute.xlu0 6
        %2570 = vperm.xlu0 %2569, %v190
        %v2571 = vpop.permute.xlu0 %2570
        %2573 = vset.pattern.permute.xlu0 6
        %2574 = vperm.xlu0 %2573, %v191
        %v2575 = vpop.permute.xlu0 %2574
        %v2578 = vsel %vm2148, %v182, 0
        %v2581 = vsel %vm2148, %v183, 0
        %v2584 = vsel %vm2148, %v184, 0
        %v2587 = vsel %vm2148, %v185, 0
        %2589 = vmatprep.subr.mxu0 %v2546
        %2590 = vmatpush1.msra.mxu0 %v2545
        %2591 = vmatprep.subr.mxu0 %v2550
        %2592 = vmatpush1.msra.mxu0 %v2549
        %2593 = vmatprep.subr.mxu0 %v2554
        %2594 = vmatpush1.msra.mxu0 %v2553
        %2595 = vmatprep.subr.mxu0 %v2558
        %2596 = vmatpush1.msra.mxu0 %v2557
        %2597 = vmatprep.subr.mxu0 0.0
        %2598 = vmatpush1.msra.mxu0 0.0
        %2599 = vmatprep.subr.mxu0 0.0
        %2600 = vmatpush1.msra.mxu0 0.0
        %2601 = vmatprep.subr.mxu0 0.0
        %2602 = vmatpush1.msra.mxu0 0.0
        %2603 = vmatprep.subr.mxu0 0.0
        %2604 = vmatpush1.msra.mxu0 0.0
        %2605 = vmatprep.subr.mxu0 0.0
        %2606 = vmatpush1.msra.mxu0 0.0
        %2607 = vmatprep.subr.mxu0 0.0
        %2608 = vmatpush1.msra.mxu0 0.0
        %2609 = vmatprep.subr.mxu0 0.0
        %2610 = vmatpush1.msra.mxu0 0.0
        %2611 = vmatprep.subr.mxu0 0.0
        %2612 = vmatpush1.msra.mxu0 0.0
        %2613 = vmatprep.subr.mxu0 0.0
        %2614 = vmatpush1.msra.mxu0 0.0
        %2615 = vmatprep.subr.mxu0 0.0
        %2616 = vmatpush1.msra.mxu0 0.0
        %2617 = vmatprep.subr.mxu0 0.0
        %2618 = vmatpush1.msra.mxu0 0.0
        %2619 = vmatprep.subr.mxu0 0.0
        %2620 = vmatpush1.msra.mxu0 0.0
        %2621 = vmatprep.subr.mxu0 0.0
        %2622 = vmatpush1.msra.mxu0 0.0
        %2623 = vmatprep.subr.mxu0 0.0
        %2624 = vmatpush1.msra.mxu0 0.0
        %2625 = vmatprep.subr.mxu0 0.0
        %2626 = vmatpush1.msra.mxu0 0.0
        %2627 = vmatprep.subr.mxu0 0.0
        %2628 = vmatpush1.msra.mxu0 0.0
        %2629 = vmatprep.subr.mxu0 0.0
        %2630 = vmatpush1.msra.mxu0 0.0
        %2631 = vmatprep.subr.mxu0 0.0
        %2632 = vmatpush1.msra.mxu0 0.0
        %2633 = vmatprep.subr.mxu0 0.0
        %2634 = vmatpush1.msra.mxu0 0.0
        %2635 = vmatprep.subr.mxu0 0.0
        %2636 = vmatpush1.msra.mxu0 0.0
        %2637 = vmatprep.subr.mxu0 0.0
        %2638 = vmatpush1.msra.mxu0 0.0
        %2639 = vmatprep.subr.mxu0 0.0
        %2640 = vmatpush1.msra.mxu0 0.0
        %2641 = vmatprep.subr.mxu0 0.0
        %2642 = vmatpush1.msra.mxu0 0.0
        %2643 = vmatprep.subr.mxu0 0.0
        %2644 = vmatpush1.msra.mxu0 0.0
        %2645 = vmatprep.subr.mxu0 0.0
        %2646 = vmatpush1.msra.mxu0 0.0
        %2647 = vmatprep.subr.mxu0 0.0
        %2648 = vmatpush1.msra.mxu0 0.0
        %2649 = vmatprep.subr.mxu0 0.0
        %2650 = vmatpush1.msra.mxu0 0.0
        %2651 = vmatprep.subr.mxu0 0.0
        %2652 = vmatpush1.msra.mxu0 0.0
        %2653 = vmatprep.mubr.f32.mxu0 0.0
        %2654 = vmatmul.mubr.f32.gmra.mrb[0].mxu0 %v2578
        %v2655 = vpop.f32.mrb[0].mxu0
        %v2656 = vadd.f32 %v2563, %v2655
        %v2657 = vpop.f32.mrb[0].mxu0
        %v2658 = vadd.f32 %v2563, %v2657
        %2659 = vmatprep.mubr.f32.mxu0 0.0
        %2660 = vmatmul.mubr.f32.gmra.mrb[0].mxu0 %v2581
        %v2661 = vpop.f32.mrb[0].mxu0
        %v2662 = vadd.f32 %v2567, %v2661
        %v2663 = vpop.f32.mrb[0].mxu0
        %v2664 = vadd.f32 %v2567, %v2663
        %2665 = vmatprep.mubr.f32.mxu0 0.0
        %2666 = vmatmul.mubr.f32.gmra.mrb[0].mxu0 %v2584
        %v2667 = vpop.f32.mrb[0].mxu0
        %v2668 = vadd.f32 %v2571, %v2667
        %v2669 = vpop.f32.mrb[0].mxu0
        %v2670 = vadd.f32 %v2571, %v2669
        %2671 = vmatprep.mubr.f32.mxu0 0.0
        %2672 = vmatmul.mubr.f32.gmra.mrb[0].mxu0 %v2587
        %v2673 = vpop.f32.mrb[0].mxu0
        %v2674 = vadd.f32 %v2575, %v2673
        %v2675 = vpop.f32.mrb[0].mxu0
        %v2676 = vadd.f32 %v2575, %v2675
        %2677 = vdwg.mxu0
        %2678 = vmatprep.subr.mxu0 %v2548
        %2679 = vmatpush1.msra.mxu0 %v2547
        %2680 = vmatprep.subr.mxu0 %v2552
        %2681 = vmatpush1.msra.mxu0 %v2551
        %2682 = vmatprep.subr.mxu0 %v2556
        %2683 = vmatpush1.msra.mxu0 %v2555
        %2684 = vmatprep.subr.mxu0 %v2560
        %2685 = vmatpush1.msra.mxu0 %v2559
        %2686 = vmatprep.subr.mxu0 0.0
        %2687 = vmatpush1.msra.mxu0 0.0
        %2688 = vmatprep.subr.mxu0 0.0
        %2689 = vmatpush1.msra.mxu0 0.0
        %2690 = vmatprep.subr.mxu0 0.0
        %2691 = vmatpush1.msra.mxu0 0.0
        %2692 = vmatprep.subr.mxu0 0.0
        %2693 = vmatpush1.msra.mxu0 0.0
        %2694 = vmatprep.subr.mxu0 0.0
        %2695 = vmatpush1.msra.mxu0 0.0
        %2696 = vmatprep.subr.mxu0 0.0
        %2697 = vmatpush1.msra.mxu0 0.0
        %2698 = vmatprep.subr.mxu0 0.0
        %2699 = vmatpush1.msra.mxu0 0.0
        %2700 = vmatprep.subr.mxu0 0.0
        %2701 = vmatpush1.msra.mxu0 0.0
        %2702 = vmatprep.subr.mxu0 0.0
        %2703 = vmatpush1.msra.mxu0 0.0
        %2704 = vmatprep.subr.mxu0 0.0
        %2705 = vmatpush1.msra.mxu0 0.0
        %2706 = vmatprep.subr.mxu0 0.0
        %2707 = vmatpush1.msra.mxu0 0.0
        %2708 = vmatprep.subr.mxu0 0.0
        %2709 = vmatpush1.msra.mxu0 0.0
        %2710 = vmatprep.subr.mxu0 0.0
        %2711 = vmatpush1.msra.mxu0 0.0
        %2712 = vmatprep.subr.mxu0 0.0
        %2713 = vmatpush1.msra.mxu0 0.0
        %2714 = vmatprep.subr.mxu0 0.0
        %2715 = vmatpush1.msra.mxu0 0.0
        %2716 = vmatprep.subr.mxu0 0.0
        %2717 = vmatpush1.msra.mxu0 0.0
        %2718 = vmatprep.subr.mxu0 0.0
        %2719 = vmatpush1.msra.mxu0 0.0
        %2720 = vmatprep.subr.mxu0 0.0
        %2721 = vmatpush1.msra.mxu0 0.0
        %2722 = vmatprep.subr.mxu0 0.0
        %2723 = vmatpush1.msra.mxu0 0.0
        %2724 = vmatprep.subr.mxu0 0.0
        %2725 = vmatpush1.msra.mxu0 0.0
        %2726 = vmatprep.subr.mxu0 0.0
        %2727 = vmatpush1.msra.mxu0 0.0
        %2728 = vmatprep.subr.mxu0 0.0
        %2729 = vmatpush1.msra.mxu0 0.0
        %2730 = vmatprep.subr.mxu0 0.0
        %2731 = vmatpush1.msra.mxu0 0.0
        %2732 = vmatprep.subr.mxu0 0.0
        %2733 = vmatpush1.msra.mxu0 0.0
        %2734 = vmatprep.subr.mxu0 0.0
        %2735 = vmatpush1.msra.mxu0 0.0
        %2736 = vmatprep.subr.mxu0 0.0
        %2737 = vmatpush1.msra.mxu0 0.0
        %2738 = vmatprep.subr.mxu0 0.0
        %2739 = vmatpush1.msra.mxu0 0.0
        %2740 = vmatprep.subr.mxu0 0.0
        %2741 = vmatpush1.msra.mxu0 0.0
        %2742 = vmatprep.mubr.f32.mxu0 0.0
        %2743 = vmatmul.mubr.f32.gmra.mrb[0].mxu0 %v2578
        %v2744 = vpop.f32.mrb[0].mxu0
        %v2745 = vadd.f32 %v2563, %v2744
        %v2746 = vpop.f32.mrb[0].mxu0
        %v2747 = vadd.f32 %v2563, %v2746
        %2748 = vmatprep.mubr.f32.mxu0 0.0
        %2749 = vmatmul.mubr.f32.gmra.mrb[0].mxu0 %v2581
        %v2750 = vpop.f32.mrb[0].mxu0
        %v2751 = vadd.f32 %v2567, %v2750
        %v2752 = vpop.f32.mrb[0].mxu0
        %v2753 = vadd.f32 %v2567, %v2752
        %2754 = vmatprep.mubr.f32.mxu0 0.0
        %2755 = vmatmul.mubr.f32.gmra.mrb[0].mxu0 %v2584
        %v2756 = vpop.f32.mrb[0].mxu0
        %v2757 = vadd.f32 %v2571, %v2756
        %v2758 = vpop.f32.mrb[0].mxu0
        %v2759 = vadd.f32 %v2571, %v2758
        %2760 = vmatprep.mubr.f32.mxu0 0.0
        %2761 = vmatmul.mubr.f32.gmra.mrb[0].mxu0 %v2587
        %v2762 = vpop.f32.mrb[0].mxu0
        %v2763 = vadd.f32 %v2575, %v2762
        %v2764 = vpop.f32.mrb[0].mxu0
        %v2765 = vadd.f32 %v2575, %v2764
        %2766 = vdwg.mxu0
        %v2767 = vmax.f32 %v2656, 0.0
        %v2768 = vmax.f32 %v2658, 0.0
        %v2769 = vmax.f32 %v2745, 0.0
        %v2770 = vmax.f32 %v2747, 0.0
        %v2771 = vmax.f32 %v2662, 0.0
        %v2772 = vmax.f32 %v2664, 0.0
        %v2773 = vmax.f32 %v2751, 0.0
        %v2774 = vmax.f32 %v2753, 0.0
        %v2775 = vmax.f32 %v2668, 0.0
        %v2776 = vmax.f32 %v2670, 0.0
        %v2777 = vmax.f32 %v2757, 0.0
        %v2778 = vmax.f32 %v2759, 0.0
        %v2779 = vmax.f32 %v2674, 0.0
        %v2780 = vmax.f32 %v2676, 0.0
        %v2781 = vmax.f32 %v2763, 0.0
        %v2782 = vmax.f32 %v2765, 0.0
        %2783 = vset.pattern.permute.xlu0 7
        %2784 = vperm.xlu0 %2783, %v188
        %v2785 = vpop.permute.xlu0 %2784
        %v2788 = vsel %vm2148, %v187, 0
        %2790 = vmatprep.subr.mxu0 %v2768
        %2791 = vmatpush1.msra.mxu0 %v2767
        %2792 = vmatprep.subr.mxu0 %v2772
        %2793 = vmatpush1.msra.mxu0 %v2771
        %2794 = vmatprep.subr.mxu0 %v2776
        %2795 = vmatpush1.msra.mxu0 %v2775
        %2796 = vmatprep.subr.mxu0 %v2780
        %2797 = vmatpush1.msra.mxu0 %v2779
        %2798 = vmatprep.subr.mxu0 0.0
        %2799 = vmatpush1.msra.mxu0 0.0
        %2800 = vmatprep.subr.mxu0 0.0
        %2801 = vmatpush1.msra.mxu0 0.0
        %2802 = vmatprep.subr.mxu0 0.0
        %2803 = vmatpush1.msra.mxu0 0.0
        %2804 = vmatprep.subr.mxu0 0.0
        %2805 = vmatpush1.msra.mxu0 0.0
        %2806 = vmatprep.subr.mxu0 0.0
        %2807 = vmatpush1.msra.mxu0 0.0
        %2808 = vmatprep.subr.mxu0 0.0
        %2809 = vmatpush1.msra.mxu0 0.0
        %2810 = vmatprep.subr.mxu0 0.0
        %2811 = vmatpush1.msra.mxu0 0.0
        %2812 = vmatprep.subr.mxu0 0.0
        %2813 = vmatpush1.msra.mxu0 0.0
        %2814 = vmatprep.subr.mxu0 0.0
        %2815 = vmatpush1.msra.mxu0 0.0
        %2816 = vmatprep.subr.mxu0 0.0
        %2817 = vmatpush1.msra.mxu0 0.0
        %2818 = vmatprep.subr.mxu0 0.0
        %2819 = vmatpush1.msra.mxu0 0.0
        %2820 = vmatprep.subr.mxu0 0.0
        %2821 = vmatpush1.msra.mxu0 0.0
        %2822 = vmatprep.subr.mxu0 0.0
        %2823 = vmatpush1.msra.mxu0 0.0
        %2824 = vmatprep.subr.mxu0 0.0
        %2825 = vmatpush1.msra.mxu0 0.0
        %2826 = vmatprep.subr.mxu0 0.0
        %2827 = vmatpush1.msra.mxu0 0.0
        %2828 = vmatprep.subr.mxu0 0.0
        %2829 = vmatpush1.msra.mxu0 0.0
        %2830 = vmatprep.subr.mxu0 0.0
        %2831 = vmatpush1.msra.mxu0 0.0
        %2832 = vmatprep.subr.mxu0 0.0
        %2833 = vmatpush1.msra.mxu0 0.0
        %2834 = vmatprep.subr.mxu0 0.0
        %2835 = vmatpush1.msra.mxu0 0.0
        %2836 = vmatprep.subr.mxu0 0.0
        %2837 = vmatpush1.msra.mxu0 0.0
        %2838 = vmatprep.subr.mxu0 0.0
        %2839 = vmatpush1.msra.mxu0 0.0
        %2840 = vmatprep.subr.mxu0 0.0
        %2841 = vmatpush1.msra.mxu0 0.0
        %2842 = vmatprep.subr.mxu0 0.0
        %2843 = vmatpush1.msra.mxu0 0.0
        %2844 = vmatprep.subr.mxu0 0.0
        %2845 = vmatpush1.msra.mxu0 0.0
        %2846 = vmatprep.subr.mxu0 0.0
        %2847 = vmatpush1.msra.mxu0 0.0
        %2848 = vmatprep.subr.mxu0 0.0
        %2849 = vmatpush1.msra.mxu0 0.0
        %2850 = vmatprep.subr.mxu0 0.0
        %2851 = vmatpush1.msra.mxu0 0.0
        %2852 = vmatprep.subr.mxu0 0.0
        %2853 = vmatpush1.msra.mxu0 0.0
        %2854 = vmatprep.mubr.f32.mxu0 0.0
        %2855 = vmatmul.mubr.f32.gmra.mrb[0].mxu0 %v2788
        %v2856 = vpop.f32.mrb[0].mxu0
        %v2857 = vadd.f32 %v2785, %v2856
        %v2858 = vpop.f32.mrb[0].mxu0
        %v2859 = vadd.f32 %v2785, %v2858
        %2860 = vdwg.mxu0
        %2861 = vmatprep.subr.mxu0 %v2770
        %2862 = vmatpush1.msra.mxu0 %v2769
        %2863 = vmatprep.subr.mxu0 %v2774
        %2864 = vmatpush1.msra.mxu0 %v2773
        %2865 = vmatprep.subr.mxu0 %v2778
        %2866 = vmatpush1.msra.mxu0 %v2777
        %2867 = vmatprep.subr.mxu0 %v2782
        %2868 = vmatpush1.msra.mxu0 %v2781
        %2869 = vmatprep.subr.mxu0 0.0
        %2870 = vmatpush1.msra.mxu0 0.0
        %2871 = vmatprep.subr.mxu0 0.0
        %2872 = vmatpush1.msra.mxu0 0.0
        %2873 = vmatprep.subr.mxu0 0.0
        %2874 = vmatpush1.msra.mxu0 0.0
        %2875 = vmatprep.subr.mxu0 0.0
        %2876 = vmatpush1.msra.mxu0 0.0
        %2877 = vmatprep.subr.mxu0 0.0
        %2878 = vmatpush1.msra.mxu0 0.0
        %2879 = vmatprep.subr.mxu0 0.0
        %2880 = vmatpush1.msra.mxu0 0.0
        %2881 = vmatprep.subr.mxu0 0.0
        %2882 = vmatpush1.msra.mxu0 0.0
        %2883 = vmatprep.subr.mxu0 0.0
        %2884 = vmatpush1.msra.mxu0 0.0
        %2885 = vmatprep.subr.mxu0 0.0
        %2886 = vmatpush1.msra.mxu0 0.0
        %2887 = vmatprep.subr.mxu0 0.0
        %2888 = vmatpush1.msra.mxu0 0.0
        %2889 = vmatprep.subr.mxu0 0.0
        %2890 = vmatpush1.msra.mxu0 0.0
        %2891 = vmatprep.subr.mxu0 0.0
        %2892 = vmatpush1.msra.mxu0 0.0
        %2893 = vmatprep.subr.mxu0 0.0
        %2894 = vmatpush1.msra.mxu0 0.0
        %2895 = vmatprep.subr.mxu0 0.0
        %2896 = vmatpush1.msra.mxu0 0.0
        %2897 = vmatprep.subr.mxu0 0.0
        %2898 = vmatpush1.msra.mxu0 0.0
        %2899 = vmatprep.subr.mxu0 0.0
        %2900 = vmatpush1.msra.mxu0 0.0
        %2901 = vmatprep.subr.mxu0 0.0
        %2902 = vmatpush1.msra.mxu0 0.0
        %2903 = vmatprep.subr.mxu0 0.0
        %2904 = vmatpush1.msra.mxu0 0.0
        %2905 = vmatprep.subr.mxu0 0.0
        %2906 = vmatpush1.msra.mxu0 0.0
        %2907 = vmatprep.subr.mxu0 0.0
        %2908 = vmatpush1.msra.mxu0 0.0
        %2909 = vmatprep.subr.mxu0 0.0
        %2910 = vmatpush1.msra.mxu0 0.0
        %2911 = vmatprep.subr.mxu0 0.0
        %2912 = vmatpush1.msra.mxu0 0.0
        %2913 = vmatprep.subr.mxu0 0.0
        %2914 = vmatpush1.msra.mxu0 0.0
        %2915 = vmatprep.subr.mxu0 0.0
        %2916 = vmatpush1.msra.mxu0 0.0
        %2917 = vmatprep.subr.mxu0 0.0
        %2918 = vmatpush1.msra.mxu0 0.0
        %2919 = vmatprep.subr.mxu0 0.0
        %2920 = vmatpush1.msra.mxu0 0.0
        %2921 = vmatprep.subr.mxu0 0.0
        %2922 = vmatpush1.msra.mxu0 0.0
        %2923 = vmatprep.subr.mxu0 0.0
        %2924 = vmatpush1.msra.mxu0 0.0
        %2925 = vmatprep.mubr.f32.mxu0 0.0
        %2926 = vmatmul.mubr.f32.gmra.mrb[0].mxu0 %v2788
        %v2927 = vpop.f32.mrb[0].mxu0
        %v2928 = vadd.f32 %v2785, %v2927
        %v2929 = vpop.f32.mrb[0].mxu0
        %v2930 = vadd.f32 %v2785, %v2929
        %2931 = vdwg.mxu0
        %v2936 = vcombine.low %v2857, %v2859
        %v2937 = vcombine.low %v2928, %v2930
        %2940 = vst [vmem:[%s164] sm:$0x77] %v2936
        %2941 = vst [vmem:[%s164 + $0x8] sm:$0x77] %v2937
        %s2942 = scalar_lea.vmem %s169, 16
        %v2943 = vld [vmem:[%s2942] sm:$0x77]
        %v2944 = vld [vmem:[%s2942 + $0x8] sm:$0x77]
        %v2947 = vlaneseq
        %v2948 = vshrl.u32 %v2947, 7
        %v2949 = vsub.s32 0, %v2948
        %v2950 = vrot.slane %v2943, %v2949
        %v2951 = vlaneseq
        %v2952 = vshrl.u32 %v2951, 7
        %v2953 = vsub.s32 4, %v2952
        %v2954 = vrot.slane %v2943, %v2953
        %v2955 = vlaneseq
        %v2956 = vshrl.u32 %v2955, 7
        %v2957 = vsub.s32 0, %v2956
        %v2958 = vrot.slane %v2944, %v2957
        %v2959 = vlaneseq
        %v2960 = vshrl.u32 %v2959, 7
        %v2961 = vsub.s32 4, %v2960
        %v2962 = vrot.slane %v2944, %v2961
        %v2967 = vlaneseq
        %v2968 = vshrl.u32 %v2967, 7
        %v2969 = vsub.s32 0, %v2968
        %v2970 = vrot.slane %v2950, %v2969
        %v2971 = vlaneseq
        %v2972 = vshrl.u32 %v2971, 7
        %v2973 = vsub.s32 0, %v2972
        %v2974 = vrot.slane %v2954, %v2973
        %v2975 = vlaneseq
        %v2976 = vshrl.u32 %v2975, 7
        %v2977 = vsub.s32 0, %v2976
        %v2978 = vrot.slane %v2958, %v2977
        %v2979 = vlaneseq
        %v2980 = vshrl.u32 %v2979, 7
        %v2981 = vsub.s32 0, %v2980
        %v2982 = vrot.slane %v2962, %v2981
        %v2983 = vmul.f32 %v197, %v2970
        %v2984 = vmul.f32 %v197, %v2974
        %v2985 = vmul.f32 %v197, %v2978
        %v2986 = vmul.f32 %v197, %v2982
        %v2987 = vmul.f32 %v202, %v2970
        %v2988 = vmul.f32 %v202, %v2974
        %v2989 = vmul.f32 %v202, %v2978
        %v2990 = vmul.f32 %v202, %v2982
        %v2991 = vmul.f32 %v207, %v2970
        %v2992 = vmul.f32 %v207, %v2974
        %v2993 = vmul.f32 %v207, %v2978
        %v2994 = vmul.f32 %v207, %v2982
        %v2995 = vmul.f32 %v212, %v2970
        %v2996 = vmul.f32 %v212, %v2974
        %v2997 = vmul.f32 %v212, %v2978
        %v2998 = vmul.f32 %v212, %v2982
        %v2999 = vlaneseq
        %v3000 = vshrl.u32 %v2999, 7
        %v3001 = vsub.s32 1, %v3000
        %v3002 = vrot.slane %v2943, %v3001
        %v3003 = vlaneseq
        %v3004 = vshrl.u32 %v3003, 7
        %v3005 = vsub.s32 5, %v3004
        %v3006 = vrot.slane %v2943, %v3005
        %v3007 = vlaneseq
        %v3008 = vshrl.u32 %v3007, 7
        %v3009 = vsub.s32 1, %v3008
        %v3010 = vrot.slane %v2944, %v3009
        %v3011 = vlaneseq
        %v3012 = vshrl.u32 %v3011, 7
        %v3013 = vsub.s32 5, %v3012
        %v3014 = vrot.slane %v2944, %v3013
        %v3019 = vlaneseq
        %v3020 = vshrl.u32 %v3019, 7
        %v3021 = vsub.s32 1, %v3020
        %v3022 = vrot.slane %v3002, %v3021
        %v3023 = vlaneseq
        %v3024 = vshrl.u32 %v3023, 7
        %v3025 = vsub.s32 1, %v3024
        %v3026 = vrot.slane %v3006, %v3025
        %v3027 = vlaneseq
        %v3028 = vshrl.u32 %v3027, 7
        %v3029 = vsub.s32 1, %v3028
        %v3030 = vrot.slane %v3010, %v3029
        %v3031 = vlaneseq
        %v3032 = vshrl.u32 %v3031, 7
        %v3033 = vsub.s32 1, %v3032
        %v3034 = vrot.slane %v3014, %v3033
        %v3035 = vmul.f32 %v270, %v3022
        %v3036 = vmul.f32 %v270, %v3026
        %v3037 = vmul.f32 %v270, %v3030
        %v3038 = vmul.f32 %v270, %v3034
        %v3039 = vmul.f32 %v274, %v3022
        %v3040 = vmul.f32 %v274, %v3026
        %v3041 = vmul.f32 %v274, %v3030
        %v3042 = vmul.f32 %v274, %v3034
        %v3043 = vmul.f32 %v278, %v3022
        %v3044 = vmul.f32 %v278, %v3026
        %v3045 = vmul.f32 %v278, %v3030
        %v3046 = vmul.f32 %v278, %v3034
        %v3047 = vmul.f32 %v282, %v3022
        %v3048 = vmul.f32 %v282, %v3026
        %v3049 = vmul.f32 %v282, %v3030
        %v3050 = vmul.f32 %v282, %v3034
        %v3051 = vadd.f32 %v2983, %v3035
        %v3052 = vadd.f32 %v2984, %v3036
        %v3053 = vadd.f32 %v2985, %v3037
        %v3054 = vadd.f32 %v2986, %v3038
        %v3055 = vadd.f32 %v2987, %v3039
        %v3056 = vadd.f32 %v2988, %v3040
        %v3057 = vadd.f32 %v2989, %v3041
        %v3058 = vadd.f32 %v2990, %v3042
        %v3059 = vadd.f32 %v2991, %v3043
        %v3060 = vadd.f32 %v2992, %v3044
        %v3061 = vadd.f32 %v2993, %v3045
        %v3062 = vadd.f32 %v2994, %v3046
        %v3063 = vadd.f32 %v2995, %v3047
        %v3064 = vadd.f32 %v2996, %v3048
        %v3065 = vadd.f32 %v2997, %v3049
        %v3066 = vadd.f32 %v2998, %v3050
        %v3067 = vlaneseq
        %v3068 = vshrl.u32 %v3067, 7
        %v3069 = vsub.s32 2, %v3068
        %v3070 = vrot.slane %v2943, %v3069
        %v3071 = vlaneseq
        %v3072 = vshrl.u32 %v3071, 7
        %v3073 = vsub.s32 6, %v3072
        %v3074 = vrot.slane %v2943, %v3073
        %v3075 = vlaneseq
        %v3076 = vshrl.u32 %v3075, 7
        %v3077 = vsub.s32 2, %v3076
        %v3078 = vrot.slane %v2944, %v3077
        %v3079 = vlaneseq
        %v3080 = vshrl.u32 %v3079, 7
        %v3081 = vsub.s32 6, %v3080
        %v3082 = vrot.slane %v2944, %v3081
        %v3087 = vlaneseq
        %v3088 = vshrl.u32 %v3087, 7
        %v3089 = vsub.s32 2, %v3088
        %v3090 = vrot.slane %v3070, %v3089
        %v3091 = vlaneseq
        %v3092 = vshrl.u32 %v3091, 7
        %v3093 = vsub.s32 2, %v3092
        %v3094 = vrot.slane %v3074, %v3093
        %v3095 = vlaneseq
        %v3096 = vshrl.u32 %v3095, 7
        %v3097 = vsub.s32 2, %v3096
        %v3098 = vrot.slane %v3078, %v3097
        %v3099 = vlaneseq
        %v3100 = vshrl.u32 %v3099, 7
        %v3101 = vsub.s32 2, %v3100
        %v3102 = vrot.slane %v3082, %v3101
        %v3103 = vmul.f32 %v354, %v3090
        %v3104 = vmul.f32 %v354, %v3094
        %v3105 = vmul.f32 %v354, %v3098
        %v3106 = vmul.f32 %v354, %v3102
        %v3107 = vmul.f32 %v358, %v3090
        %v3108 = vmul.f32 %v358, %v3094
        %v3109 = vmul.f32 %v358, %v3098
        %v3110 = vmul.f32 %v358, %v3102
        %v3111 = vmul.f32 %v362, %v3090
        %v3112 = vmul.f32 %v362, %v3094
        %v3113 = vmul.f32 %v362, %v3098
        %v3114 = vmul.f32 %v362, %v3102
        %v3115 = vmul.f32 %v366, %v3090
        %v3116 = vmul.f32 %v366, %v3094
        %v3117 = vmul.f32 %v366, %v3098
        %v3118 = vmul.f32 %v366, %v3102
        %v3119 = vadd.f32 %v3051, %v3103
        %v3120 = vadd.f32 %v3052, %v3104
        %v3121 = vadd.f32 %v3053, %v3105
        %v3122 = vadd.f32 %v3054, %v3106
        %v3123 = vadd.f32 %v3055, %v3107
        %v3124 = vadd.f32 %v3056, %v3108
        %v3125 = vadd.f32 %v3057, %v3109
        %v3126 = vadd.f32 %v3058, %v3110
        %v3127 = vadd.f32 %v3059, %v3111
        %v3128 = vadd.f32 %v3060, %v3112
        %v3129 = vadd.f32 %v3061, %v3113
        %v3130 = vadd.f32 %v3062, %v3114
        %v3131 = vadd.f32 %v3063, %v3115
        %v3132 = vadd.f32 %v3064, %v3116
        %v3133 = vadd.f32 %v3065, %v3117
        %v3134 = vadd.f32 %v3066, %v3118
        %v3135 = vadd.f32 %v3119, %v438
        %v3136 = vadd.f32 %v3120, %v438
        %v3137 = vadd.f32 %v3121, %v438
        %v3138 = vadd.f32 %v3122, %v438
        %v3139 = vadd.f32 %v3123, %v442
        %v3140 = vadd.f32 %v3124, %v442
        %v3141 = vadd.f32 %v3125, %v442
        %v3142 = vadd.f32 %v3126, %v442
        %v3143 = vadd.f32 %v3127, %v446
        %v3144 = vadd.f32 %v3128, %v446
        %v3145 = vadd.f32 %v3129, %v446
        %v3146 = vadd.f32 %v3130, %v446
        %v3147 = vadd.f32 %v3131, %v450
        %v3148 = vadd.f32 %v3132, %v450
        %v3149 = vadd.f32 %v3133, %v450
        %v3150 = vadd.f32 %v3134, %v450
        %v3151 = vand.u32 2147483647, %v3135
        %vm3152 = vcmp.le.f32.partialorder %v3151, 0.7853982
        %vm3153 = vcmp.lt.s32.totalorder %v3135, 0
        %v3154 = vand.u32 %v3135, 2139095040
        %v3155 = vshrl.u32 %v3154, 23
        %v3156 = vsub.s32 %v3155, 127
        %v3157 = vand.u32 2147483647, %v3135
        %v3158 = vand.u32 %v3157, 8388607
        %v3159 = vor.u32 %v3158, 8388608
        %v3160 = vsub.s32 0, %v3159
        %v3161 = vadd.s32 %v3156, 1
        %vm3162 = vcmp.gt.s32.totalorder %v3161, 0
        %v3163 = vsel %vm3162, %v3161, 0
        %v3164 = vshrl.u32 %v3163, 5
        %v3165 = vand.u32 %v3163, 31
        %v3166 = vsub.s32 32, %v3165
        %v3167 = vshrl.u32 683565275, %v3166
        %v3168 = vshll.u32 683565275, %v3165
        %v3169 = vshrl.u32 2475754826, %v3166
        %v3170 = vor.u32 %v3168, %v3169
        %v3171 = vshll.u32 2475754826, %v3165
        %v3172 = vshrl.u32 2131351028, %v3166
        %v3173 = vor.u32 %v3171, %v3172
        %v3174 = vshll.u32 2131351028, %v3165
        %v3175 = vshrl.u32 2102212464, %v3166
        %v3176 = vor.u32 %v3174, %v3175
        %v3177 = vshll.u32 2102212464, %v3165
        %v3178 = vshrl.u32 920167782, %v3166
        %v3179 = vor.u32 %v3177, %v3178
        %v3180 = vshll.u32 920167782, %v3165
        %v3181 = vshrl.u32 1326507024, %v3166
        %v3182 = vor.u32 %v3180, %v3181
        %vm3183 = vcmp.lt.s32.totalorder %v3164, 1
        %vm3184 = vcmp.lt.s32.totalorder %v3164, 2
        %vm3185 = vcmp.lt.s32.totalorder %v3164, 3
        %vm3186 = vcmp.lt.s32.totalorder %v3164, 4
        %v3187 = vsel %vm3183, %v3167, %v3170
        %v3188 = vsel %vm3186, %v3176, 2102212464
        %v3189 = vsel %vm3185, %v3173, %v3188
        %v3190 = vsel %vm3184, %v3187, %v3189
        %v3191 = vsel %vm3183, %v3170, %v3173
        %v3192 = vsel %vm3186, %v3179, 920167782
        %v3193 = vsel %vm3185, %v3176, %v3192
        %v3194 = vsel %vm3184, %v3191, %v3193
        %v3195 = vsel %vm3183, %v3173, %v3176
        %v3196 = vsel %vm3186, %v3182, 1326507024
        %v3197 = vsel %vm3185, %v3179, %v3196
        %v3198 = vsel %vm3184, %v3195, %v3197
        %v3199 = vshll.u32 %v3159, 8
        %v3200 = vmul.u32.u64.compose %v3199, %v3198
        %v3201 = vextract.low.u32 %v3200
        %v3202 = vextract.high.u32 %v3200
        %v3203 = vmul.u32.u64.compose %v3199, %v3194
        %v3204 = vextract.low.u32 %v3203
        %v3205 = vextract.high.u32 %v3203
        %v3206 = vmul.u32 %v3199, %v3190
        %v3207 = vadd.s32 %v3202, %v3204
        %vm3208 = vc.u32 %v3202, %v3204
        %v3209 = vadd.s32 %v3205, 1
        %v3210 = vsel %vm3208, %v3209, %v3205
        %v3211 = vadd.s32 %v3206, %v3210
        %v3212 = vadd.s32 %v3211, 536870912
        %v3213 = vshrl.u32 %v3212, 30
        %v3214 = vshll.u32 %v3213, 30
        %v3215 = vsub.s32 %v3211, %v3214
        %vm3216 = vcmp.lt.s32.totalorder %v3215, 0
        %v3217 = vsub.s32 0, %v3215
        %v3218 = vsel %vm3216, %v3217, %v3215
        %v3219 = vclz %v3218
        %v3220 = vsub.s32 %v3219, 2
        %vm3221 = vcmp.gt.s32.totalorder 0, %v3220
        %v3222 = vsel %vm3221, 0, %v3220
        %v3223 = vsub.s32 32, %v3222
        %v3224 = vshll.u32 %v3215, %v3222
        %v3225 = vshrl.u32 %v3207, %v3223
        %v3226 = vor.u32 %v3224, %v3225
        %v3227 = vsub.s32 4294967266, %v3222
        %v3228 = vadd.s32 %v3227, 127
        %v3229 = vshll.u32 %v3228, 23
        %v3230 = vor.u32 4788187, %v3229
        %v3231 = vand.u32 2147483647, %v3230
        %v3233 = vcvt.s32.f32 %v3226
        %v3234 = vmul.f32 %v3233, %v3231
        %v3235 = vxor.u32 %v3234, 2147483648
        %v3236 = vsel %vm3153, %v3235, %v3234
        %v3237 = vsub.s32 4, %v3213
        %v3238 = vsel %vm3153, %v3237, %v3213
        %v3239 = vsel %vm3152, %v3135, %v3236
        %v3240 = vsel %vm3152, 0, %v3238
        %v3241 = vcosq.f32.pop %v3239
        %v3242 = vsinq.f32.pop %v3239
        %vm3243 = vweird.f32 %v3135
        %v3244 = vadd.s32 %v3240, 3
        %v3245 = vand.u32 %v3244, 3
        %vm3246 = vcmp.lt.s32.totalorder %v3245, 2
        %vm3247 = vcmp.eq.s32.totalorder %v3245, 0
        %v3248 = vxor.u32 %v3242, 2147483648
        %v3249 = vsel %vm3247, %v3241, %v3248
        %vm3250 = vcmp.eq.s32.totalorder %v3245, 2
        %v3251 = vxor.u32 %v3241, 2147483648
        %v3252 = vsel %vm3250, %v3251, %v3242
        %v3253 = vsel %vm3246, %v3249, %v3252
        %v3254 = vsel %vm3243, nan, %v3253
        %v3255 = vand.u32 2147483647, %v3136
        %vm3256 = vcmp.le.f32.partialorder %v3255, 0.7853982
        %vm3257 = vcmp.lt.s32.totalorder %v3136, 0
        %v3258 = vand.u32 %v3136, 2139095040
        %v3259 = vshrl.u32 %v3258, 23
        %v3260 = vsub.s32 %v3259, 127
        %v3261 = vand.u32 2147483647, %v3136
        %v3262 = vand.u32 %v3261, 8388607
        %v3263 = vor.u32 %v3262, 8388608
        %v3264 = vsub.s32 0, %v3263
        %v3265 = vadd.s32 %v3260, 1
        %vm3266 = vcmp.gt.s32.totalorder %v3265, 0
        %v3267 = vsel %vm3266, %v3265, 0
        %v3268 = vshrl.u32 %v3267, 5
        %v3269 = vand.u32 %v3267, 31
        %v3270 = vsub.s32 32, %v3269
        %v3271 = vshrl.u32 683565275, %v3270
        %v3272 = vshll.u32 683565275, %v3269
        %v3273 = vshrl.u32 2475754826, %v3270
        %v3274 = vor.u32 %v3272, %v3273
        %v3275 = vshll.u32 2475754826, %v3269
        %v3276 = vshrl.u32 2131351028, %v3270
        %v3277 = vor.u32 %v3275, %v3276
        %v3278 = vshll.u32 2131351028, %v3269
        %v3279 = vshrl.u32 2102212464, %v3270
        %v3280 = vor.u32 %v3278, %v3279
        %v3281 = vshll.u32 2102212464, %v3269
        %v3282 = vshrl.u32 920167782, %v3270
        %v3283 = vor.u32 %v3281, %v3282
        %v3284 = vshll.u32 920167782, %v3269
        %v3285 = vshrl.u32 1326507024, %v3270
        %v3286 = vor.u32 %v3284, %v3285
        %vm3287 = vcmp.lt.s32.totalorder %v3268, 1
        %vm3288 = vcmp.lt.s32.totalorder %v3268, 2
        %vm3289 = vcmp.lt.s32.totalorder %v3268, 3
        %vm3290 = vcmp.lt.s32.totalorder %v3268, 4
        %v3291 = vsel %vm3287, %v3271, %v3274
        %v3292 = vsel %vm3290, %v3280, 2102212464
        %v3293 = vsel %vm3289, %v3277, %v3292
        %v3294 = vsel %vm3288, %v3291, %v3293
        %v3295 = vsel %vm3287, %v3274, %v3277
        %v3296 = vsel %vm3290, %v3283, 920167782
        %v3297 = vsel %vm3289, %v3280, %v3296
        %v3298 = vsel %vm3288, %v3295, %v3297
        %v3299 = vsel %vm3287, %v3277, %v3280
        %v3300 = vsel %vm3290, %v3286, 1326507024
        %v3301 = vsel %vm3289, %v3283, %v3300
        %v3302 = vsel %vm3288, %v3299, %v3301
        %v3303 = vshll.u32 %v3263, 8
        %v3304 = vmul.u32.u64.compose %v3303, %v3302
        %v3305 = vextract.low.u32 %v3304
        %v3306 = vextract.high.u32 %v3304
        %v3307 = vmul.u32.u64.compose %v3303, %v3298
        %v3308 = vextract.low.u32 %v3307
        %v3309 = vextract.high.u32 %v3307
        %v3310 = vmul.u32 %v3303, %v3294
        %v3311 = vadd.s32 %v3306, %v3308
        %vm3312 = vc.u32 %v3306, %v3308
        %v3313 = vadd.s32 %v3309, 1
        %v3314 = vsel %vm3312, %v3313, %v3309
        %v3315 = vadd.s32 %v3310, %v3314
        %v3316 = vadd.s32 %v3315, 536870912
        %v3317 = vshrl.u32 %v3316, 30
        %v3318 = vshll.u32 %v3317, 30
        %v3319 = vsub.s32 %v3315, %v3318
        %vm3320 = vcmp.lt.s32.totalorder %v3319, 0
        %v3321 = vsub.s32 0, %v3319
        %v3322 = vsel %vm3320, %v3321, %v3319
        %v3323 = vclz %v3322
        %v3324 = vsub.s32 %v3323, 2
        %vm3325 = vcmp.gt.s32.totalorder 0, %v3324
        %v3326 = vsel %vm3325, 0, %v3324
        %v3327 = vsub.s32 32, %v3326
        %v3328 = vshll.u32 %v3319, %v3326
        %v3329 = vshrl.u32 %v3311, %v3327
        %v3330 = vor.u32 %v3328, %v3329
        %v3331 = vsub.s32 4294967266, %v3326
        %v3332 = vadd.s32 %v3331, 127
        %v3333 = vshll.u32 %v3332, 23
        %v3334 = vor.u32 4788187, %v3333
        %v3335 = vand.u32 2147483647, %v3334
        %v3337 = vcvt.s32.f32 %v3330
        %v3338 = vmul.f32 %v3337, %v3335
        %v3339 = vxor.u32 %v3338, 2147483648
        %v3340 = vsel %vm3257, %v3339, %v3338
        %v3341 = vsub.s32 4, %v3317
        %v3342 = vsel %vm3257, %v3341, %v3317
        %v3343 = vsel %vm3256, %v3136, %v3340
        %v3344 = vsel %vm3256, 0, %v3342
        %v3345 = vcosq.f32.pop %v3343
        %v3346 = vsinq.f32.pop %v3343
        %vm3347 = vweird.f32 %v3136
        %v3348 = vadd.s32 %v3344, 3
        %v3349 = vand.u32 %v3348, 3
        %vm3350 = vcmp.lt.s32.totalorder %v3349, 2
        %vm3351 = vcmp.eq.s32.totalorder %v3349, 0
        %v3352 = vxor.u32 %v3346, 2147483648
        %v3353 = vsel %vm3351, %v3345, %v3352
        %vm3354 = vcmp.eq.s32.totalorder %v3349, 2
        %v3355 = vxor.u32 %v3345, 2147483648
        %v3356 = vsel %vm3354, %v3355, %v3346
        %v3357 = vsel %vm3350, %v3353, %v3356
        %v3358 = vsel %vm3347, nan, %v3357
        %v3359 = vand.u32 2147483647, %v3137
        %vm3360 = vcmp.le.f32.partialorder %v3359, 0.7853982
        %vm3361 = vcmp.lt.s32.totalorder %v3137, 0
        %v3362 = vand.u32 %v3137, 2139095040
        %v3363 = vshrl.u32 %v3362, 23
        %v3364 = vsub.s32 %v3363, 127
        %v3365 = vand.u32 2147483647, %v3137
        %v3366 = vand.u32 %v3365, 8388607
        %v3367 = vor.u32 %v3366, 8388608
        %v3368 = vsub.s32 0, %v3367
        %v3369 = vadd.s32 %v3364, 1
        %vm3370 = vcmp.gt.s32.totalorder %v3369, 0
        %v3371 = vsel %vm3370, %v3369, 0
        %v3372 = vshrl.u32 %v3371, 5
        %v3373 = vand.u32 %v3371, 31
        %v3374 = vsub.s32 32, %v3373
        %v3375 = vshrl.u32 683565275, %v3374
        %v3376 = vshll.u32 683565275, %v3373
        %v3377 = vshrl.u32 2475754826, %v3374
        %v3378 = vor.u32 %v3376, %v3377
        %v3379 = vshll.u32 2475754826, %v3373
        %v3380 = vshrl.u32 2131351028, %v3374
        %v3381 = vor.u32 %v3379, %v3380
        %v3382 = vshll.u32 2131351028, %v3373
        %v3383 = vshrl.u32 2102212464, %v3374
        %v3384 = vor.u32 %v3382, %v3383
        %v3385 = vshll.u32 2102212464, %v3373
        %v3386 = vshrl.u32 920167782, %v3374
        %v3387 = vor.u32 %v3385, %v3386
        %v3388 = vshll.u32 920167782, %v3373
        %v3389 = vshrl.u32 1326507024, %v3374
        %v3390 = vor.u32 %v3388, %v3389
        %vm3391 = vcmp.lt.s32.totalorder %v3372, 1
        %vm3392 = vcmp.lt.s32.totalorder %v3372, 2
        %vm3393 = vcmp.lt.s32.totalorder %v3372, 3
        %vm3394 = vcmp.lt.s32.totalorder %v3372, 4
        %v3395 = vsel %vm3391, %v3375, %v3378
        %v3396 = vsel %vm3394, %v3384, 2102212464
        %v3397 = vsel %vm3393, %v3381, %v3396
        %v3398 = vsel %vm3392, %v3395, %v3397
        %v3399 = vsel %vm3391, %v3378, %v3381
        %v3400 = vsel %vm3394, %v3387, 920167782
        %v3401 = vsel %vm3393, %v3384, %v3400
        %v3402 = vsel %vm3392, %v3399, %v3401
        %v3403 = vsel %vm3391, %v3381, %v3384
        %v3404 = vsel %vm3394, %v3390, 1326507024
        %v3405 = vsel %vm3393, %v3387, %v3404
        %v3406 = vsel %vm3392, %v3403, %v3405
        %v3407 = vshll.u32 %v3367, 8
        %v3408 = vmul.u32.u64.compose %v3407, %v3406
        %v3409 = vextract.low.u32 %v3408
        %v3410 = vextract.high.u32 %v3408
        %v3411 = vmul.u32.u64.compose %v3407, %v3402
        %v3412 = vextract.low.u32 %v3411
        %v3413 = vextract.high.u32 %v3411
        %v3414 = vmul.u32 %v3407, %v3398
        %v3415 = vadd.s32 %v3410, %v3412
        %vm3416 = vc.u32 %v3410, %v3412
        %v3417 = vadd.s32 %v3413, 1
        %v3418 = vsel %vm3416, %v3417, %v3413
        %v3419 = vadd.s32 %v3414, %v3418
        %v3420 = vadd.s32 %v3419, 536870912
        %v3421 = vshrl.u32 %v3420, 30
        %v3422 = vshll.u32 %v3421, 30
        %v3423 = vsub.s32 %v3419, %v3422
        %vm3424 = vcmp.lt.s32.totalorder %v3423, 0
        %v3425 = vsub.s32 0, %v3423
        %v3426 = vsel %vm3424, %v3425, %v3423
        %v3427 = vclz %v3426
        %v3428 = vsub.s32 %v3427, 2
        %vm3429 = vcmp.gt.s32.totalorder 0, %v3428
        %v3430 = vsel %vm3429, 0, %v3428
        %v3431 = vsub.s32 32, %v3430
        %v3432 = vshll.u32 %v3423, %v3430
        %v3433 = vshrl.u32 %v3415, %v3431
        %v3434 = vor.u32 %v3432, %v3433
        %v3435 = vsub.s32 4294967266, %v3430
        %v3436 = vadd.s32 %v3435, 127
        %v3437 = vshll.u32 %v3436, 23
        %v3438 = vor.u32 4788187, %v3437
        %v3439 = vand.u32 2147483647, %v3438
        %v3441 = vcvt.s32.f32 %v3434
        %v3442 = vmul.f32 %v3441, %v3439
        %v3443 = vxor.u32 %v3442, 2147483648
        %v3444 = vsel %vm3361, %v3443, %v3442
        %v3445 = vsub.s32 4, %v3421
        %v3446 = vsel %vm3361, %v3445, %v3421
        %v3447 = vsel %vm3360, %v3137, %v3444
        %v3448 = vsel %vm3360, 0, %v3446
        %v3449 = vcosq.f32.pop %v3447
        %v3450 = vsinq.f32.pop %v3447
        %vm3451 = vweird.f32 %v3137
        %v3452 = vadd.s32 %v3448, 3
        %v3453 = vand.u32 %v3452, 3
        %vm3454 = vcmp.lt.s32.totalorder %v3453, 2
        %vm3455 = vcmp.eq.s32.totalorder %v3453, 0
        %v3456 = vxor.u32 %v3450, 2147483648
        %v3457 = vsel %vm3455, %v3449, %v3456
        %vm3458 = vcmp.eq.s32.totalorder %v3453, 2
        %v3459 = vxor.u32 %v3449, 2147483648
        %v3460 = vsel %vm3458, %v3459, %v3450
        %v3461 = vsel %vm3454, %v3457, %v3460
        %v3462 = vsel %vm3451, nan, %v3461
        %v3463 = vand.u32 2147483647, %v3138
        %vm3464 = vcmp.le.f32.partialorder %v3463, 0.7853982
        %vm3465 = vcmp.lt.s32.totalorder %v3138, 0
        %v3466 = vand.u32 %v3138, 2139095040
        %v3467 = vshrl.u32 %v3466, 23
        %v3468 = vsub.s32 %v3467, 127
        %v3469 = vand.u32 2147483647, %v3138
        %v3470 = vand.u32 %v3469, 8388607
        %v3471 = vor.u32 %v3470, 8388608
        %v3472 = vsub.s32 0, %v3471
        %v3473 = vadd.s32 %v3468, 1
        %vm3474 = vcmp.gt.s32.totalorder %v3473, 0
        %v3475 = vsel %vm3474, %v3473, 0
        %v3476 = vshrl.u32 %v3475, 5
        %v3477 = vand.u32 %v3475, 31
        %v3478 = vsub.s32 32, %v3477
        %v3479 = vshrl.u32 683565275, %v3478
        %v3480 = vshll.u32 683565275, %v3477
        %v3481 = vshrl.u32 2475754826, %v3478
        %v3482 = vor.u32 %v3480, %v3481
        %v3483 = vshll.u32 2475754826, %v3477
        %v3484 = vshrl.u32 2131351028, %v3478
        %v3485 = vor.u32 %v3483, %v3484
        %v3486 = vshll.u32 2131351028, %v3477
        %v3487 = vshrl.u32 2102212464, %v3478
        %v3488 = vor.u32 %v3486, %v3487
        %v3489 = vshll.u32 2102212464, %v3477
        %v3490 = vshrl.u32 920167782, %v3478
        %v3491 = vor.u32 %v3489, %v3490
        %v3492 = vshll.u32 920167782, %v3477
        %v3493 = vshrl.u32 1326507024, %v3478
        %v3494 = vor.u32 %v3492, %v3493
        %vm3495 = vcmp.lt.s32.totalorder %v3476, 1
        %vm3496 = vcmp.lt.s32.totalorder %v3476, 2
        %vm3497 = vcmp.lt.s32.totalorder %v3476, 3
        %vm3498 = vcmp.lt.s32.totalorder %v3476, 4
        %v3499 = vsel %vm3495, %v3479, %v3482
        %v3500 = vsel %vm3498, %v3488, 2102212464
        %v3501 = vsel %vm3497, %v3485, %v3500
        %v3502 = vsel %vm3496, %v3499, %v3501
        %v3503 = vsel %vm3495, %v3482, %v3485
        %v3504 = vsel %vm3498, %v3491, 920167782
        %v3505 = vsel %vm3497, %v3488, %v3504
        %v3506 = vsel %vm3496, %v3503, %v3505
        %v3507 = vsel %vm3495, %v3485, %v3488
        %v3508 = vsel %vm3498, %v3494, 1326507024
        %v3509 = vsel %vm3497, %v3491, %v3508
        %v3510 = vsel %vm3496, %v3507, %v3509
        %v3511 = vshll.u32 %v3471, 8
        %v3512 = vmul.u32.u64.compose %v3511, %v3510
        %v3513 = vextract.low.u32 %v3512
        %v3514 = vextract.high.u32 %v3512
        %v3515 = vmul.u32.u64.compose %v3511, %v3506
        %v3516 = vextract.low.u32 %v3515
        %v3517 = vextract.high.u32 %v3515
        %v3518 = vmul.u32 %v3511, %v3502
        %v3519 = vadd.s32 %v3514, %v3516
        %vm3520 = vc.u32 %v3514, %v3516
        %v3521 = vadd.s32 %v3517, 1
        %v3522 = vsel %vm3520, %v3521, %v3517
        %v3523 = vadd.s32 %v3518, %v3522
        %v3524 = vadd.s32 %v3523, 536870912
        %v3525 = vshrl.u32 %v3524, 30
        %v3526 = vshll.u32 %v3525, 30
        %v3527 = vsub.s32 %v3523, %v3526
        %vm3528 = vcmp.lt.s32.totalorder %v3527, 0
        %v3529 = vsub.s32 0, %v3527
        %v3530 = vsel %vm3528, %v3529, %v3527
        %v3531 = vclz %v3530
        %v3532 = vsub.s32 %v3531, 2
        %vm3533 = vcmp.gt.s32.totalorder 0, %v3532
        %v3534 = vsel %vm3533, 0, %v3532
        %v3535 = vsub.s32 32, %v3534
        %v3536 = vshll.u32 %v3527, %v3534
        %v3537 = vshrl.u32 %v3519, %v3535
        %v3538 = vor.u32 %v3536, %v3537
        %v3539 = vsub.s32 4294967266, %v3534
        %v3540 = vadd.s32 %v3539, 127
        %v3541 = vshll.u32 %v3540, 23
        %v3542 = vor.u32 4788187, %v3541
        %v3543 = vand.u32 2147483647, %v3542
        %v3545 = vcvt.s32.f32 %v3538
        %v3546 = vmul.f32 %v3545, %v3543
        %v3547 = vxor.u32 %v3546, 2147483648
        %v3548 = vsel %vm3465, %v3547, %v3546
        %v3549 = vsub.s32 4, %v3525
        %v3550 = vsel %vm3465, %v3549, %v3525
        %v3551 = vsel %vm3464, %v3138, %v3548
        %v3552 = vsel %vm3464, 0, %v3550
        %v3553 = vcosq.f32.pop %v3551
        %v3554 = vsinq.f32.pop %v3551
        %vm3555 = vweird.f32 %v3138
        %v3556 = vadd.s32 %v3552, 3
        %v3557 = vand.u32 %v3556, 3
        %vm3558 = vcmp.lt.s32.totalorder %v3557, 2
        %vm3559 = vcmp.eq.s32.totalorder %v3557, 0
        %v3560 = vxor.u32 %v3554, 2147483648
        %v3561 = vsel %vm3559, %v3553, %v3560
        %vm3562 = vcmp.eq.s32.totalorder %v3557, 2
        %v3563 = vxor.u32 %v3553, 2147483648
        %v3564 = vsel %vm3562, %v3563, %v3554
        %v3565 = vsel %vm3558, %v3561, %v3564
        %v3566 = vsel %vm3555, nan, %v3565
        %v3567 = vand.u32 2147483647, %v3139
        %vm3568 = vcmp.le.f32.partialorder %v3567, 0.7853982
        %vm3569 = vcmp.lt.s32.totalorder %v3139, 0
        %v3570 = vand.u32 %v3139, 2139095040
        %v3571 = vshrl.u32 %v3570, 23
        %v3572 = vsub.s32 %v3571, 127
        %v3573 = vand.u32 2147483647, %v3139
        %v3574 = vand.u32 %v3573, 8388607
        %v3575 = vor.u32 %v3574, 8388608
        %v3576 = vsub.s32 0, %v3575
        %v3577 = vadd.s32 %v3572, 1
        %vm3578 = vcmp.gt.s32.totalorder %v3577, 0
        %v3579 = vsel %vm3578, %v3577, 0
        %v3580 = vshrl.u32 %v3579, 5
        %v3581 = vand.u32 %v3579, 31
        %v3582 = vsub.s32 32, %v3581
        %v3583 = vshrl.u32 683565275, %v3582
        %v3584 = vshll.u32 683565275, %v3581
        %v3585 = vshrl.u32 2475754826, %v3582
        %v3586 = vor.u32 %v3584, %v3585
        %v3587 = vshll.u32 2475754826, %v3581
        %v3588 = vshrl.u32 2131351028, %v3582
        %v3589 = vor.u32 %v3587, %v3588
        %v3590 = vshll.u32 2131351028, %v3581
        %v3591 = vshrl.u32 2102212464, %v3582
        %v3592 = vor.u32 %v3590, %v3591
        %v3593 = vshll.u32 2102212464, %v3581
        %v3594 = vshrl.u32 920167782, %v3582
        %v3595 = vor.u32 %v3593, %v3594
        %v3596 = vshll.u32 920167782, %v3581
        %v3597 = vshrl.u32 1326507024, %v3582
        %v3598 = vor.u32 %v3596, %v3597
        %vm3599 = vcmp.lt.s32.totalorder %v3580, 1
        %vm3600 = vcmp.lt.s32.totalorder %v3580, 2
        %vm3601 = vcmp.lt.s32.totalorder %v3580, 3
        %vm3602 = vcmp.lt.s32.totalorder %v3580, 4
        %v3603 = vsel %vm3599, %v3583, %v3586
        %v3604 = vsel %vm3602, %v3592, 2102212464
        %v3605 = vsel %vm3601, %v3589, %v3604
        %v3606 = vsel %vm3600, %v3603, %v3605
        %v3607 = vsel %vm3599, %v3586, %v3589
        %v3608 = vsel %vm3602, %v3595, 920167782
        %v3609 = vsel %vm3601, %v3592, %v3608
        %v3610 = vsel %vm3600, %v3607, %v3609
        %v3611 = vsel %vm3599, %v3589, %v3592
        %v3612 = vsel %vm3602, %v3598, 1326507024
        %v3613 = vsel %vm3601, %v3595, %v3612
        %v3614 = vsel %vm3600, %v3611, %v3613
        %v3615 = vshll.u32 %v3575, 8
        %v3616 = vmul.u32.u64.compose %v3615, %v3614
        %v3617 = vextract.low.u32 %v3616
        %v3618 = vextract.high.u32 %v3616
        %v3619 = vmul.u32.u64.compose %v3615, %v3610
        %v3620 = vextract.low.u32 %v3619
        %v3621 = vextract.high.u32 %v3619
        %v3622 = vmul.u32 %v3615, %v3606
        %v3623 = vadd.s32 %v3618, %v3620
        %vm3624 = vc.u32 %v3618, %v3620
        %v3625 = vadd.s32 %v3621, 1
        %v3626 = vsel %vm3624, %v3625, %v3621
        %v3627 = vadd.s32 %v3622, %v3626
        %v3628 = vadd.s32 %v3627, 536870912
        %v3629 = vshrl.u32 %v3628, 30
        %v3630 = vshll.u32 %v3629, 30
        %v3631 = vsub.s32 %v3627, %v3630
        %vm3632 = vcmp.lt.s32.totalorder %v3631, 0
        %v3633 = vsub.s32 0, %v3631
        %v3634 = vsel %vm3632, %v3633, %v3631
        %v3635 = vclz %v3634
        %v3636 = vsub.s32 %v3635, 2
        %vm3637 = vcmp.gt.s32.totalorder 0, %v3636
        %v3638 = vsel %vm3637, 0, %v3636
        %v3639 = vsub.s32 32, %v3638
        %v3640 = vshll.u32 %v3631, %v3638
        %v3641 = vshrl.u32 %v3623, %v3639
        %v3642 = vor.u32 %v3640, %v3641
        %v3643 = vsub.s32 4294967266, %v3638
        %v3644 = vadd.s32 %v3643, 127
        %v3645 = vshll.u32 %v3644, 23
        %v3646 = vor.u32 4788187, %v3645
        %v3647 = vand.u32 2147483647, %v3646
        %v3649 = vcvt.s32.f32 %v3642
        %v3650 = vmul.f32 %v3649, %v3647
        %v3651 = vxor.u32 %v3650, 2147483648
        %v3652 = vsel %vm3569, %v3651, %v3650
        %v3653 = vsub.s32 4, %v3629
        %v3654 = vsel %vm3569, %v3653, %v3629
        %v3655 = vsel %vm3568, %v3139, %v3652
        %v3656 = vsel %vm3568, 0, %v3654
        %v3657 = vcosq.f32.pop %v3655
        %v3658 = vsinq.f32.pop %v3655
        %vm3659 = vweird.f32 %v3139
        %v3660 = vadd.s32 %v3656, 3
        %v3661 = vand.u32 %v3660, 3
        %vm3662 = vcmp.lt.s32.totalorder %v3661, 2
        %vm3663 = vcmp.eq.s32.totalorder %v3661, 0
        %v3664 = vxor.u32 %v3658, 2147483648
        %v3665 = vsel %vm3663, %v3657, %v3664
        %vm3666 = vcmp.eq.s32.totalorder %v3661, 2
        %v3667 = vxor.u32 %v3657, 2147483648
        %v3668 = vsel %vm3666, %v3667, %v3658
        %v3669 = vsel %vm3662, %v3665, %v3668
        %v3670 = vsel %vm3659, nan, %v3669
        %v3671 = vand.u32 2147483647, %v3140
        %vm3672 = vcmp.le.f32.partialorder %v3671, 0.7853982
        %vm3673 = vcmp.lt.s32.totalorder %v3140, 0
        %v3674 = vand.u32 %v3140, 2139095040
        %v3675 = vshrl.u32 %v3674, 23
        %v3676 = vsub.s32 %v3675, 127
        %v3677 = vand.u32 2147483647, %v3140
        %v3678 = vand.u32 %v3677, 8388607
        %v3679 = vor.u32 %v3678, 8388608
        %v3680 = vsub.s32 0, %v3679
        %v3681 = vadd.s32 %v3676, 1
        %vm3682 = vcmp.gt.s32.totalorder %v3681, 0
        %v3683 = vsel %vm3682, %v3681, 0
        %v3684 = vshrl.u32 %v3683, 5
        %v3685 = vand.u32 %v3683, 31
        %v3686 = vsub.s32 32, %v3685
        %v3687 = vshrl.u32 683565275, %v3686
        %v3688 = vshll.u32 683565275, %v3685
        %v3689 = vshrl.u32 2475754826, %v3686
        %v3690 = vor.u32 %v3688, %v3689
        %v3691 = vshll.u32 2475754826, %v3685
        %v3692 = vshrl.u32 2131351028, %v3686
        %v3693 = vor.u32 %v3691, %v3692
        %v3694 = vshll.u32 2131351028, %v3685
        %v3695 = vshrl.u32 2102212464, %v3686
        %v3696 = vor.u32 %v3694, %v3695
        %v3697 = vshll.u32 2102212464, %v3685
        %v3698 = vshrl.u32 920167782, %v3686
        %v3699 = vor.u32 %v3697, %v3698
        %v3700 = vshll.u32 920167782, %v3685
        %v3701 = vshrl.u32 1326507024, %v3686
        %v3702 = vor.u32 %v3700, %v3701
        %vm3703 = vcmp.lt.s32.totalorder %v3684, 1
        %vm3704 = vcmp.lt.s32.totalorder %v3684, 2
        %vm3705 = vcmp.lt.s32.totalorder %v3684, 3
        %vm3706 = vcmp.lt.s32.totalorder %v3684, 4
        %v3707 = vsel %vm3703, %v3687, %v3690
        %v3708 = vsel %vm3706, %v3696, 2102212464
        %v3709 = vsel %vm3705, %v3693, %v3708
        %v3710 = vsel %vm3704, %v3707, %v3709
        %v3711 = vsel %vm3703, %v3690, %v3693
        %v3712 = vsel %vm3706, %v3699, 920167782
        %v3713 = vsel %vm3705, %v3696, %v3712
        %v3714 = vsel %vm3704, %v3711, %v3713
        %v3715 = vsel %vm3703, %v3693, %v3696
        %v3716 = vsel %vm3706, %v3702, 1326507024
        %v3717 = vsel %vm3705, %v3699, %v3716
        %v3718 = vsel %vm3704, %v3715, %v3717
        %v3719 = vshll.u32 %v3679, 8
        %v3720 = vmul.u32.u64.compose %v3719, %v3718
        %v3721 = vextract.low.u32 %v3720
        %v3722 = vextract.high.u32 %v3720
        %v3723 = vmul.u32.u64.compose %v3719, %v3714
        %v3724 = vextract.low.u32 %v3723
        %v3725 = vextract.high.u32 %v3723
        %v3726 = vmul.u32 %v3719, %v3710
        %v3727 = vadd.s32 %v3722, %v3724
        %vm3728 = vc.u32 %v3722, %v3724
        %v3729 = vadd.s32 %v3725, 1
        %v3730 = vsel %vm3728, %v3729, %v3725
        %v3731 = vadd.s32 %v3726, %v3730
        %v3732 = vadd.s32 %v3731, 536870912
        %v3733 = vshrl.u32 %v3732, 30
        %v3734 = vshll.u32 %v3733, 30
        %v3735 = vsub.s32 %v3731, %v3734
        %vm3736 = vcmp.lt.s32.totalorder %v3735, 0
        %v3737 = vsub.s32 0, %v3735
        %v3738 = vsel %vm3736, %v3737, %v3735
        %v3739 = vclz %v3738
        %v3740 = vsub.s32 %v3739, 2
        %vm3741 = vcmp.gt.s32.totalorder 0, %v3740
        %v3742 = vsel %vm3741, 0, %v3740
        %v3743 = vsub.s32 32, %v3742
        %v3744 = vshll.u32 %v3735, %v3742
        %v3745 = vshrl.u32 %v3727, %v3743
        %v3746 = vor.u32 %v3744, %v3745
        %v3747 = vsub.s32 4294967266, %v3742
        %v3748 = vadd.s32 %v3747, 127
        %v3749 = vshll.u32 %v3748, 23
        %v3750 = vor.u32 4788187, %v3749
        %v3751 = vand.u32 2147483647, %v3750
        %v3753 = vcvt.s32.f32 %v3746
        %v3754 = vmul.f32 %v3753, %v3751
        %v3755 = vxor.u32 %v3754, 2147483648
        %v3756 = vsel %vm3673, %v3755, %v3754
        %v3757 = vsub.s32 4, %v3733
        %v3758 = vsel %vm3673, %v3757, %v3733
        %v3759 = vsel %vm3672, %v3140, %v3756
        %v3760 = vsel %vm3672, 0, %v3758
        %v3761 = vcosq.f32.pop %v3759
        %v3762 = vsinq.f32.pop %v3759
        %vm3763 = vweird.f32 %v3140
        %v3764 = vadd.s32 %v3760, 3
        %v3765 = vand.u32 %v3764, 3
        %vm3766 = vcmp.lt.s32.totalorder %v3765, 2
        %vm3767 = vcmp.eq.s32.totalorder %v3765, 0
        %v3768 = vxor.u32 %v3762, 2147483648
        %v3769 = vsel %vm3767, %v3761, %v3768
        %vm3770 = vcmp.eq.s32.totalorder %v3765, 2
        %v3771 = vxor.u32 %v3761, 2147483648
        %v3772 = vsel %vm3770, %v3771, %v3762
        %v3773 = vsel %vm3766, %v3769, %v3772
        %v3774 = vsel %vm3763, nan, %v3773
        %v3775 = vand.u32 2147483647, %v3141
        %vm3776 = vcmp.le.f32.partialorder %v3775, 0.7853982
        %vm3777 = vcmp.lt.s32.totalorder %v3141, 0
        %v3778 = vand.u32 %v3141, 2139095040
        %v3779 = vshrl.u32 %v3778, 23
        %v3780 = vsub.s32 %v3779, 127
        %v3781 = vand.u32 2147483647, %v3141
        %v3782 = vand.u32 %v3781, 8388607
        %v3783 = vor.u32 %v3782, 8388608
        %v3784 = vsub.s32 0, %v3783
        %v3785 = vadd.s32 %v3780, 1
        %vm3786 = vcmp.gt.s32.totalorder %v3785, 0
        %v3787 = vsel %vm3786, %v3785, 0
        %v3788 = vshrl.u32 %v3787, 5
        %v3789 = vand.u32 %v3787, 31
        %v3790 = vsub.s32 32, %v3789
        %v3791 = vshrl.u32 683565275, %v3790
        %v3792 = vshll.u32 683565275, %v3789
        %v3793 = vshrl.u32 2475754826, %v3790
        %v3794 = vor.u32 %v3792, %v3793
        %v3795 = vshll.u32 2475754826, %v3789
        %v3796 = vshrl.u32 2131351028, %v3790
        %v3797 = vor.u32 %v3795, %v3796
        %v3798 = vshll.u32 2131351028, %v3789
        %v3799 = vshrl.u32 2102212464, %v3790
        %v3800 = vor.u32 %v3798, %v3799
        %v3801 = vshll.u32 2102212464, %v3789
        %v3802 = vshrl.u32 920167782, %v3790
        %v3803 = vor.u32 %v3801, %v3802
        %v3804 = vshll.u32 920167782, %v3789
        %v3805 = vshrl.u32 1326507024, %v3790
        %v3806 = vor.u32 %v3804, %v3805
        %vm3807 = vcmp.lt.s32.totalorder %v3788, 1
        %vm3808 = vcmp.lt.s32.totalorder %v3788, 2
        %vm3809 = vcmp.lt.s32.totalorder %v3788, 3
        %vm3810 = vcmp.lt.s32.totalorder %v3788, 4
        %v3811 = vsel %vm3807, %v3791, %v3794
        %v3812 = vsel %vm3810, %v3800, 2102212464
        %v3813 = vsel %vm3809, %v3797, %v3812
        %v3814 = vsel %vm3808, %v3811, %v3813
        %v3815 = vsel %vm3807, %v3794, %v3797
        %v3816 = vsel %vm3810, %v3803, 920167782
        %v3817 = vsel %vm3809, %v3800, %v3816
        %v3818 = vsel %vm3808, %v3815, %v3817
        %v3819 = vsel %vm3807, %v3797, %v3800
        %v3820 = vsel %vm3810, %v3806, 1326507024
        %v3821 = vsel %vm3809, %v3803, %v3820
        %v3822 = vsel %vm3808, %v3819, %v3821
        %v3823 = vshll.u32 %v3783, 8
        %v3824 = vmul.u32.u64.compose %v3823, %v3822
        %v3825 = vextract.low.u32 %v3824
        %v3826 = vextract.high.u32 %v3824
        %v3827 = vmul.u32.u64.compose %v3823, %v3818
        %v3828 = vextract.low.u32 %v3827
        %v3829 = vextract.high.u32 %v3827
        %v3830 = vmul.u32 %v3823, %v3814
        %v3831 = vadd.s32 %v3826, %v3828
        %vm3832 = vc.u32 %v3826, %v3828
        %v3833 = vadd.s32 %v3829, 1
        %v3834 = vsel %vm3832, %v3833, %v3829
        %v3835 = vadd.s32 %v3830, %v3834
        %v3836 = vadd.s32 %v3835, 536870912
        %v3837 = vshrl.u32 %v3836, 30
        %v3838 = vshll.u32 %v3837, 30
        %v3839 = vsub.s32 %v3835, %v3838
        %vm3840 = vcmp.lt.s32.totalorder %v3839, 0
        %v3841 = vsub.s32 0, %v3839
        %v3842 = vsel %vm3840, %v3841, %v3839
        %v3843 = vclz %v3842
        %v3844 = vsub.s32 %v3843, 2
        %vm3845 = vcmp.gt.s32.totalorder 0, %v3844
        %v3846 = vsel %vm3845, 0, %v3844
        %v3847 = vsub.s32 32, %v3846
        %v3848 = vshll.u32 %v3839, %v3846
        %v3849 = vshrl.u32 %v3831, %v3847
        %v3850 = vor.u32 %v3848, %v3849
        %v3851 = vsub.s32 4294967266, %v3846
        %v3852 = vadd.s32 %v3851, 127
        %v3853 = vshll.u32 %v3852, 23
        %v3854 = vor.u32 4788187, %v3853
        %v3855 = vand.u32 2147483647, %v3854
        %v3857 = vcvt.s32.f32 %v3850
        %v3858 = vmul.f32 %v3857, %v3855
        %v3859 = vxor.u32 %v3858, 2147483648
        %v3860 = vsel %vm3777, %v3859, %v3858
        %v3861 = vsub.s32 4, %v3837
        %v3862 = vsel %vm3777, %v3861, %v3837
        %v3863 = vsel %vm3776, %v3141, %v3860
        %v3864 = vsel %vm3776, 0, %v3862
        %v3865 = vcosq.f32.pop %v3863
        %v3866 = vsinq.f32.pop %v3863
        %vm3867 = vweird.f32 %v3141
        %v3868 = vadd.s32 %v3864, 3
        %v3869 = vand.u32 %v3868, 3
        %vm3870 = vcmp.lt.s32.totalorder %v3869, 2
        %vm3871 = vcmp.eq.s32.totalorder %v3869, 0
        %v3872 = vxor.u32 %v3866, 2147483648
        %v3873 = vsel %vm3871, %v3865, %v3872
        %vm3874 = vcmp.eq.s32.totalorder %v3869, 2
        %v3875 = vxor.u32 %v3865, 2147483648
        %v3876 = vsel %vm3874, %v3875, %v3866
        %v3877 = vsel %vm3870, %v3873, %v3876
        %v3878 = vsel %vm3867, nan, %v3877
        %v3879 = vand.u32 2147483647, %v3142
        %vm3880 = vcmp.le.f32.partialorder %v3879, 0.7853982
        %vm3881 = vcmp.lt.s32.totalorder %v3142, 0
        %v3882 = vand.u32 %v3142, 2139095040
        %v3883 = vshrl.u32 %v3882, 23
        %v3884 = vsub.s32 %v3883, 127
        %v3885 = vand.u32 2147483647, %v3142
        %v3886 = vand.u32 %v3885, 8388607
        %v3887 = vor.u32 %v3886, 8388608
        %v3888 = vsub.s32 0, %v3887
        %v3889 = vadd.s32 %v3884, 1
        %vm3890 = vcmp.gt.s32.totalorder %v3889, 0
        %v3891 = vsel %vm3890, %v3889, 0
        %v3892 = vshrl.u32 %v3891, 5
        %v3893 = vand.u32 %v3891, 31
        %v3894 = vsub.s32 32, %v3893
        %v3895 = vshrl.u32 683565275, %v3894
        %v3896 = vshll.u32 683565275, %v3893
        %v3897 = vshrl.u32 2475754826, %v3894
        %v3898 = vor.u32 %v3896, %v3897
        %v3899 = vshll.u32 2475754826, %v3893
        %v3900 = vshrl.u32 2131351028, %v3894
        %v3901 = vor.u32 %v3899, %v3900
        %v3902 = vshll.u32 2131351028, %v3893
        %v3903 = vshrl.u32 2102212464, %v3894
        %v3904 = vor.u32 %v3902, %v3903
        %v3905 = vshll.u32 2102212464, %v3893
        %v3906 = vshrl.u32 920167782, %v3894
        %v3907 = vor.u32 %v3905, %v3906
        %v3908 = vshll.u32 920167782, %v3893
        %v3909 = vshrl.u32 1326507024, %v3894
        %v3910 = vor.u32 %v3908, %v3909
        %vm3911 = vcmp.lt.s32.totalorder %v3892, 1
        %vm3912 = vcmp.lt.s32.totalorder %v3892, 2
        %vm3913 = vcmp.lt.s32.totalorder %v3892, 3
        %vm3914 = vcmp.lt.s32.totalorder %v3892, 4
        %v3915 = vsel %vm3911, %v3895, %v3898
        %v3916 = vsel %vm3914, %v3904, 2102212464
        %v3917 = vsel %vm3913, %v3901, %v3916
        %v3918 = vsel %vm3912, %v3915, %v3917
        %v3919 = vsel %vm3911, %v3898, %v3901
        %v3920 = vsel %vm3914, %v3907, 920167782
        %v3921 = vsel %vm3913, %v3904, %v3920
        %v3922 = vsel %vm3912, %v3919, %v3921
        %v3923 = vsel %vm3911, %v3901, %v3904
        %v3924 = vsel %vm3914, %v3910, 1326507024
        %v3925 = vsel %vm3913, %v3907, %v3924
        %v3926 = vsel %vm3912, %v3923, %v3925
        %v3927 = vshll.u32 %v3887, 8
        %v3928 = vmul.u32.u64.compose %v3927, %v3926
        %v3929 = vextract.low.u32 %v3928
        %v3930 = vextract.high.u32 %v3928
        %v3931 = vmul.u32.u64.compose %v3927, %v3922
        %v3932 = vextract.low.u32 %v3931
        %v3933 = vextract.high.u32 %v3931
        %v3934 = vmul.u32 %v3927, %v3918
        %v3935 = vadd.s32 %v3930, %v3932
        %vm3936 = vc.u32 %v3930, %v3932
        %v3937 = vadd.s32 %v3933, 1
        %v3938 = vsel %vm3936, %v3937, %v3933
        %v3939 = vadd.s32 %v3934, %v3938
        %v3940 = vadd.s32 %v3939, 536870912
        %v3941 = vshrl.u32 %v3940, 30
        %v3942 = vshll.u32 %v3941, 30
        %v3943 = vsub.s32 %v3939, %v3942
        %vm3944 = vcmp.lt.s32.totalorder %v3943, 0
        %v3945 = vsub.s32 0, %v3943
        %v3946 = vsel %vm3944, %v3945, %v3943
        %v3947 = vclz %v3946
        %v3948 = vsub.s32 %v3947, 2
        %vm3949 = vcmp.gt.s32.totalorder 0, %v3948
        %v3950 = vsel %vm3949, 0, %v3948
        %v3951 = vsub.s32 32, %v3950
        %v3952 = vshll.u32 %v3943, %v3950
        %v3953 = vshrl.u32 %v3935, %v3951
        %v3954 = vor.u32 %v3952, %v3953
        %v3955 = vsub.s32 4294967266, %v3950
        %v3956 = vadd.s32 %v3955, 127
        %v3957 = vshll.u32 %v3956, 23
        %v3958 = vor.u32 4788187, %v3957
        %v3959 = vand.u32 2147483647, %v3958
        %v3961 = vcvt.s32.f32 %v3954
        %v3962 = vmul.f32 %v3961, %v3959
        %v3963 = vxor.u32 %v3962, 2147483648
        %v3964 = vsel %vm3881, %v3963, %v3962
        %v3965 = vsub.s32 4, %v3941
        %v3966 = vsel %vm3881, %v3965, %v3941
        %v3967 = vsel %vm3880, %v3142, %v3964
        %v3968 = vsel %vm3880, 0, %v3966
        %v3969 = vcosq.f32.pop %v3967
        %v3970 = vsinq.f32.pop %v3967
        %vm3971 = vweird.f32 %v3142
        %v3972 = vadd.s32 %v3968, 3
        %v3973 = vand.u32 %v3972, 3
        %vm3974 = vcmp.lt.s32.totalorder %v3973, 2
        %vm3975 = vcmp.eq.s32.totalorder %v3973, 0
        %v3976 = vxor.u32 %v3970, 2147483648
        %v3977 = vsel %vm3975, %v3969, %v3976
        %vm3978 = vcmp.eq.s32.totalorder %v3973, 2
        %v3979 = vxor.u32 %v3969, 2147483648
        %v3980 = vsel %vm3978, %v3979, %v3970
        %v3981 = vsel %vm3974, %v3977, %v3980
        %v3982 = vsel %vm3971, nan, %v3981
        %v3983 = vand.u32 2147483647, %v3143
        %vm3984 = vcmp.le.f32.partialorder %v3983, 0.7853982
        %vm3985 = vcmp.lt.s32.totalorder %v3143, 0
        %v3986 = vand.u32 %v3143, 2139095040
        %v3987 = vshrl.u32 %v3986, 23
        %v3988 = vsub.s32 %v3987, 127
        %v3989 = vand.u32 2147483647, %v3143
        %v3990 = vand.u32 %v3989, 8388607
        %v3991 = vor.u32 %v3990, 8388608
        %v3992 = vsub.s32 0, %v3991
        %v3993 = vadd.s32 %v3988, 1
        %vm3994 = vcmp.gt.s32.totalorder %v3993, 0
        %v3995 = vsel %vm3994, %v3993, 0
        %v3996 = vshrl.u32 %v3995, 5
        %v3997 = vand.u32 %v3995, 31
        %v3998 = vsub.s32 32, %v3997
        %v3999 = vshrl.u32 683565275, %v3998
        %v4000 = vshll.u32 683565275, %v3997
        %v4001 = vshrl.u32 2475754826, %v3998
        %v4002 = vor.u32 %v4000, %v4001
        %v4003 = vshll.u32 2475754826, %v3997
        %v4004 = vshrl.u32 2131351028, %v3998
        %v4005 = vor.u32 %v4003, %v4004
        %v4006 = vshll.u32 2131351028, %v3997
        %v4007 = vshrl.u32 2102212464, %v3998
        %v4008 = vor.u32 %v4006, %v4007
        %v4009 = vshll.u32 2102212464, %v3997
        %v4010 = vshrl.u32 920167782, %v3998
        %v4011 = vor.u32 %v4009, %v4010
        %v4012 = vshll.u32 920167782, %v3997
        %v4013 = vshrl.u32 1326507024, %v3998
        %v4014 = vor.u32 %v4012, %v4013
        %vm4015 = vcmp.lt.s32.totalorder %v3996, 1
        %vm4016 = vcmp.lt.s32.totalorder %v3996, 2
        %vm4017 = vcmp.lt.s32.totalorder %v3996, 3
        %vm4018 = vcmp.lt.s32.totalorder %v3996, 4
        %v4019 = vsel %vm4015, %v3999, %v4002
        %v4020 = vsel %vm4018, %v4008, 2102212464
        %v4021 = vsel %vm4017, %v4005, %v4020
        %v4022 = vsel %vm4016, %v4019, %v4021
        %v4023 = vsel %vm4015, %v4002, %v4005
        %v4024 = vsel %vm4018, %v4011, 920167782
        %v4025 = vsel %vm4017, %v4008, %v4024
        %v4026 = vsel %vm4016, %v4023, %v4025
        %v4027 = vsel %vm4015, %v4005, %v4008
        %v4028 = vsel %vm4018, %v4014, 1326507024
        %v4029 = vsel %vm4017, %v4011, %v4028
        %v4030 = vsel %vm4016, %v4027, %v4029
        %v4031 = vshll.u32 %v3991, 8
        %v4032 = vmul.u32.u64.compose %v4031, %v4030
        %v4033 = vextract.low.u32 %v4032
        %v4034 = vextract.high.u32 %v4032
        %v4035 = vmul.u32.u64.compose %v4031, %v4026
        %v4036 = vextract.low.u32 %v4035
        %v4037 = vextract.high.u32 %v4035
        %v4038 = vmul.u32 %v4031, %v4022
        %v4039 = vadd.s32 %v4034, %v4036
        %vm4040 = vc.u32 %v4034, %v4036
        %v4041 = vadd.s32 %v4037, 1
        %v4042 = vsel %vm4040, %v4041, %v4037
        %v4043 = vadd.s32 %v4038, %v4042
        %v4044 = vadd.s32 %v4043, 536870912
        %v4045 = vshrl.u32 %v4044, 30
        %v4046 = vshll.u32 %v4045, 30
        %v4047 = vsub.s32 %v4043, %v4046
        %vm4048 = vcmp.lt.s32.totalorder %v4047, 0
        %v4049 = vsub.s32 0, %v4047
        %v4050 = vsel %vm4048, %v4049, %v4047
        %v4051 = vclz %v4050
        %v4052 = vsub.s32 %v4051, 2
        %vm4053 = vcmp.gt.s32.totalorder 0, %v4052
        %v4054 = vsel %vm4053, 0, %v4052
        %v4055 = vsub.s32 32, %v4054
        %v4056 = vshll.u32 %v4047, %v4054
        %v4057 = vshrl.u32 %v4039, %v4055
        %v4058 = vor.u32 %v4056, %v4057
        %v4059 = vsub.s32 4294967266, %v4054
        %v4060 = vadd.s32 %v4059, 127
        %v4061 = vshll.u32 %v4060, 23
        %v4062 = vor.u32 4788187, %v4061
        %v4063 = vand.u32 2147483647, %v4062
        %v4065 = vcvt.s32.f32 %v4058
        %v4066 = vmul.f32 %v4065, %v4063
        %v4067 = vxor.u32 %v4066, 2147483648
        %v4068 = vsel %vm3985, %v4067, %v4066
        %v4069 = vsub.s32 4, %v4045
        %v4070 = vsel %vm3985, %v4069, %v4045
        %v4071 = vsel %vm3984, %v3143, %v4068
        %v4072 = vsel %vm3984, 0, %v4070
        %v4073 = vcosq.f32.pop %v4071
        %v4074 = vsinq.f32.pop %v4071
        %vm4075 = vweird.f32 %v3143
        %v4076 = vadd.s32 %v4072, 3
        %v4077 = vand.u32 %v4076, 3
        %vm4078 = vcmp.lt.s32.totalorder %v4077, 2
        %vm4079 = vcmp.eq.s32.totalorder %v4077, 0
        %v4080 = vxor.u32 %v4074, 2147483648
        %v4081 = vsel %vm4079, %v4073, %v4080
        %vm4082 = vcmp.eq.s32.totalorder %v4077, 2
        %v4083 = vxor.u32 %v4073, 2147483648
        %v4084 = vsel %vm4082, %v4083, %v4074
        %v4085 = vsel %vm4078, %v4081, %v4084
        %v4086 = vsel %vm4075, nan, %v4085
        %v4087 = vand.u32 2147483647, %v3144
        %vm4088 = vcmp.le.f32.partialorder %v4087, 0.7853982
        %vm4089 = vcmp.lt.s32.totalorder %v3144, 0
        %v4090 = vand.u32 %v3144, 2139095040
        %v4091 = vshrl.u32 %v4090, 23
        %v4092 = vsub.s32 %v4091, 127
        %v4093 = vand.u32 2147483647, %v3144
        %v4094 = vand.u32 %v4093, 8388607
        %v4095 = vor.u32 %v4094, 8388608
        %v4096 = vsub.s32 0, %v4095
        %v4097 = vadd.s32 %v4092, 1
        %vm4098 = vcmp.gt.s32.totalorder %v4097, 0
        %v4099 = vsel %vm4098, %v4097, 0
        %v4100 = vshrl.u32 %v4099, 5
        %v4101 = vand.u32 %v4099, 31
        %v4102 = vsub.s32 32, %v4101
        %v4103 = vshrl.u32 683565275, %v4102
        %v4104 = vshll.u32 683565275, %v4101
        %v4105 = vshrl.u32 2475754826, %v4102
        %v4106 = vor.u32 %v4104, %v4105
        %v4107 = vshll.u32 2475754826, %v4101
        %v4108 = vshrl.u32 2131351028, %v4102
        %v4109 = vor.u32 %v4107, %v4108
        %v4110 = vshll.u32 2131351028, %v4101
        %v4111 = vshrl.u32 2102212464, %v4102
        %v4112 = vor.u32 %v4110, %v4111
        %v4113 = vshll.u32 2102212464, %v4101
        %v4114 = vshrl.u32 920167782, %v4102
        %v4115 = vor.u32 %v4113, %v4114
        %v4116 = vshll.u32 920167782, %v4101
        %v4117 = vshrl.u32 1326507024, %v4102
        %v4118 = vor.u32 %v4116, %v4117
        %vm4119 = vcmp.lt.s32.totalorder %v4100, 1
        %vm4120 = vcmp.lt.s32.totalorder %v4100, 2
        %vm4121 = vcmp.lt.s32.totalorder %v4100, 3
        %vm4122 = vcmp.lt.s32.totalorder %v4100, 4
        %v4123 = vsel %vm4119, %v4103, %v4106
        %v4124 = vsel %vm4122, %v4112, 2102212464
        %v4125 = vsel %vm4121, %v4109, %v4124
        %v4126 = vsel %vm4120, %v4123, %v4125
        %v4127 = vsel %vm4119, %v4106, %v4109
        %v4128 = vsel %vm4122, %v4115, 920167782
        %v4129 = vsel %vm4121, %v4112, %v4128
        %v4130 = vsel %vm4120, %v4127, %v4129
        %v4131 = vsel %vm4119, %v4109, %v4112
        %v4132 = vsel %vm4122, %v4118, 1326507024
        %v4133 = vsel %vm4121, %v4115, %v4132
        %v4134 = vsel %vm4120, %v4131, %v4133
        %v4135 = vshll.u32 %v4095, 8
        %v4136 = vmul.u32.u64.compose %v4135, %v4134
        %v4137 = vextract.low.u32 %v4136
        %v4138 = vextract.high.u32 %v4136
        %v4139 = vmul.u32.u64.compose %v4135, %v4130
        %v4140 = vextract.low.u32 %v4139
        %v4141 = vextract.high.u32 %v4139
        %v4142 = vmul.u32 %v4135, %v4126
        %v4143 = vadd.s32 %v4138, %v4140
        %vm4144 = vc.u32 %v4138, %v4140
        %v4145 = vadd.s32 %v4141, 1
        %v4146 = vsel %vm4144, %v4145, %v4141
        %v4147 = vadd.s32 %v4142, %v4146
        %v4148 = vadd.s32 %v4147, 536870912
        %v4149 = vshrl.u32 %v4148, 30
        %v4150 = vshll.u32 %v4149, 30
        %v4151 = vsub.s32 %v4147, %v4150
        %vm4152 = vcmp.lt.s32.totalorder %v4151, 0
        %v4153 = vsub.s32 0, %v4151
        %v4154 = vsel %vm4152, %v4153, %v4151
        %v4155 = vclz %v4154
        %v4156 = vsub.s32 %v4155, 2
        %vm4157 = vcmp.gt.s32.totalorder 0, %v4156
        %v4158 = vsel %vm4157, 0, %v4156
        %v4159 = vsub.s32 32, %v4158
        %v4160 = vshll.u32 %v4151, %v4158
        %v4161 = vshrl.u32 %v4143, %v4159
        %v4162 = vor.u32 %v4160, %v4161
        %v4163 = vsub.s32 4294967266, %v4158
        %v4164 = vadd.s32 %v4163, 127
        %v4165 = vshll.u32 %v4164, 23
        %v4166 = vor.u32 4788187, %v4165
        %v4167 = vand.u32 2147483647, %v4166
        %v4169 = vcvt.s32.f32 %v4162
        %v4170 = vmul.f32 %v4169, %v4167
        %v4171 = vxor.u32 %v4170, 2147483648
        %v4172 = vsel %vm4089, %v4171, %v4170
        %v4173 = vsub.s32 4, %v4149
        %v4174 = vsel %vm4089, %v4173, %v4149
        %v4175 = vsel %vm4088, %v3144, %v4172
        %v4176 = vsel %vm4088, 0, %v4174
        %v4177 = vcosq.f32.pop %v4175
        %v4178 = vsinq.f32.pop %v4175
        %vm4179 = vweird.f32 %v3144
        %v4180 = vadd.s32 %v4176, 3
        %v4181 = vand.u32 %v4180, 3
        %vm4182 = vcmp.lt.s32.totalorder %v4181, 2
        %vm4183 = vcmp.eq.s32.totalorder %v4181, 0
        %v4184 = vxor.u32 %v4178, 2147483648
        %v4185 = vsel %vm4183, %v4177, %v4184
        %vm4186 = vcmp.eq.s32.totalorder %v4181, 2
        %v4187 = vxor.u32 %v4177, 2147483648
        %v4188 = vsel %vm4186, %v4187, %v4178
        %v4189 = vsel %vm4182, %v4185, %v4188
        %v4190 = vsel %vm4179, nan, %v4189
        %v4191 = vand.u32 2147483647, %v3145
        %vm4192 = vcmp.le.f32.partialorder %v4191, 0.7853982
        %vm4193 = vcmp.lt.s32.totalorder %v3145, 0
        %v4194 = vand.u32 %v3145, 2139095040
        %v4195 = vshrl.u32 %v4194, 23
        %v4196 = vsub.s32 %v4195, 127
        %v4197 = vand.u32 2147483647, %v3145
        %v4198 = vand.u32 %v4197, 8388607
        %v4199 = vor.u32 %v4198, 8388608
        %v4200 = vsub.s32 0, %v4199
        %v4201 = vadd.s32 %v4196, 1
        %vm4202 = vcmp.gt.s32.totalorder %v4201, 0
        %v4203 = vsel %vm4202, %v4201, 0
        %v4204 = vshrl.u32 %v4203, 5
        %v4205 = vand.u32 %v4203, 31
        %v4206 = vsub.s32 32, %v4205
        %v4207 = vshrl.u32 683565275, %v4206
        %v4208 = vshll.u32 683565275, %v4205
        %v4209 = vshrl.u32 2475754826, %v4206
        %v4210 = vor.u32 %v4208, %v4209
        %v4211 = vshll.u32 2475754826, %v4205
        %v4212 = vshrl.u32 2131351028, %v4206
        %v4213 = vor.u32 %v4211, %v4212
        %v4214 = vshll.u32 2131351028, %v4205
        %v4215 = vshrl.u32 2102212464, %v4206
        %v4216 = vor.u32 %v4214, %v4215
        %v4217 = vshll.u32 2102212464, %v4205
        %v4218 = vshrl.u32 920167782, %v4206
        %v4219 = vor.u32 %v4217, %v4218
        %v4220 = vshll.u32 920167782, %v4205
        %v4221 = vshrl.u32 1326507024, %v4206
        %v4222 = vor.u32 %v4220, %v4221
        %vm4223 = vcmp.lt.s32.totalorder %v4204, 1
        %vm4224 = vcmp.lt.s32.totalorder %v4204, 2
        %vm4225 = vcmp.lt.s32.totalorder %v4204, 3
        %vm4226 = vcmp.lt.s32.totalorder %v4204, 4
        %v4227 = vsel %vm4223, %v4207, %v4210
        %v4228 = vsel %vm4226, %v4216, 2102212464
        %v4229 = vsel %vm4225, %v4213, %v4228
        %v4230 = vsel %vm4224, %v4227, %v4229
        %v4231 = vsel %vm4223, %v4210, %v4213
        %v4232 = vsel %vm4226, %v4219, 920167782
        %v4233 = vsel %vm4225, %v4216, %v4232
        %v4234 = vsel %vm4224, %v4231, %v4233
        %v4235 = vsel %vm4223, %v4213, %v4216
        %v4236 = vsel %vm4226, %v4222, 1326507024
        %v4237 = vsel %vm4225, %v4219, %v4236
        %v4238 = vsel %vm4224, %v4235, %v4237
        %v4239 = vshll.u32 %v4199, 8
        %v4240 = vmul.u32.u64.compose %v4239, %v4238
        %v4241 = vextract.low.u32 %v4240
        %v4242 = vextract.high.u32 %v4240
        %v4243 = vmul.u32.u64.compose %v4239, %v4234
        %v4244 = vextract.low.u32 %v4243
        %v4245 = vextract.high.u32 %v4243
        %v4246 = vmul.u32 %v4239, %v4230
        %v4247 = vadd.s32 %v4242, %v4244
        %vm4248 = vc.u32 %v4242, %v4244
        %v4249 = vadd.s32 %v4245, 1
        %v4250 = vsel %vm4248, %v4249, %v4245
        %v4251 = vadd.s32 %v4246, %v4250
        %v4252 = vadd.s32 %v4251, 536870912
        %v4253 = vshrl.u32 %v4252, 30
        %v4254 = vshll.u32 %v4253, 30
        %v4255 = vsub.s32 %v4251, %v4254
        %vm4256 = vcmp.lt.s32.totalorder %v4255, 0
        %v4257 = vsub.s32 0, %v4255
        %v4258 = vsel %vm4256, %v4257, %v4255
        %v4259 = vclz %v4258
        %v4260 = vsub.s32 %v4259, 2
        %vm4261 = vcmp.gt.s32.totalorder 0, %v4260
        %v4262 = vsel %vm4261, 0, %v4260
        %v4263 = vsub.s32 32, %v4262
        %v4264 = vshll.u32 %v4255, %v4262
        %v4265 = vshrl.u32 %v4247, %v4263
        %v4266 = vor.u32 %v4264, %v4265
        %v4267 = vsub.s32 4294967266, %v4262
        %v4268 = vadd.s32 %v4267, 127
        %v4269 = vshll.u32 %v4268, 23
        %v4270 = vor.u32 4788187, %v4269
        %v4271 = vand.u32 2147483647, %v4270
        %v4273 = vcvt.s32.f32 %v4266
        %v4274 = vmul.f32 %v4273, %v4271
        %v4275 = vxor.u32 %v4274, 2147483648
        %v4276 = vsel %vm4193, %v4275, %v4274
        %v4277 = vsub.s32 4, %v4253
        %v4278 = vsel %vm4193, %v4277, %v4253
        %v4279 = vsel %vm4192, %v3145, %v4276
        %v4280 = vsel %vm4192, 0, %v4278
        %v4281 = vcosq.f32.pop %v4279
        %v4282 = vsinq.f32.pop %v4279
        %vm4283 = vweird.f32 %v3145
        %v4284 = vadd.s32 %v4280, 3
        %v4285 = vand.u32 %v4284, 3
        %vm4286 = vcmp.lt.s32.totalorder %v4285, 2
        %vm4287 = vcmp.eq.s32.totalorder %v4285, 0
        %v4288 = vxor.u32 %v4282, 2147483648
        %v4289 = vsel %vm4287, %v4281, %v4288
        %vm4290 = vcmp.eq.s32.totalorder %v4285, 2
        %v4291 = vxor.u32 %v4281, 2147483648
        %v4292 = vsel %vm4290, %v4291, %v4282
        %v4293 = vsel %vm4286, %v4289, %v4292
        %v4294 = vsel %vm4283, nan, %v4293
        %v4295 = vand.u32 2147483647, %v3146
        %vm4296 = vcmp.le.f32.partialorder %v4295, 0.7853982
        %vm4297 = vcmp.lt.s32.totalorder %v3146, 0
        %v4298 = vand.u32 %v3146, 2139095040
        %v4299 = vshrl.u32 %v4298, 23
        %v4300 = vsub.s32 %v4299, 127
        %v4301 = vand.u32 2147483647, %v3146
        %v4302 = vand.u32 %v4301, 8388607
        %v4303 = vor.u32 %v4302, 8388608
        %v4304 = vsub.s32 0, %v4303
        %v4305 = vadd.s32 %v4300, 1
        %vm4306 = vcmp.gt.s32.totalorder %v4305, 0
        %v4307 = vsel %vm4306, %v4305, 0
        %v4308 = vshrl.u32 %v4307, 5
        %v4309 = vand.u32 %v4307, 31
        %v4310 = vsub.s32 32, %v4309
        %v4311 = vshrl.u32 683565275, %v4310
        %v4312 = vshll.u32 683565275, %v4309
        %v4313 = vshrl.u32 2475754826, %v4310
        %v4314 = vor.u32 %v4312, %v4313
        %v4315 = vshll.u32 2475754826, %v4309
        %v4316 = vshrl.u32 2131351028, %v4310
        %v4317 = vor.u32 %v4315, %v4316
        %v4318 = vshll.u32 2131351028, %v4309
        %v4319 = vshrl.u32 2102212464, %v4310
        %v4320 = vor.u32 %v4318, %v4319
        %v4321 = vshll.u32 2102212464, %v4309
        %v4322 = vshrl.u32 920167782, %v4310
        %v4323 = vor.u32 %v4321, %v4322
        %v4324 = vshll.u32 920167782, %v4309
        %v4325 = vshrl.u32 1326507024, %v4310
        %v4326 = vor.u32 %v4324, %v4325
        %vm4327 = vcmp.lt.s32.totalorder %v4308, 1
        %vm4328 = vcmp.lt.s32.totalorder %v4308, 2
        %vm4329 = vcmp.lt.s32.totalorder %v4308, 3
        %vm4330 = vcmp.lt.s32.totalorder %v4308, 4
        %v4331 = vsel %vm4327, %v4311, %v4314
        %v4332 = vsel %vm4330, %v4320, 2102212464
        %v4333 = vsel %vm4329, %v4317, %v4332
        %v4334 = vsel %vm4328, %v4331, %v4333
        %v4335 = vsel %vm4327, %v4314, %v4317
        %v4336 = vsel %vm4330, %v4323, 920167782
        %v4337 = vsel %vm4329, %v4320, %v4336
        %v4338 = vsel %vm4328, %v4335, %v4337
        %v4339 = vsel %vm4327, %v4317, %v4320
        %v4340 = vsel %vm4330, %v4326, 1326507024
        %v4341 = vsel %vm4329, %v4323, %v4340
        %v4342 = vsel %vm4328, %v4339, %v4341
        %v4343 = vshll.u32 %v4303, 8
        %v4344 = vmul.u32.u64.compose %v4343, %v4342
        %v4345 = vextract.low.u32 %v4344
        %v4346 = vextract.high.u32 %v4344
        %v4347 = vmul.u32.u64.compose %v4343, %v4338
        %v4348 = vextract.low.u32 %v4347
        %v4349 = vextract.high.u32 %v4347
        %v4350 = vmul.u32 %v4343, %v4334
        %v4351 = vadd.s32 %v4346, %v4348
        %vm4352 = vc.u32 %v4346, %v4348
        %v4353 = vadd.s32 %v4349, 1
        %v4354 = vsel %vm4352, %v4353, %v4349
        %v4355 = vadd.s32 %v4350, %v4354
        %v4356 = vadd.s32 %v4355, 536870912
        %v4357 = vshrl.u32 %v4356, 30
        %v4358 = vshll.u32 %v4357, 30
        %v4359 = vsub.s32 %v4355, %v4358
        %vm4360 = vcmp.lt.s32.totalorder %v4359, 0
        %v4361 = vsub.s32 0, %v4359
        %v4362 = vsel %vm4360, %v4361, %v4359
        %v4363 = vclz %v4362
        %v4364 = vsub.s32 %v4363, 2
        %vm4365 = vcmp.gt.s32.totalorder 0, %v4364
        %v4366 = vsel %vm4365, 0, %v4364
        %v4367 = vsub.s32 32, %v4366
        %v4368 = vshll.u32 %v4359, %v4366
        %v4369 = vshrl.u32 %v4351, %v4367
        %v4370 = vor.u32 %v4368, %v4369
        %v4371 = vsub.s32 4294967266, %v4366
        %v4372 = vadd.s32 %v4371, 127
        %v4373 = vshll.u32 %v4372, 23
        %v4374 = vor.u32 4788187, %v4373
        %v4375 = vand.u32 2147483647, %v4374
        %v4377 = vcvt.s32.f32 %v4370
        %v4378 = vmul.f32 %v4377, %v4375
        %v4379 = vxor.u32 %v4378, 2147483648
        %v4380 = vsel %vm4297, %v4379, %v4378
        %v4381 = vsub.s32 4, %v4357
        %v4382 = vsel %vm4297, %v4381, %v4357
        %v4383 = vsel %vm4296, %v3146, %v4380
        %v4384 = vsel %vm4296, 0, %v4382
        %v4385 = vcosq.f32.pop %v4383
        %v4386 = vsinq.f32.pop %v4383
        %vm4387 = vweird.f32 %v3146
        %v4388 = vadd.s32 %v4384, 3
        %v4389 = vand.u32 %v4388, 3
        %vm4390 = vcmp.lt.s32.totalorder %v4389, 2
        %vm4391 = vcmp.eq.s32.totalorder %v4389, 0
        %v4392 = vxor.u32 %v4386, 2147483648
        %v4393 = vsel %vm4391, %v4385, %v4392
        %vm4394 = vcmp.eq.s32.totalorder %v4389, 2
        %v4395 = vxor.u32 %v4385, 2147483648
        %v4396 = vsel %vm4394, %v4395, %v4386
        %v4397 = vsel %vm4390, %v4393, %v4396
        %v4398 = vsel %vm4387, nan, %v4397
        %v4399 = vand.u32 2147483647, %v3147
        %vm4400 = vcmp.le.f32.partialorder %v4399, 0.7853982
        %vm4401 = vcmp.lt.s32.totalorder %v3147, 0
        %v4402 = vand.u32 %v3147, 2139095040
        %v4403 = vshrl.u32 %v4402, 23
        %v4404 = vsub.s32 %v4403, 127
        %v4405 = vand.u32 2147483647, %v3147
        %v4406 = vand.u32 %v4405, 8388607
        %v4407 = vor.u32 %v4406, 8388608
        %v4408 = vsub.s32 0, %v4407
        %v4409 = vadd.s32 %v4404, 1
        %vm4410 = vcmp.gt.s32.totalorder %v4409, 0
        %v4411 = vsel %vm4410, %v4409, 0
        %v4412 = vshrl.u32 %v4411, 5
        %v4413 = vand.u32 %v4411, 31
        %v4414 = vsub.s32 32, %v4413
        %v4415 = vshrl.u32 683565275, %v4414
        %v4416 = vshll.u32 683565275, %v4413
        %v4417 = vshrl.u32 2475754826, %v4414
        %v4418 = vor.u32 %v4416, %v4417
        %v4419 = vshll.u32 2475754826, %v4413
        %v4420 = vshrl.u32 2131351028, %v4414
        %v4421 = vor.u32 %v4419, %v4420
        %v4422 = vshll.u32 2131351028, %v4413
        %v4423 = vshrl.u32 2102212464, %v4414
        %v4424 = vor.u32 %v4422, %v4423
        %v4425 = vshll.u32 2102212464, %v4413
        %v4426 = vshrl.u32 920167782, %v4414
        %v4427 = vor.u32 %v4425, %v4426
        %v4428 = vshll.u32 920167782, %v4413
        %v4429 = vshrl.u32 1326507024, %v4414
        %v4430 = vor.u32 %v4428, %v4429
        %vm4431 = vcmp.lt.s32.totalorder %v4412, 1
        %vm4432 = vcmp.lt.s32.totalorder %v4412, 2
        %vm4433 = vcmp.lt.s32.totalorder %v4412, 3
        %vm4434 = vcmp.lt.s32.totalorder %v4412, 4
        %v4435 = vsel %vm4431, %v4415, %v4418
        %v4436 = vsel %vm4434, %v4424, 2102212464
        %v4437 = vsel %vm4433, %v4421, %v4436
        %v4438 = vsel %vm4432, %v4435, %v4437
        %v4439 = vsel %vm4431, %v4418, %v4421
        %v4440 = vsel %vm4434, %v4427, 920167782
        %v4441 = vsel %vm4433, %v4424, %v4440
        %v4442 = vsel %vm4432, %v4439, %v4441
        %v4443 = vsel %vm4431, %v4421, %v4424
        %v4444 = vsel %vm4434, %v4430, 1326507024
        %v4445 = vsel %vm4433, %v4427, %v4444
        %v4446 = vsel %vm4432, %v4443, %v4445
        %v4447 = vshll.u32 %v4407, 8
        %v4448 = vmul.u32.u64.compose %v4447, %v4446
        %v4449 = vextract.low.u32 %v4448
        %v4450 = vextract.high.u32 %v4448
        %v4451 = vmul.u32.u64.compose %v4447, %v4442
        %v4452 = vextract.low.u32 %v4451
        %v4453 = vextract.high.u32 %v4451
        %v4454 = vmul.u32 %v4447, %v4438
        %v4455 = vadd.s32 %v4450, %v4452
        %vm4456 = vc.u32 %v4450, %v4452
        %v4457 = vadd.s32 %v4453, 1
        %v4458 = vsel %vm4456, %v4457, %v4453
        %v4459 = vadd.s32 %v4454, %v4458
        %v4460 = vadd.s32 %v4459, 536870912
        %v4461 = vshrl.u32 %v4460, 30
        %v4462 = vshll.u32 %v4461, 30
        %v4463 = vsub.s32 %v4459, %v4462
        %vm4464 = vcmp.lt.s32.totalorder %v4463, 0
        %v4465 = vsub.s32 0, %v4463
        %v4466 = vsel %vm4464, %v4465, %v4463
        %v4467 = vclz %v4466
        %v4468 = vsub.s32 %v4467, 2
        %vm4469 = vcmp.gt.s32.totalorder 0, %v4468
        %v4470 = vsel %vm4469, 0, %v4468
        %v4471 = vsub.s32 32, %v4470
        %v4472 = vshll.u32 %v4463, %v4470
        %v4473 = vshrl.u32 %v4455, %v4471
        %v4474 = vor.u32 %v4472, %v4473
        %v4475 = vsub.s32 4294967266, %v4470
        %v4476 = vadd.s32 %v4475, 127
        %v4477 = vshll.u32 %v4476, 23
        %v4478 = vor.u32 4788187, %v4477
        %v4479 = vand.u32 2147483647, %v4478
        %v4481 = vcvt.s32.f32 %v4474
        %v4482 = vmul.f32 %v4481, %v4479
        %v4483 = vxor.u32 %v4482, 2147483648
        %v4484 = vsel %vm4401, %v4483, %v4482
        %v4485 = vsub.s32 4, %v4461
        %v4486 = vsel %vm4401, %v4485, %v4461
        %v4487 = vsel %vm4400, %v3147, %v4484
        %v4488 = vsel %vm4400, 0, %v4486
        %v4489 = vcosq.f32.pop %v4487
        %v4490 = vsinq.f32.pop %v4487
        %vm4491 = vweird.f32 %v3147
        %v4492 = vadd.s32 %v4488, 3
        %v4493 = vand.u32 %v4492, 3
        %vm4494 = vcmp.lt.s32.totalorder %v4493, 2
        %vm4495 = vcmp.eq.s32.totalorder %v4493, 0
        %v4496 = vxor.u32 %v4490, 2147483648
        %v4497 = vsel %vm4495, %v4489, %v4496
        %vm4498 = vcmp.eq.s32.totalorder %v4493, 2
        %v4499 = vxor.u32 %v4489, 2147483648
        %v4500 = vsel %vm4498, %v4499, %v4490
        %v4501 = vsel %vm4494, %v4497, %v4500
        %v4502 = vsel %vm4491, nan, %v4501
        %v4503 = vand.u32 2147483647, %v3148
        %vm4504 = vcmp.le.f32.partialorder %v4503, 0.7853982
        %vm4505 = vcmp.lt.s32.totalorder %v3148, 0
        %v4506 = vand.u32 %v3148, 2139095040
        %v4507 = vshrl.u32 %v4506, 23
        %v4508 = vsub.s32 %v4507, 127
        %v4509 = vand.u32 2147483647, %v3148
        %v4510 = vand.u32 %v4509, 8388607
        %v4511 = vor.u32 %v4510, 8388608
        %v4512 = vsub.s32 0, %v4511
        %v4513 = vadd.s32 %v4508, 1
        %vm4514 = vcmp.gt.s32.totalorder %v4513, 0
        %v4515 = vsel %vm4514, %v4513, 0
        %v4516 = vshrl.u32 %v4515, 5
        %v4517 = vand.u32 %v4515, 31
        %v4518 = vsub.s32 32, %v4517
        %v4519 = vshrl.u32 683565275, %v4518
        %v4520 = vshll.u32 683565275, %v4517
        %v4521 = vshrl.u32 2475754826, %v4518
        %v4522 = vor.u32 %v4520, %v4521
        %v4523 = vshll.u32 2475754826, %v4517
        %v4524 = vshrl.u32 2131351028, %v4518
        %v4525 = vor.u32 %v4523, %v4524
        %v4526 = vshll.u32 2131351028, %v4517
        %v4527 = vshrl.u32 2102212464, %v4518
        %v4528 = vor.u32 %v4526, %v4527
        %v4529 = vshll.u32 2102212464, %v4517
        %v4530 = vshrl.u32 920167782, %v4518
        %v4531 = vor.u32 %v4529, %v4530
        %v4532 = vshll.u32 920167782, %v4517
        %v4533 = vshrl.u32 1326507024, %v4518
        %v4534 = vor.u32 %v4532, %v4533
        %vm4535 = vcmp.lt.s32.totalorder %v4516, 1
        %vm4536 = vcmp.lt.s32.totalorder %v4516, 2
        %vm4537 = vcmp.lt.s32.totalorder %v4516, 3
        %vm4538 = vcmp.lt.s32.totalorder %v4516, 4
        %v4539 = vsel %vm4535, %v4519, %v4522
        %v4540 = vsel %vm4538, %v4528, 2102212464
        %v4541 = vsel %vm4537, %v4525, %v4540
        %v4542 = vsel %vm4536, %v4539, %v4541
        %v4543 = vsel %vm4535, %v4522, %v4525
        %v4544 = vsel %vm4538, %v4531, 920167782
        %v4545 = vsel %vm4537, %v4528, %v4544
        %v4546 = vsel %vm4536, %v4543, %v4545
        %v4547 = vsel %vm4535, %v4525, %v4528
        %v4548 = vsel %vm4538, %v4534, 1326507024
        %v4549 = vsel %vm4537, %v4531, %v4548
        %v4550 = vsel %vm4536, %v4547, %v4549
        %v4551 = vshll.u32 %v4511, 8
        %v4552 = vmul.u32.u64.compose %v4551, %v4550
        %v4553 = vextract.low.u32 %v4552
        %v4554 = vextract.high.u32 %v4552
        %v4555 = vmul.u32.u64.compose %v4551, %v4546
        %v4556 = vextract.low.u32 %v4555
        %v4557 = vextract.high.u32 %v4555
        %v4558 = vmul.u32 %v4551, %v4542
        %v4559 = vadd.s32 %v4554, %v4556
        %vm4560 = vc.u32 %v4554, %v4556
        %v4561 = vadd.s32 %v4557, 1
        %v4562 = vsel %vm4560, %v4561, %v4557
        %v4563 = vadd.s32 %v4558, %v4562
        %v4564 = vadd.s32 %v4563, 536870912
        %v4565 = vshrl.u32 %v4564, 30
        %v4566 = vshll.u32 %v4565, 30
        %v4567 = vsub.s32 %v4563, %v4566
        %vm4568 = vcmp.lt.s32.totalorder %v4567, 0
        %v4569 = vsub.s32 0, %v4567
        %v4570 = vsel %vm4568, %v4569, %v4567
        %v4571 = vclz %v4570
        %v4572 = vsub.s32 %v4571, 2
        %vm4573 = vcmp.gt.s32.totalorder 0, %v4572
        %v4574 = vsel %vm4573, 0, %v4572
        %v4575 = vsub.s32 32, %v4574
        %v4576 = vshll.u32 %v4567, %v4574
        %v4577 = vshrl.u32 %v4559, %v4575
        %v4578 = vor.u32 %v4576, %v4577
        %v4579 = vsub.s32 4294967266, %v4574
        %v4580 = vadd.s32 %v4579, 127
        %v4581 = vshll.u32 %v4580, 23
        %v4582 = vor.u32 4788187, %v4581
        %v4583 = vand.u32 2147483647, %v4582
        %v4585 = vcvt.s32.f32 %v4578
        %v4586 = vmul.f32 %v4585, %v4583
        %v4587 = vxor.u32 %v4586, 2147483648
        %v4588 = vsel %vm4505, %v4587, %v4586
        %v4589 = vsub.s32 4, %v4565
        %v4590 = vsel %vm4505, %v4589, %v4565
        %v4591 = vsel %vm4504, %v3148, %v4588
        %v4592 = vsel %vm4504, 0, %v4590
        %v4593 = vcosq.f32.pop %v4591
        %v4594 = vsinq.f32.pop %v4591
        %vm4595 = vweird.f32 %v3148
        %v4596 = vadd.s32 %v4592, 3
        %v4597 = vand.u32 %v4596, 3
        %vm4598 = vcmp.lt.s32.totalorder %v4597, 2
        %vm4599 = vcmp.eq.s32.totalorder %v4597, 0
        %v4600 = vxor.u32 %v4594, 2147483648
        %v4601 = vsel %vm4599, %v4593, %v4600
        %vm4602 = vcmp.eq.s32.totalorder %v4597, 2
        %v4603 = vxor.u32 %v4593, 2147483648
        %v4604 = vsel %vm4602, %v4603, %v4594
        %v4605 = vsel %vm4598, %v4601, %v4604
        %v4606 = vsel %vm4595, nan, %v4605
        %v4607 = vand.u32 2147483647, %v3149
        %vm4608 = vcmp.le.f32.partialorder %v4607, 0.7853982
        %vm4609 = vcmp.lt.s32.totalorder %v3149, 0
        %v4610 = vand.u32 %v3149, 2139095040
        %v4611 = vshrl.u32 %v4610, 23
        %v4612 = vsub.s32 %v4611, 127
        %v4613 = vand.u32 2147483647, %v3149
        %v4614 = vand.u32 %v4613, 8388607
        %v4615 = vor.u32 %v4614, 8388608
        %v4616 = vsub.s32 0, %v4615
        %v4617 = vadd.s32 %v4612, 1
        %vm4618 = vcmp.gt.s32.totalorder %v4617, 0
        %v4619 = vsel %vm4618, %v4617, 0
        %v4620 = vshrl.u32 %v4619, 5
        %v4621 = vand.u32 %v4619, 31
        %v4622 = vsub.s32 32, %v4621
        %v4623 = vshrl.u32 683565275, %v4622
        %v4624 = vshll.u32 683565275, %v4621
        %v4625 = vshrl.u32 2475754826, %v4622
        %v4626 = vor.u32 %v4624, %v4625
        %v4627 = vshll.u32 2475754826, %v4621
        %v4628 = vshrl.u32 2131351028, %v4622
        %v4629 = vor.u32 %v4627, %v4628
        %v4630 = vshll.u32 2131351028, %v4621
        %v4631 = vshrl.u32 2102212464, %v4622
        %v4632 = vor.u32 %v4630, %v4631
        %v4633 = vshll.u32 2102212464, %v4621
        %v4634 = vshrl.u32 920167782, %v4622
        %v4635 = vor.u32 %v4633, %v4634
        %v4636 = vshll.u32 920167782, %v4621
        %v4637 = vshrl.u32 1326507024, %v4622
        %v4638 = vor.u32 %v4636, %v4637
        %vm4639 = vcmp.lt.s32.totalorder %v4620, 1
        %vm4640 = vcmp.lt.s32.totalorder %v4620, 2
        %vm4641 = vcmp.lt.s32.totalorder %v4620, 3
        %vm4642 = vcmp.lt.s32.totalorder %v4620, 4
        %v4643 = vsel %vm4639, %v4623, %v4626
        %v4644 = vsel %vm4642, %v4632, 2102212464
        %v4645 = vsel %vm4641, %v4629, %v4644
        %v4646 = vsel %vm4640, %v4643, %v4645
        %v4647 = vsel %vm4639, %v4626, %v4629
        %v4648 = vsel %vm4642, %v4635, 920167782
        %v4649 = vsel %vm4641, %v4632, %v4648
        %v4650 = vsel %vm4640, %v4647, %v4649
        %v4651 = vsel %vm4639, %v4629, %v4632
        %v4652 = vsel %vm4642, %v4638, 1326507024
        %v4653 = vsel %vm4641, %v4635, %v4652
        %v4654 = vsel %vm4640, %v4651, %v4653
        %v4655 = vshll.u32 %v4615, 8
        %v4656 = vmul.u32.u64.compose %v4655, %v4654
        %v4657 = vextract.low.u32 %v4656
        %v4658 = vextract.high.u32 %v4656
        %v4659 = vmul.u32.u64.compose %v4655, %v4650
        %v4660 = vextract.low.u32 %v4659
        %v4661 = vextract.high.u32 %v4659
        %v4662 = vmul.u32 %v4655, %v4646
        %v4663 = vadd.s32 %v4658, %v4660
        %vm4664 = vc.u32 %v4658, %v4660
        %v4665 = vadd.s32 %v4661, 1
        %v4666 = vsel %vm4664, %v4665, %v4661
        %v4667 = vadd.s32 %v4662, %v4666
        %v4668 = vadd.s32 %v4667, 536870912
        %v4669 = vshrl.u32 %v4668, 30
        %v4670 = vshll.u32 %v4669, 30
        %v4671 = vsub.s32 %v4667, %v4670
        %vm4672 = vcmp.lt.s32.totalorder %v4671, 0
        %v4673 = vsub.s32 0, %v4671
        %v4674 = vsel %vm4672, %v4673, %v4671
        %v4675 = vclz %v4674
        %v4676 = vsub.s32 %v4675, 2
        %vm4677 = vcmp.gt.s32.totalorder 0, %v4676
        %v4678 = vsel %vm4677, 0, %v4676
        %v4679 = vsub.s32 32, %v4678
        %v4680 = vshll.u32 %v4671, %v4678
        %v4681 = vshrl.u32 %v4663, %v4679
        %v4682 = vor.u32 %v4680, %v4681
        %v4683 = vsub.s32 4294967266, %v4678
        %v4684 = vadd.s32 %v4683, 127
        %v4685 = vshll.u32 %v4684, 23
        %v4686 = vor.u32 4788187, %v4685
        %v4687 = vand.u32 2147483647, %v4686
        %v4689 = vcvt.s32.f32 %v4682
        %v4690 = vmul.f32 %v4689, %v4687
        %v4691 = vxor.u32 %v4690, 2147483648
        %v4692 = vsel %vm4609, %v4691, %v4690
        %v4693 = vsub.s32 4, %v4669
        %v4694 = vsel %vm4609, %v4693, %v4669
        %v4695 = vsel %vm4608, %v3149, %v4692
        %v4696 = vsel %vm4608, 0, %v4694
        %v4697 = vcosq.f32.pop %v4695
        %v4698 = vsinq.f32.pop %v4695
        %vm4699 = vweird.f32 %v3149
        %v4700 = vadd.s32 %v4696, 3
        %v4701 = vand.u32 %v4700, 3
        %vm4702 = vcmp.lt.s32.totalorder %v4701, 2
        %vm4703 = vcmp.eq.s32.totalorder %v4701, 0
        %v4704 = vxor.u32 %v4698, 2147483648
        %v4705 = vsel %vm4703, %v4697, %v4704
        %vm4706 = vcmp.eq.s32.totalorder %v4701, 2
        %v4707 = vxor.u32 %v4697, 2147483648
        %v4708 = vsel %vm4706, %v4707, %v4698
        %v4709 = vsel %vm4702, %v4705, %v4708
        %v4710 = vsel %vm4699, nan, %v4709
        %v4711 = vand.u32 2147483647, %v3150
        %vm4712 = vcmp.le.f32.partialorder %v4711, 0.7853982
        %vm4713 = vcmp.lt.s32.totalorder %v3150, 0
        %v4714 = vand.u32 %v3150, 2139095040
        %v4715 = vshrl.u32 %v4714, 23
        %v4716 = vsub.s32 %v4715, 127
        %v4717 = vand.u32 2147483647, %v3150
        %v4718 = vand.u32 %v4717, 8388607
        %v4719 = vor.u32 %v4718, 8388608
        %v4720 = vsub.s32 0, %v4719
        %v4721 = vadd.s32 %v4716, 1
        %vm4722 = vcmp.gt.s32.totalorder %v4721, 0
        %v4723 = vsel %vm4722, %v4721, 0
        %v4724 = vshrl.u32 %v4723, 5
        %v4725 = vand.u32 %v4723, 31
        %v4726 = vsub.s32 32, %v4725
        %v4727 = vshrl.u32 683565275, %v4726
        %v4728 = vshll.u32 683565275, %v4725
        %v4729 = vshrl.u32 2475754826, %v4726
        %v4730 = vor.u32 %v4728, %v4729
        %v4731 = vshll.u32 2475754826, %v4725
        %v4732 = vshrl.u32 2131351028, %v4726
        %v4733 = vor.u32 %v4731, %v4732
        %v4734 = vshll.u32 2131351028, %v4725
        %v4735 = vshrl.u32 2102212464, %v4726
        %v4736 = vor.u32 %v4734, %v4735
        %v4737 = vshll.u32 2102212464, %v4725
        %v4738 = vshrl.u32 920167782, %v4726
        %v4739 = vor.u32 %v4737, %v4738
        %v4740 = vshll.u32 920167782, %v4725
        %v4741 = vshrl.u32 1326507024, %v4726
        %v4742 = vor.u32 %v4740, %v4741
        %vm4743 = vcmp.lt.s32.totalorder %v4724, 1
        %vm4744 = vcmp.lt.s32.totalorder %v4724, 2
        %vm4745 = vcmp.lt.s32.totalorder %v4724, 3
        %vm4746 = vcmp.lt.s32.totalorder %v4724, 4
        %v4747 = vsel %vm4743, %v4727, %v4730
        %v4748 = vsel %vm4746, %v4736, 2102212464
        %v4749 = vsel %vm4745, %v4733, %v4748
        %v4750 = vsel %vm4744, %v4747, %v4749
        %v4751 = vsel %vm4743, %v4730, %v4733
        %v4752 = vsel %vm4746, %v4739, 920167782
        %v4753 = vsel %vm4745, %v4736, %v4752
        %v4754 = vsel %vm4744, %v4751, %v4753
        %v4755 = vsel %vm4743, %v4733, %v4736
        %v4756 = vsel %vm4746, %v4742, 1326507024
        %v4757 = vsel %vm4745, %v4739, %v4756
        %v4758 = vsel %vm4744, %v4755, %v4757
        %v4759 = vshll.u32 %v4719, 8
        %v4760 = vmul.u32.u64.compose %v4759, %v4758
        %v4761 = vextract.low.u32 %v4760
        %v4762 = vextract.high.u32 %v4760
        %v4763 = vmul.u32.u64.compose %v4759, %v4754
        %v4764 = vextract.low.u32 %v4763
        %v4765 = vextract.high.u32 %v4763
        %v4766 = vmul.u32 %v4759, %v4750
        %v4767 = vadd.s32 %v4762, %v4764
        %vm4768 = vc.u32 %v4762, %v4764
        %v4769 = vadd.s32 %v4765, 1
        %v4770 = vsel %vm4768, %v4769, %v4765
        %v4771 = vadd.s32 %v4766, %v4770
        %v4772 = vadd.s32 %v4771, 536870912
        %v4773 = vshrl.u32 %v4772, 30
        %v4774 = vshll.u32 %v4773, 30
        %v4775 = vsub.s32 %v4771, %v4774
        %vm4776 = vcmp.lt.s32.totalorder %v4775, 0
        %v4777 = vsub.s32 0, %v4775
        %v4778 = vsel %vm4776, %v4777, %v4775
        %v4779 = vclz %v4778
        %v4780 = vsub.s32 %v4779, 2
        %vm4781 = vcmp.gt.s32.totalorder 0, %v4780
        %v4782 = vsel %vm4781, 0, %v4780
        %v4783 = vsub.s32 32, %v4782
        %v4784 = vshll.u32 %v4775, %v4782
        %v4785 = vshrl.u32 %v4767, %v4783
        %v4786 = vor.u32 %v4784, %v4785
        %v4787 = vsub.s32 4294967266, %v4782
        %v4788 = vadd.s32 %v4787, 127
        %v4789 = vshll.u32 %v4788, 23
        %v4790 = vor.u32 4788187, %v4789
        %v4791 = vand.u32 2147483647, %v4790
        %v4793 = vcvt.s32.f32 %v4786
        %v4794 = vmul.f32 %v4793, %v4791
        %v4795 = vxor.u32 %v4794, 2147483648
        %v4796 = vsel %vm4713, %v4795, %v4794
        %v4797 = vsub.s32 4, %v4773
        %v4798 = vsel %vm4713, %v4797, %v4773
        %v4799 = vsel %vm4712, %v3150, %v4796
        %v4800 = vsel %vm4712, 0, %v4798
        %v4801 = vcosq.f32.pop %v4799
        %v4802 = vsinq.f32.pop %v4799
        %vm4803 = vweird.f32 %v3150
        %v4804 = vadd.s32 %v4800, 3
        %v4805 = vand.u32 %v4804, 3
        %vm4806 = vcmp.lt.s32.totalorder %v4805, 2
        %vm4807 = vcmp.eq.s32.totalorder %v4805, 0
        %v4808 = vxor.u32 %v4802, 2147483648
        %v4809 = vsel %vm4807, %v4801, %v4808
        %vm4810 = vcmp.eq.s32.totalorder %v4805, 2
        %v4811 = vxor.u32 %v4801, 2147483648
        %v4812 = vsel %vm4810, %v4811, %v4802
        %v4813 = vsel %vm4806, %v4809, %v4812
        %v4814 = vsel %vm4803, nan, %v4813
        %4815 = vmatprep.subr.mxu0 %v3358
        %4816 = vmatpush1.msra.mxu0 %v3254
        %4817 = vmatprep.subr.mxu0 %v3774
        %4818 = vmatpush1.msra.mxu0 %v3670
        %4819 = vmatprep.subr.mxu0 %v4190
        %4820 = vmatpush1.msra.mxu0 %v4086
        %4821 = vmatprep.subr.mxu0 %v4606
        %4822 = vmatpush1.msra.mxu0 %v4502
        %4823 = vmatprep.subr.mxu0 0.0
        %4824 = vmatpush1.msra.mxu0 0.0
        %4825 = vmatprep.subr.mxu0 0.0
        %4826 = vmatpush1.msra.mxu0 0.0
        %4827 = vmatprep.subr.mxu0 0.0
        %4828 = vmatpush1.msra.mxu0 0.0
        %4829 = vmatprep.subr.mxu0 0.0
        %4830 = vmatpush1.msra.mxu0 0.0
        %4831 = vmatprep.subr.mxu0 0.0
        %4832 = vmatpush1.msra.mxu0 0.0
        %4833 = vmatprep.subr.mxu0 0.0
        %4834 = vmatpush1.msra.mxu0 0.0
        %4835 = vmatprep.subr.mxu0 0.0
        %4836 = vmatpush1.msra.mxu0 0.0
        %4837 = vmatprep.subr.mxu0 0.0
        %4838 = vmatpush1.msra.mxu0 0.0
        %4839 = vmatprep.subr.mxu0 0.0
        %4840 = vmatpush1.msra.mxu0 0.0
        %4841 = vmatprep.subr.mxu0 0.0
        %4842 = vmatpush1.msra.mxu0 0.0
        %4843 = vmatprep.subr.mxu0 0.0
        %4844 = vmatpush1.msra.mxu0 0.0
        %4845 = vmatprep.subr.mxu0 0.0
        %4846 = vmatpush1.msra.mxu0 0.0
        %4847 = vmatprep.subr.mxu0 0.0
        %4848 = vmatpush1.msra.mxu0 0.0
        %4849 = vmatprep.subr.mxu0 0.0
        %4850 = vmatpush1.msra.mxu0 0.0
        %4851 = vmatprep.subr.mxu0 0.0
        %4852 = vmatpush1.msra.mxu0 0.0
        %4853 = vmatprep.subr.mxu0 0.0
        %4854 = vmatpush1.msra.mxu0 0.0
        %4855 = vmatprep.subr.mxu0 0.0
        %4856 = vmatpush1.msra.mxu0 0.0
        %4857 = vmatprep.subr.mxu0 0.0
        %4858 = vmatpush1.msra.mxu0 0.0
        %4859 = vmatprep.subr.mxu0 0.0
        %4860 = vmatpush1.msra.mxu0 0.0
        %4861 = vmatprep.subr.mxu0 0.0
        %4862 = vmatpush1.msra.mxu0 0.0
        %4863 = vmatprep.subr.mxu0 0.0
        %4864 = vmatpush1.msra.mxu0 0.0
        %4865 = vmatprep.subr.mxu0 0.0
        %4866 = vmatpush1.msra.mxu0 0.0
        %4867 = vmatprep.subr.mxu0 0.0
        %4868 = vmatpush1.msra.mxu0 0.0
        %4869 = vmatprep.subr.mxu0 0.0
        %4870 = vmatpush1.msra.mxu0 0.0
        %4871 = vmatprep.subr.mxu0 0.0
        %4872 = vmatpush1.msra.mxu0 0.0
        %4873 = vmatprep.subr.mxu0 0.0
        %4874 = vmatpush1.msra.mxu0 0.0
        %4875 = vmatprep.subr.mxu0 0.0
        %4876 = vmatpush1.msra.mxu0 0.0
        %4877 = vmatprep.subr.mxu0 0.0
        %4878 = vmatpush1.msra.mxu0 0.0
        %4879 = vmatprep.mubr.f32.mxu0 0.0
        %4880 = vmatmul.mubr.f32.gmra.mrb[0].mxu0 %v2150
        %v4881 = vpop.f32.mrb[0].mxu0
        %v4882 = vadd.f32 %v2134, %v4881
        %v4883 = vpop.f32.mrb[0].mxu0
        %v4884 = vadd.f32 %v2134, %v4883
        %4885 = vmatprep.mubr.f32.mxu0 0.0
        %4886 = vmatmul.mubr.f32.gmra.mrb[0].mxu0 %v2153
        %v4887 = vpop.f32.mrb[0].mxu0
        %v4888 = vadd.f32 %v2138, %v4887
        %v4889 = vpop.f32.mrb[0].mxu0
        %v4890 = vadd.f32 %v2138, %v4889
        %4891 = vmatprep.mubr.f32.mxu0 0.0
        %4892 = vmatmul.mubr.f32.gmra.mrb[0].mxu0 %v2156
        %v4893 = vpop.f32.mrb[0].mxu0
        %v4894 = vadd.f32 %v2142, %v4893
        %v4895 = vpop.f32.mrb[0].mxu0
        %v4896 = vadd.f32 %v2142, %v4895
        %4897 = vmatprep.mubr.f32.mxu0 0.0
        %4898 = vmatmul.mubr.f32.gmra.mrb[0].mxu0 %v2159
        %v4899 = vpop.f32.mrb[0].mxu0
        %v4900 = vadd.f32 %v2146, %v4899
        %v4901 = vpop.f32.mrb[0].mxu0
        %v4902 = vadd.f32 %v2146, %v4901
        %4903 = vdwg.mxu0
        %4904 = vmatprep.subr.mxu0 %v3566
        %4905 = vmatpush1.msra.mxu0 %v3462
        %4906 = vmatprep.subr.mxu0 %v3982
        %4907 = vmatpush1.msra.mxu0 %v3878
        %4908 = vmatprep.subr.mxu0 %v4398
        %4909 = vmatpush1.msra.mxu0 %v4294
        %4910 = vmatprep.subr.mxu0 %v4814
        %4911 = vmatpush1.msra.mxu0 %v4710
        %4912 = vmatprep.subr.mxu0 0.0
        %4913 = vmatpush1.msra.mxu0 0.0
        %4914 = vmatprep.subr.mxu0 0.0
        %4915 = vmatpush1.msra.mxu0 0.0
        %4916 = vmatprep.subr.mxu0 0.0
        %4917 = vmatpush1.msra.mxu0 0.0
        %4918 = vmatprep.subr.mxu0 0.0
        %4919 = vmatpush1.msra.mxu0 0.0
        %4920 = vmatprep.subr.mxu0 0.0
        %4921 = vmatpush1.msra.mxu0 0.0
        %4922 = vmatprep.subr.mxu0 0.0
        %4923 = vmatpush1.msra.mxu0 0.0
        %4924 = vmatprep.subr.mxu0 0.0
        %4925 = vmatpush1.msra.mxu0 0.0
        %4926 = vmatprep.subr.mxu0 0.0
        %4927 = vmatpush1.msra.mxu0 0.0
        %4928 = vmatprep.subr.mxu0 0.0
        %4929 = vmatpush1.msra.mxu0 0.0
        %4930 = vmatprep.subr.mxu0 0.0
        %4931 = vmatpush1.msra.mxu0 0.0
        %4932 = vmatprep.subr.mxu0 0.0
        %4933 = vmatpush1.msra.mxu0 0.0
        %4934 = vmatprep.subr.mxu0 0.0
        %4935 = vmatpush1.msra.mxu0 0.0
        %4936 = vmatprep.subr.mxu0 0.0
        %4937 = vmatpush1.msra.mxu0 0.0
        %4938 = vmatprep.subr.mxu0 0.0
        %4939 = vmatpush1.msra.mxu0 0.0
        %4940 = vmatprep.subr.mxu0 0.0
        %4941 = vmatpush1.msra.mxu0 0.0
        %4942 = vmatprep.subr.mxu0 0.0
        %4943 = vmatpush1.msra.mxu0 0.0
        %4944 = vmatprep.subr.mxu0 0.0
        %4945 = vmatpush1.msra.mxu0 0.0
        %4946 = vmatprep.subr.mxu0 0.0
        %4947 = vmatpush1.msra.mxu0 0.0
        %4948 = vmatprep.subr.mxu0 0.0
        %4949 = vmatpush1.msra.mxu0 0.0
        %4950 = vmatprep.subr.mxu0 0.0
        %4951 = vmatpush1.msra.mxu0 0.0
        %4952 = vmatprep.subr.mxu0 0.0
        %4953 = vmatpush1.msra.mxu0 0.0
        %4954 = vmatprep.subr.mxu0 0.0
        %4955 = vmatpush1.msra.mxu0 0.0
        %4956 = vmatprep.subr.mxu0 0.0
        %4957 = vmatpush1.msra.mxu0 0.0
        %4958 = vmatprep.subr.mxu0 0.0
        %4959 = vmatpush1.msra.mxu0 0.0
        %4960 = vmatprep.subr.mxu0 0.0
        %4961 = vmatpush1.msra.mxu0 0.0
        %4962 = vmatprep.subr.mxu0 0.0
        %4963 = vmatpush1.msra.mxu0 0.0
        %4964 = vmatprep.subr.mxu0 0.0
        %4965 = vmatpush1.msra.mxu0 0.0
        %4966 = vmatprep.subr.mxu0 0.0
        %4967 = vmatpush1.msra.mxu0 0.0
        %4968 = vmatprep.mubr.f32.mxu0 0.0
        %4969 = vmatmul.mubr.f32.gmra.mrb[0].mxu0 %v2150
        %v4970 = vpop.f32.mrb[0].mxu0
        %v4971 = vadd.f32 %v2134, %v4970
        %v4972 = vpop.f32.mrb[0].mxu0
        %v4973 = vadd.f32 %v2134, %v4972
        %4974 = vmatprep.mubr.f32.mxu0 0.0
        %4975 = vmatmul.mubr.f32.gmra.mrb[0].mxu0 %v2153
        %v4976 = vpop.f32.mrb[0].mxu0
        %v4977 = vadd.f32 %v2138, %v4976
        %v4978 = vpop.f32.mrb[0].mxu0
        %v4979 = vadd.f32 %v2138, %v4978
        %4980 = vmatprep.mubr.f32.mxu0 0.0
        %4981 = vmatmul.mubr.f32.gmra.mrb[0].mxu0 %v2156
        %v4982 = vpop.f32.mrb[0].mxu0
        %v4983 = vadd.f32 %v2142, %v4982
        %v4984 = vpop.f32.mrb[0].mxu0
        %v4985 = vadd.f32 %v2142, %v4984
        %4986 = vmatprep.mubr.f32.mxu0 0.0
        %4987 = vmatmul.mubr.f32.gmra.mrb[0].mxu0 %v2159
        %v4988 = vpop.f32.mrb[0].mxu0
        %v4989 = vadd.f32 %v2146, %v4988
        %v4990 = vpop.f32.mrb[0].mxu0
        %v4991 = vadd.f32 %v2146, %v4990
        %4992 = vdwg.mxu0
        %4993 = vmatprep.subr.mxu0 %v4884
        %4994 = vmatpush1.msra.mxu0 %v4882
        %4995 = vmatprep.subr.mxu0 %v4890
        %4996 = vmatpush1.msra.mxu0 %v4888
        %4997 = vmatprep.subr.mxu0 %v4896
        %4998 = vmatpush1.msra.mxu0 %v4894
        %4999 = vmatprep.subr.mxu0 %v4902
        %5000 = vmatpush1.msra.mxu0 %v4900
        %5001 = vmatprep.subr.mxu0 0.0
        %5002 = vmatpush1.msra.mxu0 0.0
        %5003 = vmatprep.subr.mxu0 0.0
        %5004 = vmatpush1.msra.mxu0 0.0
        %5005 = vmatprep.subr.mxu0 0.0
        %5006 = vmatpush1.msra.mxu0 0.0
        %5007 = vmatprep.subr.mxu0 0.0
        %5008 = vmatpush1.msra.mxu0 0.0
        %5009 = vmatprep.subr.mxu0 0.0
        %5010 = vmatpush1.msra.mxu0 0.0
        %5011 = vmatprep.subr.mxu0 0.0
        %5012 = vmatpush1.msra.mxu0 0.0
        %5013 = vmatprep.subr.mxu0 0.0
        %5014 = vmatpush1.msra.mxu0 0.0
        %5015 = vmatprep.subr.mxu0 0.0
        %5016 = vmatpush1.msra.mxu0 0.0
        %5017 = vmatprep.subr.mxu0 0.0
        %5018 = vmatpush1.msra.mxu0 0.0
        %5019 = vmatprep.subr.mxu0 0.0
        %5020 = vmatpush1.msra.mxu0 0.0
        %5021 = vmatprep.subr.mxu0 0.0
        %5022 = vmatpush1.msra.mxu0 0.0
        %5023 = vmatprep.subr.mxu0 0.0
        %5024 = vmatpush1.msra.mxu0 0.0
        %5025 = vmatprep.subr.mxu0 0.0
        %5026 = vmatpush1.msra.mxu0 0.0
        %5027 = vmatprep.subr.mxu0 0.0
        %5028 = vmatpush1.msra.mxu0 0.0
        %5029 = vmatprep.subr.mxu0 0.0
        %5030 = vmatpush1.msra.mxu0 0.0
        %5031 = vmatprep.subr.mxu0 0.0
        %5032 = vmatpush1.msra.mxu0 0.0
        %5033 = vmatprep.subr.mxu0 0.0
        %5034 = vmatpush1.msra.mxu0 0.0
        %5035 = vmatprep.subr.mxu0 0.0
        %5036 = vmatpush1.msra.mxu0 0.0
        %5037 = vmatprep.subr.mxu0 0.0
        %5038 = vmatpush1.msra.mxu0 0.0
        %5039 = vmatprep.subr.mxu0 0.0
        %5040 = vmatpush1.msra.mxu0 0.0
        %5041 = vmatprep.subr.mxu0 0.0
        %5042 = vmatpush1.msra.mxu0 0.0
        %5043 = vmatprep.subr.mxu0 0.0
        %5044 = vmatpush1.msra.mxu0 0.0
        %5045 = vmatprep.subr.mxu0 0.0
        %5046 = vmatpush1.msra.mxu0 0.0
        %5047 = vmatprep.subr.mxu0 0.0
        %5048 = vmatpush1.msra.mxu0 0.0
        %5049 = vmatprep.subr.mxu0 0.0
        %5050 = vmatpush1.msra.mxu0 0.0
        %5051 = vmatprep.subr.mxu0 0.0
        %5052 = vmatpush1.msra.mxu0 0.0
        %5053 = vmatprep.subr.mxu0 0.0
        %5054 = vmatpush1.msra.mxu0 0.0
        %5055 = vmatprep.subr.mxu0 0.0
        %5056 = vmatpush1.msra.mxu0 0.0
        %5057 = vmatprep.mubr.f32.mxu0 0.0
        %5058 = vmatmul.mubr.f32.gmra.mrb[0].mxu0 %v2356
        %v5059 = vpop.f32.mrb[0].mxu0
        %v5060 = vadd.f32 %v2341, %v5059
        %v5061 = vpop.f32.mrb[0].mxu0
        %v5062 = vadd.f32 %v2341, %v5061
        %5063 = vmatprep.mubr.f32.mxu0 0.0
        %5064 = vmatmul.mubr.f32.gmra.mrb[0].mxu0 %v2359
        %v5065 = vpop.f32.mrb[0].mxu0
        %v5066 = vadd.f32 %v2345, %v5065
        %v5067 = vpop.f32.mrb[0].mxu0
        %v5068 = vadd.f32 %v2345, %v5067
        %5069 = vmatprep.mubr.f32.mxu0 0.0
        %5070 = vmatmul.mubr.f32.gmra.mrb[0].mxu0 %v2362
        %v5071 = vpop.f32.mrb[0].mxu0
        %v5072 = vadd.f32 %v2349, %v5071
        %v5073 = vpop.f32.mrb[0].mxu0
        %v5074 = vadd.f32 %v2349, %v5073
        %5075 = vmatprep.mubr.f32.mxu0 0.0
        %5076 = vmatmul.mubr.f32.gmra.mrb[0].mxu0 %v2365
        %v5077 = vpop.f32.mrb[0].mxu0
        %v5078 = vadd.f32 %v2353, %v5077
        %v5079 = vpop.f32.mrb[0].mxu0
        %v5080 = vadd.f32 %v2353, %v5079
        %5081 = vdwg.mxu0
        %5082 = vmatprep.subr.mxu0 %v4973
        %5083 = vmatpush1.msra.mxu0 %v4971
        %5084 = vmatprep.subr.mxu0 %v4979
        %5085 = vmatpush1.msra.mxu0 %v4977
        %5086 = vmatprep.subr.mxu0 %v4985
        %5087 = vmatpush1.msra.mxu0 %v4983
        %5088 = vmatprep.subr.mxu0 %v4991
        %5089 = vmatpush1.msra.mxu0 %v4989
        %5090 = vmatprep.subr.mxu0 0.0
        %5091 = vmatpush1.msra.mxu0 0.0
        %5092 = vmatprep.subr.mxu0 0.0
        %5093 = vmatpush1.msra.mxu0 0.0
        %5094 = vmatprep.subr.mxu0 0.0
        %5095 = vmatpush1.msra.mxu0 0.0
        %5096 = vmatprep.subr.mxu0 0.0
        %5097 = vmatpush1.msra.mxu0 0.0
        %5098 = vmatprep.subr.mxu0 0.0
        %5099 = vmatpush1.msra.mxu0 0.0
        %5100 = vmatprep.subr.mxu0 0.0
        %5101 = vmatpush1.msra.mxu0 0.0
        %5102 = vmatprep.subr.mxu0 0.0
        %5103 = vmatpush1.msra.mxu0 0.0
        %5104 = vmatprep.subr.mxu0 0.0
        %5105 = vmatpush1.msra.mxu0 0.0
        %5106 = vmatprep.subr.mxu0 0.0
        %5107 = vmatpush1.msra.mxu0 0.0
        %5108 = vmatprep.subr.mxu0 0.0
        %5109 = vmatpush1.msra.mxu0 0.0
        %5110 = vmatprep.subr.mxu0 0.0
        %5111 = vmatpush1.msra.mxu0 0.0
        %5112 = vmatprep.subr.mxu0 0.0
        %5113 = vmatpush1.msra.mxu0 0.0
        %5114 = vmatprep.subr.mxu0 0.0
        %5115 = vmatpush1.msra.mxu0 0.0
        %5116 = vmatprep.subr.mxu0 0.0
        %5117 = vmatpush1.msra.mxu0 0.0
        %5118 = vmatprep.subr.mxu0 0.0
        %5119 = vmatpush1.msra.mxu0 0.0
        %5120 = vmatprep.subr.mxu0 0.0
        %5121 = vmatpush1.msra.mxu0 0.0
        %5122 = vmatprep.subr.mxu0 0.0
        %5123 = vmatpush1.msra.mxu0 0.0
        %5124 = vmatprep.subr.mxu0 0.0
        %5125 = vmatpush1.msra.mxu0 0.0
        %5126 = vmatprep.subr.mxu0 0.0
        %5127 = vmatpush1.msra.mxu0 0.0
        %5128 = vmatprep.subr.mxu0 0.0
        %5129 = vmatpush1.msra.mxu0 0.0
        %5130 = vmatprep.subr.mxu0 0.0
        %5131 = vmatpush1.msra.mxu0 0.0
        %5132 = vmatprep.subr.mxu0 0.0
        %5133 = vmatpush1.msra.mxu0 0.0
        %5134 = vmatprep.subr.mxu0 0.0
        %5135 = vmatpush1.msra.mxu0 0.0
        %5136 = vmatprep.subr.mxu0 0.0
        %5137 = vmatpush1.msra.mxu0 0.0
        %5138 = vmatprep.subr.mxu0 0.0
        %5139 = vmatpush1.msra.mxu0 0.0
        %5140 = vmatprep.subr.mxu0 0.0
        %5141 = vmatpush1.msra.mxu0 0.0
        %5142 = vmatprep.subr.mxu0 0.0
        %5143 = vmatpush1.msra.mxu0 0.0
        %5144 = vmatprep.subr.mxu0 0.0
        %5145 = vmatpush1.msra.mxu0 0.0
        %5146 = vmatprep.mubr.f32.mxu0 0.0
        %5147 = vmatmul.mubr.f32.gmra.mrb[0].mxu0 %v2356
        %v5148 = vpop.f32.mrb[0].mxu0
        %v5149 = vadd.f32 %v2341, %v5148
        %v5150 = vpop.f32.mrb[0].mxu0
        %v5151 = vadd.f32 %v2341, %v5150
        %5152 = vmatprep.mubr.f32.mxu0 0.0
        %5153 = vmatmul.mubr.f32.gmra.mrb[0].mxu0 %v2359
        %v5154 = vpop.f32.mrb[0].mxu0
        %v5155 = vadd.f32 %v2345, %v5154
        %v5156 = vpop.f32.mrb[0].mxu0
        %v5157 = vadd.f32 %v2345, %v5156
        %5158 = vmatprep.mubr.f32.mxu0 0.0
        %5159 = vmatmul.mubr.f32.gmra.mrb[0].mxu0 %v2362
        %v5160 = vpop.f32.mrb[0].mxu0
        %v5161 = vadd.f32 %v2349, %v5160
        %v5162 = vpop.f32.mrb[0].mxu0
        %v5163 = vadd.f32 %v2349, %v5162
        %5164 = vmatprep.mubr.f32.mxu0 0.0
        %5165 = vmatmul.mubr.f32.gmra.mrb[0].mxu0 %v2365
        %v5166 = vpop.f32.mrb[0].mxu0
        %v5167 = vadd.f32 %v2353, %v5166
        %v5168 = vpop.f32.mrb[0].mxu0
        %v5169 = vadd.f32 %v2353, %v5168
        %5170 = vdwg.mxu0
        %v5171 = vmax.f32 %v5060, 0.0
        %v5172 = vmax.f32 %v5062, 0.0
        %v5173 = vmax.f32 %v5149, 0.0
        %v5174 = vmax.f32 %v5151, 0.0
        %v5175 = vmax.f32 %v5066, 0.0
        %v5176 = vmax.f32 %v5068, 0.0
        %v5177 = vmax.f32 %v5155, 0.0
        %v5178 = vmax.f32 %v5157, 0.0
        %v5179 = vmax.f32 %v5072, 0.0
        %v5180 = vmax.f32 %v5074, 0.0
        %v5181 = vmax.f32 %v5161, 0.0
        %v5182 = vmax.f32 %v5163, 0.0
        %v5183 = vmax.f32 %v5078, 0.0
        %v5184 = vmax.f32 %v5080, 0.0
        %v5185 = vmax.f32 %v5167, 0.0
        %v5186 = vmax.f32 %v5169, 0.0
        %5187 = vmatprep.subr.mxu0 %v5172
        %5188 = vmatpush1.msra.mxu0 %v5171
        %5189 = vmatprep.subr.mxu0 %v5176
        %5190 = vmatpush1.msra.mxu0 %v5175
        %5191 = vmatprep.subr.mxu0 %v5180
        %5192 = vmatpush1.msra.mxu0 %v5179
        %5193 = vmatprep.subr.mxu0 %v5184
        %5194 = vmatpush1.msra.mxu0 %v5183
        %5195 = vmatprep.subr.mxu0 0.0
        %5196 = vmatpush1.msra.mxu0 0.0
        %5197 = vmatprep.subr.mxu0 0.0
        %5198 = vmatpush1.msra.mxu0 0.0
        %5199 = vmatprep.subr.mxu0 0.0
        %5200 = vmatpush1.msra.mxu0 0.0
        %5201 = vmatprep.subr.mxu0 0.0
        %5202 = vmatpush1.msra.mxu0 0.0
        %5203 = vmatprep.subr.mxu0 0.0
        %5204 = vmatpush1.msra.mxu0 0.0
        %5205 = vmatprep.subr.mxu0 0.0
        %5206 = vmatpush1.msra.mxu0 0.0
        %5207 = vmatprep.subr.mxu0 0.0
        %5208 = vmatpush1.msra.mxu0 0.0
        %5209 = vmatprep.subr.mxu0 0.0
        %5210 = vmatpush1.msra.mxu0 0.0
        %5211 = vmatprep.subr.mxu0 0.0
        %5212 = vmatpush1.msra.mxu0 0.0
        %5213 = vmatprep.subr.mxu0 0.0
        %5214 = vmatpush1.msra.mxu0 0.0
        %5215 = vmatprep.subr.mxu0 0.0
        %5216 = vmatpush1.msra.mxu0 0.0
        %5217 = vmatprep.subr.mxu0 0.0
        %5218 = vmatpush1.msra.mxu0 0.0
        %5219 = vmatprep.subr.mxu0 0.0
        %5220 = vmatpush1.msra.mxu0 0.0
        %5221 = vmatprep.subr.mxu0 0.0
        %5222 = vmatpush1.msra.mxu0 0.0
        %5223 = vmatprep.subr.mxu0 0.0
        %5224 = vmatpush1.msra.mxu0 0.0
        %5225 = vmatprep.subr.mxu0 0.0
        %5226 = vmatpush1.msra.mxu0 0.0
        %5227 = vmatprep.subr.mxu0 0.0
        %5228 = vmatpush1.msra.mxu0 0.0
        %5229 = vmatprep.subr.mxu0 0.0
        %5230 = vmatpush1.msra.mxu0 0.0
        %5231 = vmatprep.subr.mxu0 0.0
        %5232 = vmatpush1.msra.mxu0 0.0
        %5233 = vmatprep.subr.mxu0 0.0
        %5234 = vmatpush1.msra.mxu0 0.0
        %5235 = vmatprep.subr.mxu0 0.0
        %5236 = vmatpush1.msra.mxu0 0.0
        %5237 = vmatprep.subr.mxu0 0.0
        %5238 = vmatpush1.msra.mxu0 0.0
        %5239 = vmatprep.subr.mxu0 0.0
        %5240 = vmatpush1.msra.mxu0 0.0
        %5241 = vmatprep.subr.mxu0 0.0
        %5242 = vmatpush1.msra.mxu0 0.0
        %5243 = vmatprep.subr.mxu0 0.0
        %5244 = vmatpush1.msra.mxu0 0.0
        %5245 = vmatprep.subr.mxu0 0.0
        %5246 = vmatpush1.msra.mxu0 0.0
        %5247 = vmatprep.subr.mxu0 0.0
        %5248 = vmatpush1.msra.mxu0 0.0
        %5249 = vmatprep.subr.mxu0 0.0
        %5250 = vmatpush1.msra.mxu0 0.0
        %5251 = vmatprep.mubr.f32.mxu0 0.0
        %5252 = vmatmul.mubr.f32.gmra.mrb[0].mxu0 %v2578
        %v5253 = vpop.f32.mrb[0].mxu0
        %v5254 = vadd.f32 %v2563, %v5253
        %v5255 = vpop.f32.mrb[0].mxu0
        %v5256 = vadd.f32 %v2563, %v5255
        %5257 = vmatprep.mubr.f32.mxu0 0.0
        %5258 = vmatmul.mubr.f32.gmra.mrb[0].mxu0 %v2581
        %v5259 = vpop.f32.mrb[0].mxu0
        %v5260 = vadd.f32 %v2567, %v5259
        %v5261 = vpop.f32.mrb[0].mxu0
        %v5262 = vadd.f32 %v2567, %v5261
        %5263 = vmatprep.mubr.f32.mxu0 0.0
        %5264 = vmatmul.mubr.f32.gmra.mrb[0].mxu0 %v2584
        %v5265 = vpop.f32.mrb[0].mxu0
        %v5266 = vadd.f32 %v2571, %v5265
        %v5267 = vpop.f32.mrb[0].mxu0
        %v5268 = vadd.f32 %v2571, %v5267
        %5269 = vmatprep.mubr.f32.mxu0 0.0
        %5270 = vmatmul.mubr.f32.gmra.mrb[0].mxu0 %v2587
        %v5271 = vpop.f32.mrb[0].mxu0
        %v5272 = vadd.f32 %v2575, %v5271
        %v5273 = vpop.f32.mrb[0].mxu0
        %v5274 = vadd.f32 %v2575, %v5273
        %5275 = vdwg.mxu0
        %5276 = vmatprep.subr.mxu0 %v5174
        %5277 = vmatpush1.msra.mxu0 %v5173
        %5278 = vmatprep.subr.mxu0 %v5178
        %5279 = vmatpush1.msra.mxu0 %v5177
        %5280 = vmatprep.subr.mxu0 %v5182
        %5281 = vmatpush1.msra.mxu0 %v5181
        %5282 = vmatprep.subr.mxu0 %v5186
        %5283 = vmatpush1.msra.mxu0 %v5185
        %5284 = vmatprep.subr.mxu0 0.0
        %5285 = vmatpush1.msra.mxu0 0.0
        %5286 = vmatprep.subr.mxu0 0.0
        %5287 = vmatpush1.msra.mxu0 0.0
        %5288 = vmatprep.subr.mxu0 0.0
        %5289 = vmatpush1.msra.mxu0 0.0
        %5290 = vmatprep.subr.mxu0 0.0
        %5291 = vmatpush1.msra.mxu0 0.0
        %5292 = vmatprep.subr.mxu0 0.0
        %5293 = vmatpush1.msra.mxu0 0.0
        %5294 = vmatprep.subr.mxu0 0.0
        %5295 = vmatpush1.msra.mxu0 0.0
        %5296 = vmatprep.subr.mxu0 0.0
        %5297 = vmatpush1.msra.mxu0 0.0
        %5298 = vmatprep.subr.mxu0 0.0
        %5299 = vmatpush1.msra.mxu0 0.0
        %5300 = vmatprep.subr.mxu0 0.0
        %5301 = vmatpush1.msra.mxu0 0.0
        %5302 = vmatprep.subr.mxu0 0.0
        %5303 = vmatpush1.msra.mxu0 0.0
        %5304 = vmatprep.subr.mxu0 0.0
        %5305 = vmatpush1.msra.mxu0 0.0
        %5306 = vmatprep.subr.mxu0 0.0
        %5307 = vmatpush1.msra.mxu0 0.0
        %5308 = vmatprep.subr.mxu0 0.0
        %5309 = vmatpush1.msra.mxu0 0.0
        %5310 = vmatprep.subr.mxu0 0.0
        %5311 = vmatpush1.msra.mxu0 0.0
        %5312 = vmatprep.subr.mxu0 0.0
        %5313 = vmatpush1.msra.mxu0 0.0
        %5314 = vmatprep.subr.mxu0 0.0
        %5315 = vmatpush1.msra.mxu0 0.0
        %5316 = vmatprep.subr.mxu0 0.0
        %5317 = vmatpush1.msra.mxu0 0.0
        %5318 = vmatprep.subr.mxu0 0.0
        %5319 = vmatpush1.msra.mxu0 0.0
        %5320 = vmatprep.subr.mxu0 0.0
        %5321 = vmatpush1.msra.mxu0 0.0
        %5322 = vmatprep.subr.mxu0 0.0
        %5323 = vmatpush1.msra.mxu0 0.0
        %5324 = vmatprep.subr.mxu0 0.0
        %5325 = vmatpush1.msra.mxu0 0.0
        %5326 = vmatprep.subr.mxu0 0.0
        %5327 = vmatpush1.msra.mxu0 0.0
        %5328 = vmatprep.subr.mxu0 0.0
        %5329 = vmatpush1.msra.mxu0 0.0
        %5330 = vmatprep.subr.mxu0 0.0
        %5331 = vmatpush1.msra.mxu0 0.0
        %5332 = vmatprep.subr.mxu0 0.0
        %5333 = vmatpush1.msra.mxu0 0.0
        %5334 = vmatprep.subr.mxu0 0.0
        %5335 = vmatpush1.msra.mxu0 0.0
        %5336 = vmatprep.subr.mxu0 0.0
        %5337 = vmatpush1.msra.mxu0 0.0
        %5338 = vmatprep.subr.mxu0 0.0
        %5339 = vmatpush1.msra.mxu0 0.0
        %5340 = vmatprep.mubr.f32.mxu0 0.0
        %5341 = vmatmul.mubr.f32.gmra.mrb[0].mxu0 %v2578
        %v5342 = vpop.f32.mrb[0].mxu0
        %v5343 = vadd.f32 %v2563, %v5342
        %v5344 = vpop.f32.mrb[0].mxu0
        %v5345 = vadd.f32 %v2563, %v5344
        %5346 = vmatprep.mubr.f32.mxu0 0.0
        %5347 = vmatmul.mubr.f32.gmra.mrb[0].mxu0 %v2581
        %v5348 = vpop.f32.mrb[0].mxu0
        %v5349 = vadd.f32 %v2567, %v5348
        %v5350 = vpop.f32.mrb[0].mxu0
        %v5351 = vadd.f32 %v2567, %v5350
        %5352 = vmatprep.mubr.f32.mxu0 0.0
        %5353 = vmatmul.mubr.f32.gmra.mrb[0].mxu0 %v2584
        %v5354 = vpop.f32.mrb[0].mxu0
        %v5355 = vadd.f32 %v2571, %v5354
        %v5356 = vpop.f32.mrb[0].mxu0
        %v5357 = vadd.f32 %v2571, %v5356
        %5358 = vmatprep.mubr.f32.mxu0 0.0
        %5359 = vmatmul.mubr.f32.gmra.mrb[0].mxu0 %v2587
        %v5360 = vpop.f32.mrb[0].mxu0
        %v5361 = vadd.f32 %v2575, %v5360
        %v5362 = vpop.f32.mrb[0].mxu0
        %v5363 = vadd.f32 %v2575, %v5362
        %5364 = vdwg.mxu0
        %v5365 = vmax.f32 %v5254, 0.0
        %v5366 = vmax.f32 %v5256, 0.0
        %v5367 = vmax.f32 %v5343, 0.0
        %v5368 = vmax.f32 %v5345, 0.0
        %v5369 = vmax.f32 %v5260, 0.0
        %v5370 = vmax.f32 %v5262, 0.0
        %v5371 = vmax.f32 %v5349, 0.0
        %v5372 = vmax.f32 %v5351, 0.0
        %v5373 = vmax.f32 %v5266, 0.0
        %v5374 = vmax.f32 %v5268, 0.0
        %v5375 = vmax.f32 %v5355, 0.0
        %v5376 = vmax.f32 %v5357, 0.0
        %v5377 = vmax.f32 %v5272, 0.0
        %v5378 = vmax.f32 %v5274, 0.0
        %v5379 = vmax.f32 %v5361, 0.0
        %v5380 = vmax.f32 %v5363, 0.0
        %5381 = vmatprep.subr.mxu0 %v5366
        %5382 = vmatpush1.msra.mxu0 %v5365
        %5383 = vmatprep.subr.mxu0 %v5370
        %5384 = vmatpush1.msra.mxu0 %v5369
        %5385 = vmatprep.subr.mxu0 %v5374
        %5386 = vmatpush1.msra.mxu0 %v5373
        %5387 = vmatprep.subr.mxu0 %v5378
        %5388 = vmatpush1.msra.mxu0 %v5377
        %5389 = vmatprep.subr.mxu0 0.0
        %5390 = vmatpush1.msra.mxu0 0.0
        %5391 = vmatprep.subr.mxu0 0.0
        %5392 = vmatpush1.msra.mxu0 0.0
        %5393 = vmatprep.subr.mxu0 0.0
        %5394 = vmatpush1.msra.mxu0 0.0
        %5395 = vmatprep.subr.mxu0 0.0
        %5396 = vmatpush1.msra.mxu0 0.0
        %5397 = vmatprep.subr.mxu0 0.0
        %5398 = vmatpush1.msra.mxu0 0.0
        %5399 = vmatprep.subr.mxu0 0.0
        %5400 = vmatpush1.msra.mxu0 0.0
        %5401 = vmatprep.subr.mxu0 0.0
        %5402 = vmatpush1.msra.mxu0 0.0
        %5403 = vmatprep.subr.mxu0 0.0
        %5404 = vmatpush1.msra.mxu0 0.0
        %5405 = vmatprep.subr.mxu0 0.0
        %5406 = vmatpush1.msra.mxu0 0.0
        %5407 = vmatprep.subr.mxu0 0.0
        %5408 = vmatpush1.msra.mxu0 0.0
        %5409 = vmatprep.subr.mxu0 0.0
        %5410 = vmatpush1.msra.mxu0 0.0
        %5411 = vmatprep.subr.mxu0 0.0
        %5412 = vmatpush1.msra.mxu0 0.0
        %5413 = vmatprep.subr.mxu0 0.0
        %5414 = vmatpush1.msra.mxu0 0.0
        %5415 = vmatprep.subr.mxu0 0.0
        %5416 = vmatpush1.msra.mxu0 0.0
        %5417 = vmatprep.subr.mxu0 0.0
        %5418 = vmatpush1.msra.mxu0 0.0
        %5419 = vmatprep.subr.mxu0 0.0
        %5420 = vmatpush1.msra.mxu0 0.0
        %5421 = vmatprep.subr.mxu0 0.0
        %5422 = vmatpush1.msra.mxu0 0.0
        %5423 = vmatprep.subr.mxu0 0.0
        %5424 = vmatpush1.msra.mxu0 0.0
        %5425 = vmatprep.subr.mxu0 0.0
        %5426 = vmatpush1.msra.mxu0 0.0
        %5427 = vmatprep.subr.mxu0 0.0
        %5428 = vmatpush1.msra.mxu0 0.0
        %5429 = vmatprep.subr.mxu0 0.0
        %5430 = vmatpush1.msra.mxu0 0.0
        %5431 = vmatprep.subr.mxu0 0.0
        %5432 = vmatpush1.msra.mxu0 0.0
        %5433 = vmatprep.subr.mxu0 0.0
        %5434 = vmatpush1.msra.mxu0 0.0
        %5435 = vmatprep.subr.mxu0 0.0
        %5436 = vmatpush1.msra.mxu0 0.0
        %5437 = vmatprep.subr.mxu0 0.0
        %5438 = vmatpush1.msra.mxu0 0.0
        %5439 = vmatprep.subr.mxu0 0.0
        %5440 = vmatpush1.msra.mxu0 0.0
        %5441 = vmatprep.subr.mxu0 0.0
        %5442 = vmatpush1.msra.mxu0 0.0
        %5443 = vmatprep.subr.mxu0 0.0
        %5444 = vmatpush1.msra.mxu0 0.0
        %5445 = vmatprep.mubr.f32.mxu0 0.0
        %5446 = vmatmul.mubr.f32.gmra.mrb[0].mxu0 %v2788
        %v5447 = vpop.f32.mrb[0].mxu0
        %v5448 = vadd.f32 %v2785, %v5447
        %v5449 = vpop.f32.mrb[0].mxu0
        %v5450 = vadd.f32 %v2785, %v5449
        %5451 = vdwg.mxu0
        %5452 = vmatprep.subr.mxu0 %v5368
        %5453 = vmatpush1.msra.mxu0 %v5367
        %5454 = vmatprep.subr.mxu0 %v5372
        %5455 = vmatpush1.msra.mxu0 %v5371
        %5456 = vmatprep.subr.mxu0 %v5376
        %5457 = vmatpush1.msra.mxu0 %v5375
        %5458 = vmatprep.subr.mxu0 %v5380
        %5459 = vmatpush1.msra.mxu0 %v5379
        %5460 = vmatprep.subr.mxu0 0.0
        %5461 = vmatpush1.msra.mxu0 0.0
        %5462 = vmatprep.subr.mxu0 0.0
        %5463 = vmatpush1.msra.mxu0 0.0
        %5464 = vmatprep.subr.mxu0 0.0
        %5465 = vmatpush1.msra.mxu0 0.0
        %5466 = vmatprep.subr.mxu0 0.0
        %5467 = vmatpush1.msra.mxu0 0.0
        %5468 = vmatprep.subr.mxu0 0.0
        %5469 = vmatpush1.msra.mxu0 0.0
        %5470 = vmatprep.subr.mxu0 0.0
        %5471 = vmatpush1.msra.mxu0 0.0
        %5472 = vmatprep.subr.mxu0 0.0
        %5473 = vmatpush1.msra.mxu0 0.0
        %5474 = vmatprep.subr.mxu0 0.0
        %5475 = vmatpush1.msra.mxu0 0.0
        %5476 = vmatprep.subr.mxu0 0.0
        %5477 = vmatpush1.msra.mxu0 0.0
        %5478 = vmatprep.subr.mxu0 0.0
        %5479 = vmatpush1.msra.mxu0 0.0
        %5480 = vmatprep.subr.mxu0 0.0
        %5481 = vmatpush1.msra.mxu0 0.0
        %5482 = vmatprep.subr.mxu0 0.0
        %5483 = vmatpush1.msra.mxu0 0.0
        %5484 = vmatprep.subr.mxu0 0.0
        %5485 = vmatpush1.msra.mxu0 0.0
        %5486 = vmatprep.subr.mxu0 0.0
        %5487 = vmatpush1.msra.mxu0 0.0
        %5488 = vmatprep.subr.mxu0 0.0
        %5489 = vmatpush1.msra.mxu0 0.0
        %5490 = vmatprep.subr.mxu0 0.0
        %5491 = vmatpush1.msra.mxu0 0.0
        %5492 = vmatprep.subr.mxu0 0.0
        %5493 = vmatpush1.msra.mxu0 0.0
        %5494 = vmatprep.subr.mxu0 0.0
        %5495 = vmatpush1.msra.mxu0 0.0
        %5496 = vmatprep.subr.mxu0 0.0
        %5497 = vmatpush1.msra.mxu0 0.0
        %5498 = vmatprep.subr.mxu0 0.0
        %5499 = vmatpush1.msra.mxu0 0.0
        %5500 = vmatprep.subr.mxu0 0.0
        %5501 = vmatpush1.msra.mxu0 0.0
        %5502 = vmatprep.subr.mxu0 0.0
        %5503 = vmatpush1.msra.mxu0 0.0
        %5504 = vmatprep.subr.mxu0 0.0
        %5505 = vmatpush1.msra.mxu0 0.0
        %5506 = vmatprep.subr.mxu0 0.0
        %5507 = vmatpush1.msra.mxu0 0.0
        %5508 = vmatprep.subr.mxu0 0.0
        %5509 = vmatpush1.msra.mxu0 0.0
        %5510 = vmatprep.subr.mxu0 0.0
        %5511 = vmatpush1.msra.mxu0 0.0
        %5512 = vmatprep.subr.mxu0 0.0
        %5513 = vmatpush1.msra.mxu0 0.0
        %5514 = vmatprep.subr.mxu0 0.0
        %5515 = vmatpush1.msra.mxu0 0.0
        %5516 = vmatprep.mubr.f32.mxu0 0.0
        %5517 = vmatmul.mubr.f32.gmra.mrb[0].mxu0 %v2788
        %v5518 = vpop.f32.mrb[0].mxu0
        %v5519 = vadd.f32 %v2785, %v5518
        %v5520 = vpop.f32.mrb[0].mxu0
        %v5521 = vadd.f32 %v2785, %v5520
        %5522 = vdwg.mxu0
        %v5527 = vcombine.low %v5448, %v5450
        %v5528 = vcombine.low %v5519, %v5521
        %s5531 = scalar_lea.vmem %s164, 16 [#allocation2]
        %5532 = vst [vmem:[%s5531] sm:$0x77] %v5527
        %5533 = vst [vmem:[%s5531 + $0x8] sm:$0x77] %v5528
        %s5534 = sand.u32 %s93, 1
        %s5535 = scalar_lea.sflag [#allocation3], %s5534
        %s5536 = sand.u32 %s93, 1
        %s5537 = smul.addr %s5536, 32
        %s5538 = scalar_lea.vmem [#allocation2], %s5537
        // Predicated region
        $region33: #{nerf_forward.1} parent=31 // pred_check
          %p5539 = pneg %p103
        $region34: #{nerf_forward.1} parent=31 // pred_check_branch
          %5541 = sbr.rel (%p5539) target = $region36
        $region35: #{nerf_forward.1} parent=31 // pred_region
          %s5542 = smul.u32 8, %s17
          %s5544 = ssub.s32 512, 512
          %5545 = vsyncadd %s5535, %s5544
          %s5546 = smul.addr %s5542, 64
          %s5547 = scalar_lea.hbm %s3, %s5546
          %s5549 = sshll.u32 %s5538, 4
          %s5550 = int_to_ptr.vmem [resolvable:$true] %s5549
          %5552 = dma.vmem_to_hbm [thread:$0]  %s5550, 512, %s5547, %s5535
        $region36: #{nerf_forward.1} parent=31 // pred_fallthru
          _
      $region32: #{nerf_forward.1} parent=5 // pred_fallthru
        _
      %p5553 = scmp.le.s32.totalorder 2, %s12
      // Predicated region
      $region37: #{nerf_forward.1} parent=5 // pred_check
        %p5554 = pneg %p5553
      $region38: #{nerf_forward.1} parent=5 // pred_check_branch
        %5556 = sbr.rel (%p5554) target = $region40
      $region39: #{nerf_forward.1} parent=5 // pred_region
        %s5557 = ssub.s32 %s12, 2
        // Predicated region
        $region41: #{nerf_forward.1} parent=39 // pred_check
          %p5558 = pneg %p109
        $region42: #{nerf_forward.1} parent=39 // pred_check_branch
          %5560 = sbr.rel (%p5558) target = $region44
        $region43: #{nerf_forward.1} parent=39 // pred_region
          %s5561 = sand.u32 %s94, 1
          %s5562 = scalar_lea.sflag [#allocation3], %s5561
          %s5563 = sand.u32 %s94, 1
          %s5564 = smul.addr %s5563, 32
          %s5565 = scalar_lea.vmem [#allocation2], %s5564
          %5566 = dma.done %s5562, 512
        $region44: #{nerf_forward.1} parent=39 // pred_fallthru
          _
      $region40: #{nerf_forward.1} parent=5 // pred_fallthru
        _
    $region6: #{nerf_forward.1} parent=1 // loop_footer
      %s16 = sadd.s32 1, %s12
    $region7: #{nerf_forward.1} parent=1 // loop_footer_branch
      %11 = sbr.rel target = $region3
    $region8: #{nerf_forward.1} parent=1 // loop_exit
      _
    %5567 = vsyncpa [#allocation3], 1
    %s5568 = scalar_lea.sflag [#allocation3], 1
    %5569 = vsyncpa %s5568, 1

</llo_original>
